<compile_context>
chip_gen: v7x
topology: tpu7x:2x2x1
jax: 0.10.0
libtpu: 0.0.40
codegen_flags: <defaults>
</compile_context>

<pallas_src>
import math

import jax
import jax.numpy as jnp
from jax import lax
from jax.experimental import pallas as pl
from jax.experimental.pallas import tpu as pltpu
from jax.scipy.special import erf as _erf_reference

# ---- small, structure-preserving model dims ----
CODEBOOK_SIZE = 256
EMBED_DIM = 32          # VQGAN codebook embedding dim
HIDDEN = 64             # ViT hidden dim (768 in vit_base, scaled down)
NUM_HEADS = 4
HEAD_DIM = HIDDEN // NUM_HEADS
MLP_HIDDEN = 4 * HIDDEN
DEPTH = 2               # number of transformer blocks (12 in vit_base)
NUM_CLASSES = 4
HEAD_PAD = 128          # lane-dense padded logits width inside the kernel
GRID_H = GRID_W = 4     # token grid (28x28 in the original; scaled down)
NUM_PATCHES = GRID_H * GRID_W
SEQ = NUM_PATCHES + 1   # +1 for CLS token
S_PAD = ((SEQ + 7) // 8) * 8          # sequence padded to a sublane multiple (24)
HS = NUM_HEADS * S_PAD                # head-stacked row count (96)
LN_EPS = 1e-6           # timm ViT LayerNorm eps
VEC_ROWS = 8            # per-layer (1,D) vectors packed into the first 8 rows

# misc slab row layout (lane width = HIDDEN)
_MISC_PROJW = 0                       # [0:EMBED_DIM)      projection weight (E, D)
_MISC_TOK = EMBED_DIM                 # [32:56)            cls+pos0 / proj_b+pos / zeros
_MISC_NORM_G = EMBED_DIM + S_PAD      # 56                 final norm gamma
_MISC_NORM_B = _MISC_NORM_G + 1       # 57                 final norm beta
MISC_ROWS = _MISC_NORM_B + 1          # 58

# d-wide per-layer slab row layout (lane width = HIDDEN)
_D_WPROJ = VEC_ROWS                   # [8:72)    attention output projection
_D_W2 = VEC_ROWS + HIDDEN             # [72:328)  MLP second matmul
D_SLAB_ROWS = VEC_ROWS + HIDDEN + MLP_HIDDEN


# ---------------------------------------------------------------------------
# erf / GELU helpers
# ---------------------------------------------------------------------------
# XLA's f32 erf rational-polynomial coefficients (mul/add only -> lowers in
# Mosaic).  Validated against jax.scipy.special.erf in __main__.
_ERF_ALPHA = (-2.72614225801306e-10, 2.77068142495902e-08, -2.10102402082508e-06,
              -5.69250639462346e-05, -7.34990630326855e-04, -2.95459980854025e-03,
              -1.60960333262415e-02)
_ERF_BETA = (-1.45660718464996e-05, -2.13374055278905e-04, -1.68282697438203e-03,
             -7.37332916720468e-03, -1.42647390514189e-02)


def _erf_poly(x):
    x = jnp.clip(x, -4.0, 4.0)
    x2 = x * x
    p = jnp.float32(_ERF_ALPHA[0])
    for c in _ERF_ALPHA[1:]:
        p = p * x2 + jnp.float32(c)
    q = jnp.float32(_ERF_BETA[0])
    for c in _ERF_BETA[1:]:
        q = q * x2 + jnp.float32(c)
    return x * p, q


def _erf_f32(x):
    num, den = _erf_poly(x)
    return num / den


def _erf_f32_fast(x):
    # kernel-only variant: EUP reciprocal instead of a VPU divide chain
    num, den = _erf_poly(x)
    return num * pl.reciprocal(den, approx=True)


def _gelu_exact(x, erf_fn=_erf_f32):
    # timm ViT uses nn.GELU() (erf-based, exact).
    return 0.5 * x * (1.0 + erf_fn(x * (1.0 / math.sqrt(2.0))))


def _layernorm(z, gamma, beta):
    mu = jnp.mean(z, axis=-1, keepdims=True)
    var = jnp.mean(jnp.square(z - mu), axis=-1, keepdims=True)
    return (z - mu) * lax.rsqrt(var + LN_EPS) * gamma + beta


def _stack_heads(qkv, base):
    # (S_PAD, 3D) value -> (H*S_PAD, HEAD_DIM) with heads stacked on sublanes.
    return jnp.concatenate(
        [qkv[:, base + h * HEAD_DIM: base + (h + 1) * HEAD_DIM]
         for h in range(NUM_HEADS)], axis=0)


def _unstack_heads(hv_s):
    # (H*S_PAD, HEAD_DIM) -> (S_PAD, D): place each head at its lane offset.
    return jnp.concatenate(
        [hv_s[h * S_PAD:(h + 1) * S_PAD, :] for h in range(NUM_HEADS)], axis=1)


# ---------------------------------------------------------------------------
# fused Pallas kernel: one grid step == one sample (batch grid, "parallel")
# ---------------------------------------------------------------------------
def _vit_kernel(x_ref, misc_ref, qkv_ref, mlp_ref, dsl_ref, head_ref, o_ref):
    scale = HEAD_DIM ** -0.5

    # --- patch projection + packed CLS/pos/bias token slab (aligned add) ---
    proj_w = misc_ref[_MISC_PROJW:_MISC_PROJW + EMBED_DIM, :]      # (E, D)
    tok = misc_ref[_MISC_TOK:_MISC_TOK + S_PAD, :]                 # (S_PAD, D)
    # x_ref[0]: (S_PAD, E) with row 0 (CLS) and rows SEQ.. (pad) zeroed.
    x = jnp.dot(x_ref[0], proj_w, preferred_element_type=jnp.float32) + tok

    # --- block-diagonal additive attention bias (heads on sublanes) ---
    r = lax.broadcasted_iota(jnp.int32, (HS, HS), 0)
    c = lax.broadcasted_iota(jnp.int32, (HS, HS), 1)
    head_r = jnp.zeros((HS, HS), jnp.int32)
    head_c = jnp.zeros((HS, HS), jnp.int32)
    for h in range(1, NUM_HEADS):                 # avoids integer div/mod
        head_r = head_r + (r >= h * S_PAD).astype(jnp.int32)
        head_c = head_c + (c >= h * S_PAD).astype(jnp.int32)
    valid = (head_r == head_c) & ((c - head_c * S_PAD) < SEQ)
    attn_bias = jnp.where(valid, 0.0, -1e30).astype(jnp.float32)

    # --- transformer blocks (static unroll; all weights VMEM-resident) ---
    for l in range(DEPTH):
        vec = dsl_ref[l, 0:VEC_ROWS, :]                            # (8, D)
        ln1_g, ln1_b = vec[0:1, :], vec[1:2, :]
        bproj = vec[2:3, :]
        ln2_g, ln2_b = vec[3:4, :], vec[4:5, :]
        b2 = vec[5:6, :]
        wproj = dsl_ref[l, _D_WPROJ:_D_WPROJ + HIDDEN, :]          # (D, D)
        w2 = dsl_ref[l, _D_W2:_D_W2 + MLP_HIDDEN, :]               # (4D, D)
        wqkv = qkv_ref[l, 0:HIDDEN, :]                             # (D, 3D)
        bqkv = qkv_ref[l, HIDDEN:HIDDEN + 1, :]                    # (1, 3D)
        w1 = mlp_ref[l, 0:HIDDEN, :]                               # (D, 4D)
        b1 = mlp_ref[l, HIDDEN:HIDDEN + 1, :]                      # (1, 4D)

        # pre-LN multi-head self-attention (one matmul per stage for all heads)
        xn = _layernorm(x, ln1_g, ln1_b)
        qkv = jnp.dot(xn, wqkv, preferred_element_type=jnp.float32) + bqkv
        q_s = _stack_heads(qkv, 0)                                 # (HS, Dh)
        k_s = _stack_heads(qkv, HIDDEN)
        v_s = _stack_heads(qkv, 2 * HIDDEN)
        s = lax.dot_general(q_s, k_s, (((1,), (1,)), ((), ())),
                            preferred_element_type=jnp.float32) * scale
        s = s + attn_bias                                          # mask pad keys / cross-head
        s = s - jnp.max(s, axis=-1, keepdims=True)
        p = jnp.exp(s)
        p = p / jnp.sum(p, axis=-1, keepdims=True)                 # exact divide (accuracy)
        hv = _unstack_heads(jnp.dot(p, v_s,
                                    preferred_element_type=jnp.float32))   # (S_PAD, D)
        x = x + jnp.dot(hv, wproj, preferred_element_type=jnp.float32) + bproj

        # pre-LN MLP with exact (erf) GELU
        xn2 = _layernorm(x, ln2_g, ln2_b)
        h1 = jnp.dot(xn2, w1, preferred_element_type=jnp.float32) + b1
        h1 = _gelu_exact(h1, erf_fn=_erf_f32_fast)
        x = x + jnp.dot(h1, w2, preferred_element_type=jnp.float32) + b2

    # --- final LayerNorm + classifier head on the first 8 rows (row 0 = CLS) ---
    norm_g = misc_ref[_MISC_NORM_G:_MISC_NORM_G + 1, :]
    norm_b = misc_ref[_MISC_NORM_B:_MISC_NORM_B + 1, :]
    head_w = head_ref[0:HIDDEN, :]                                 # (D, HEAD_PAD)
    head_b = head_ref[HIDDEN:HIDDEN + 1, :]
    clsn = _layernorm(x[0:8, :], norm_g, norm_b)                   # rows 1..7 discarded later
    o_ref[0] = jnp.dot(clsn, head_w, preferred_element_type=jnp.float32) + head_b


# ---------------------------------------------------------------------------
# parameters (deterministic synthetic init; no checkpoint load)
# ---------------------------------------------------------------------------
def init_params(key):
    keys = iter(jax.random.split(key, 32))

    def nrm(shape, scale=0.02):
        return scale * jax.random.normal(next(keys), shape, dtype=jnp.float32)

    params = {
        "codebook": nrm((CODEBOOK_SIZE, EMBED_DIM), 1.0),
        "proj_w": nrm((EMBED_DIM, HIDDEN)),
        "proj_b": jnp.zeros((1, HIDDEN), jnp.float32),
        "cls_token": nrm((1, HIDDEN)),
        # TODO(synk): the original interpolates pretrained pos_embed to 28*28+1
        # positions; a synthetic pos_embed of the target length is used here.
        "pos_embed": nrm((SEQ, HIDDEN)),
        "norm_g": jnp.ones((1, HIDDEN), jnp.float32),
        "norm_b": jnp.zeros((1, HIDDEN), jnp.float32),
        "cls_w": nrm((HIDDEN, NUM_CLASSES)),
        "cls_b": jnp.zeros((1, NUM_CLASSES), jnp.float32),
        "blocks": {
            "ln1_g": jnp.ones((DEPTH, 1, HIDDEN), jnp.float32),
            "ln1_b": jnp.zeros((DEPTH, 1, HIDDEN), jnp.float32),
            "wqkv": nrm((DEPTH, HIDDEN, 3 * HIDDEN)),
            "bqkv": jnp.zeros((DEPTH, 1, 3 * HIDDEN), jnp.float32),
            "wproj": nrm((DEPTH, HIDDEN, HIDDEN)),
            "bproj": jnp.zeros((DEPTH, 1, HIDDEN), jnp.float32),
            "ln2_g": jnp.ones((DEPTH, 1, HIDDEN), jnp.float32),
            "ln2_b": jnp.zeros((DEPTH, 1, HIDDEN), jnp.float32),
            "w1": nrm((DEPTH, HIDDEN, MLP_HIDDEN)),
            "b1": jnp.zeros((DEPTH, 1, MLP_HIDDEN), jnp.float32),
            "w2": nrm((DEPTH, MLP_HIDDEN, HIDDEN)),
            "b2": jnp.zeros((DEPTH, 1, HIDDEN), jnp.float32),
        },
    }
    return params


def pack_params(params):
    """One-time packing of all parameters into a handful of kernel operands."""
    blk = params["blocks"]

    # misc slab (MISC_ROWS, D): proj_w | token slab | norm_g | norm_b
    tok = jnp.zeros((S_PAD, HIDDEN), jnp.float32)
    tok = tok.at[0].set(params["cls_token"][0] + params["pos_embed"][0])
    tok = tok.at[1:SEQ].set(params["pos_embed"][1:SEQ] + params["proj_b"][0])
    misc = jnp.concatenate(
        [params["proj_w"], tok, params["norm_g"], params["norm_b"]], axis=0)

    # per-layer slabs, grouped by lane width
    qkv_slab = jnp.concatenate([blk["wqkv"], blk["bqkv"]], axis=1)       # (L, D+1, 3D)
    mlp_slab = jnp.concatenate([blk["w1"], blk["b1"]], axis=1)           # (L, D+1, 4D)
    vecs = jnp.concatenate(
        [blk["ln1_g"], blk["ln1_b"], blk["bproj"], blk["ln2_g"], blk["ln2_b"],
         blk["b2"], jnp.zeros((DEPTH, VEC_ROWS - 6, HIDDEN), jnp.float32)], axis=1)
    d_slab = jnp.concatenate([vecs, blk["wproj"], blk["w2"]], axis=1)    # (L, 328, D)

    # classifier head padded once to 128 lanes (lane-dense output block)
    head_w = jnp.pad(params["cls_w"], ((0, 0), (0, HEAD_PAD - NUM_CLASSES)))
    head_b = jnp.pad(params["cls_b"], ((0, 0), (0, HEAD_PAD - NUM_CLASSES)))
    head_slab = jnp.concatenate([head_w, head_b], axis=0)                # (D+1, 128)

    return {"codebook": params["codebook"], "misc": misc, "qkv": qkv_slab,
            "mlp": mlp_slab, "dsl": d_slab, "head": head_slab}


# ---------------------------------------------------------------------------
# forward pass: codebook gather in JAX, everything else in one pallas_call
# ---------------------------------------------------------------------------
def forward(indices, packed):
    B, Hg, Wg = indices.shape
    P = Hg * Wg
    assert P == NUM_PATCHES, f"Expected {NUM_PATCHES} patches, got {P}"

    # codebook lookup (embedding gather); pad to (B, S_PAD, E) with a zero CLS
    # row in front and zero tail rows -> the kernel builds x with one aligned add.
    emb = jnp.take(packed["codebook"], indices.reshape(B, P), axis=0)
    emb = jnp.pad(emb, ((0, 0), (1, S_PAD - 1 - P), (0, 0)))

    out = pl.pallas_call(
        _vit_kernel,
        out_shape=jax.ShapeDtypeStruct((B, 8, HEAD_PAD), jnp.float32),
        grid=(B,),
        in_specs=[
            pl.BlockSpec((1, S_PAD, EMBED_DIM), lambda b: (b, 0, 0)),
            pl.BlockSpec((MISC_ROWS, HIDDEN), lambda b: (0, 0)),
            pl.BlockSpec((DEPTH, HIDDEN + 1, 3 * HIDDEN), lambda b: (0, 0, 0)),
            pl.BlockSpec((DEPTH, HIDDEN + 1, MLP_HIDDEN), lambda b: (0, 0, 0)),
            pl.BlockSpec((DEPTH, D_SLAB_ROWS, HIDDEN), lambda b: (0, 0, 0)),
            pl.BlockSpec((HIDDEN + 1, HEAD_PAD), lambda b: (0, 0)),
        ],
        out_specs=pl.BlockSpec((1, 8, HEAD_PAD), lambda b: (b, 0, 0)),
        compiler_params=pltpu.CompilerParams(dimension_semantics=("parallel",)),
    )(emb, packed["misc"], packed["qkv"], packed["mlp"], packed["dsl"],
      packed["head"])
    return out[:, 0, :NUM_CLASSES]


# ---------------------------------------------------------------------------
# pure-JAX reference for sanity checking
# ---------------------------------------------------------------------------
def _ref_forward(indices, params):
    hi = lax.Precision.HIGHEST

    def mm(a, b):
        return jnp.matmul(a, b, precision=hi)

    def ln(z, g, b):
        mu = z.mean(-1, keepdims=True)
        var = ((z - mu) ** 2).mean(-1, keepdims=True)
        return (z - mu) / jnp.sqrt(var + LN_EPS) * g + b

    B, H, W = indices.shape
    x = jnp.take(params["codebook"], indices.reshape(B, H * W), axis=0)
    x = mm(x, params["proj_w"]) + params["proj_b"][0]
    cls = jnp.broadcast_to(params["cls_token"][None], (B, 1, HIDDEN))
    x = jnp.concatenate([cls, x], axis=1) + params["pos_embed"][None, :SEQ, :]
    blk = params["blocks"]
    for l in range(DEPTH):
        xn = ln(x, blk["ln1_g"][l], blk["ln1_b"][l])
        qkv = mm(xn, blk["wqkv"][l]) + blk["bqkv"][l]
        q, k, v = jnp.split(qkv, 3, axis=-1)
        q = q.reshape(B, SEQ, NUM_HEADS, HEAD_DIM).transpose(0, 2, 1, 3)
        k = k.reshape(B, SEQ, NUM_HEADS, HEAD_DIM).transpose(0, 2, 1, 3)
        v = v.reshape(B, SEQ, NUM_HEADS, HEAD_DIM).transpose(0, 2, 1, 3)
        s = jnp.einsum("bhqd,bhkd->bhqk", q, k, precision=hi) * HEAD_DIM ** -0.5
        p = jax.nn.softmax(s, axis=-1)
        o = jnp.einsum("bhqk,bhkd->bhqd", p, v, precision=hi)
        o = o.transpose(0, 2, 1, 3).reshape(B, SEQ, HIDDEN)
        x = x + (mm(o, blk["wproj"][l]) + blk["bproj"][l])
        xn2 = ln(x, blk["ln2_g"][l], blk["ln2_b"][l])
        h1 = mm(xn2, blk["w1"][l]) + blk["b1"][l]
        h1 = _gelu_exact(h1)            # exact-division erf
        x = x + (mm(h1, blk["w2"][l]) + blk["b2"][l])
    clsn = ln(x[:, 0, :], params["norm_g"], params["norm_b"])
    return mm(clsn, params["cls_w"]) + params["cls_b"][0]


if __name__ == "__main__":
    key = jax.random.PRNGKey(0)
    pkey, ikey = jax.random.split(key)
    params = init_params(pkey)
    packed = pack_params(params)
    indices = jax.random.randint(ikey, (2, GRID_H, GRID_W), 0, CODEBOOK_SIZE,
                                 dtype=jnp.int32)

    # one-time erf validation against the library erf (non-circular check)
    xs = jnp.linspace(-3.9, 3.9, 257, dtype=jnp.float32)
    erf_err = jnp.max(jnp.abs(_erf_f32(xs) - _erf_reference(xs)))
    assert float(erf_err) < 2e-5, float(erf_err)

    logits = jax.jit(forward)(indices, packed)
    logits = jax.block_until_ready(logits)
    assert logits.shape == (2, NUM_CLASSES)

    ref = _ref_forward(indices, params)
    # kernel uses an approx EUP reciprocal inside the GELU erf -> slight tolerance
    assert jnp.allclose(logits, ref, atol=3e-3, rtol=3e-3), (logits, ref)

    print("KERNEL_OK")
</pallas_src>

<mosaic_0001>
module attributes {stable_mosaic.version = 11 : i64} {
  func.func @_vit_kernel(%arg0: i32, %arg1: memref<1x24x32xf32, #tpu.memory_space<vmem>>, %arg2: memref<58x64xf32, #tpu.memory_space<vmem>>, %arg3: memref<2x65x192xf32, #tpu.memory_space<vmem>>, %arg4: memref<2x65x256xf32, #tpu.memory_space<vmem>>, %arg5: memref<2x328x64xf32, #tpu.memory_space<vmem>>, %arg6: memref<65x128xf32, #tpu.memory_space<vmem>>, %arg7: memref<1x8x128xf32, #tpu.memory_space<vmem>>) attributes {dimension_semantics = [#tpu.dimension_semantics<parallel>], iteration_bounds = array<i64: 2>, scalar_prefetch = 0 : i64, scratch_operands = 0 : i64, tpu.core_type = #tpu.core_type<tc>, window_params = [{transform_indices = @transform_0, window_bounds = array<i64: 1, 24, 32>}, {pipeline_mode = #tpu.pipeline_mode<synchronous>, transform_indices = @transform_1, window_bounds = array<i64: 58, 64>}, {pipeline_mode = #tpu.pipeline_mode<synchronous>, transform_indices = @transform_2, window_bounds = array<i64: 2, 65, 192>}, {pipeline_mode = #tpu.pipeline_mode<synchronous>, transform_indices = @transform_3, window_bounds = array<i64: 2, 65, 256>}, {pipeline_mode = #tpu.pipeline_mode<synchronous>, transform_indices = @transform_4, window_bounds = array<i64: 2, 328, 64>}, {pipeline_mode = #tpu.pipeline_mode<synchronous>, transform_indices = @transform_5, window_bounds = array<i64: 65, 128>}, {transform_indices = @transform_6, window_bounds = array<i64: 1, 8, 128>}]} {
    %c0 = arith.constant 0 : index
    %c0_0 = arith.constant 0 : index
    %0 = vector.load %arg2[%c0, %c0_0] : memref<58x64xf32, #tpu.memory_space<vmem>>, vector<32x64xf32>
    %c32 = arith.constant 32 : index
    %c0_1 = arith.constant 0 : index
    %1 = vector.load %arg2[%c32, %c0_1] : memref<58x64xf32, #tpu.memory_space<vmem>>, vector<24x64xf32>
    %c0_2 = arith.constant 0 : index
    %c0_3 = arith.constant 0 : index
    %c0_4 = arith.constant 0 : index
    %2 = vector.load %arg1[%c0_2, %c0_3, %c0_4] : memref<1x24x32xf32, #tpu.memory_space<vmem>>, vector<1x24x32xf32>
    %3 = vector.shape_cast %2 : vector<1x24x32xf32> to vector<24x32xf32>
    %cst = arith.constant dense<0.000000e+00> : vector<24x64xf32>
    %4 = tpu.matmul %3, %0, %cst {dimension_numbers = #tpu.dot_dimension_numbers<[1], [0], [0], [1], [0, 0, 1, 1], [], []>} : vector<24x32xf32>, vector<32x64xf32>, vector<24x64xf32> -> vector<24x64xf32>
    %5 = arith.addf %4, %1 : vector<24x64xf32>
    %6 = tpu.iota {dimensions = array<i32: 0>} : vector<96x96xi32>
    %7 = tpu.iota {dimensions = array<i32: 1>} : vector<96x96xi32>
    %c0_i32 = arith.constant 0 : i32
    %8 = vector.broadcast %c0_i32 : i32 to vector<96x96xi32>
    %c0_i32_5 = arith.constant 0 : i32
    %9 = vector.broadcast %c0_i32_5 : i32 to vector<96x96xi32>
    %c24_i32 = arith.constant 24 : i32
    %10 = vector.broadcast %c24_i32 : i32 to vector<96x96xi32>
    %11 = arith.cmpi sge, %6, %10 : vector<96x96xi32>
    %12 = arith.extui %11 : vector<96x96xi1> to vector<96x96xi32>
    %13 = arith.addi %8, %12 : vector<96x96xi32>
    %c24_i32_6 = arith.constant 24 : i32
    %14 = vector.broadcast %c24_i32_6 : i32 to vector<96x96xi32>
    %15 = arith.cmpi sge, %7, %14 : vector<96x96xi32>
    %16 = arith.extui %15 : vector<96x96xi1> to vector<96x96xi32>
    %17 = arith.addi %9, %16 : vector<96x96xi32>
    %c48_i32 = arith.constant 48 : i32
    %18 = vector.broadcast %c48_i32 : i32 to vector<96x96xi32>
    %19 = arith.cmpi sge, %6, %18 : vector<96x96xi32>
    %20 = arith.extui %19 : vector<96x96xi1> to vector<96x96xi32>
    %21 = arith.addi %13, %20 : vector<96x96xi32>
    %c48_i32_7 = arith.constant 48 : i32
    %22 = vector.broadcast %c48_i32_7 : i32 to vector<96x96xi32>
    %23 = arith.cmpi sge, %7, %22 : vector<96x96xi32>
    %24 = arith.extui %23 : vector<96x96xi1> to vector<96x96xi32>
    %25 = arith.addi %17, %24 : vector<96x96xi32>
    %c72_i32 = arith.constant 72 : i32
    %26 = vector.broadcast %c72_i32 : i32 to vector<96x96xi32>
    %27 = arith.cmpi sge, %6, %26 : vector<96x96xi32>
    %28 = arith.extui %27 : vector<96x96xi1> to vector<96x96xi32>
    %29 = arith.addi %21, %28 : vector<96x96xi32>
    %c72_i32_8 = arith.constant 72 : i32
    %30 = vector.broadcast %c72_i32_8 : i32 to vector<96x96xi32>
    %31 = arith.cmpi sge, %7, %30 : vector<96x96xi32>
    %32 = arith.extui %31 : vector<96x96xi1> to vector<96x96xi32>
    %33 = arith.addi %25, %32 : vector<96x96xi32>
    %34 = arith.cmpi eq, %29, %33 : vector<96x96xi32>
    %c24_i32_9 = arith.constant 24 : i32
    %35 = vector.broadcast %c24_i32_9 : i32 to vector<96x96xi32>
    %36 = arith.muli %33, %35 : vector<96x96xi32>
    %37 = arith.subi %7, %36 : vector<96x96xi32>
    %c17_i32 = arith.constant 17 : i32
    %38 = vector.broadcast %c17_i32 : i32 to vector<96x96xi32>
    %39 = arith.cmpi slt, %37, %38 : vector<96x96xi32>
    %40 = arith.andi %34, %39 : vector<96x96xi1>
    %cst_10 = arith.constant 0.000000e+00 : f32
    %cst_11 = arith.constant -1.000000e+30 : f32
    %41 = vector.broadcast %cst_10 : f32 to vector<96x96xf32>
    %42 = vector.broadcast %cst_11 : f32 to vector<96x96xf32>
    %43 = arith.select %40, %41, %42 : vector<96x96xi1>, vector<96x96xf32>
    %c0_12 = arith.constant 0 : index
    %c0_13 = arith.constant 0 : index
    %c0_14 = arith.constant 0 : index
    %44 = vector.load %arg5[%c0_12, %c0_13, %c0_14] : memref<2x328x64xf32, #tpu.memory_space<vmem>>, vector<1x8x64xf32>
    %45 = vector.shape_cast %44 : vector<1x8x64xf32> to vector<8x64xf32>
    %46 = vector.extract_strided_slice %45 {offsets = [0, 0], sizes = [1, 64], strides = [1, 1]} : vector<8x64xf32> to vector<1x64xf32>
    %47 = vector.extract_strided_slice %45 {offsets = [1, 0], sizes = [1, 64], strides = [1, 1]} : vector<8x64xf32> to vector<1x64xf32>
    %48 = vector.extract_strided_slice %45 {offsets = [2, 0], sizes = [1, 64], strides = [1, 1]} : vector<8x64xf32> to vector<1x64xf32>
    %49 = vector.extract_strided_slice %45 {offsets = [3, 0], sizes = [1, 64], strides = [1, 1]} : vector<8x64xf32> to vector<1x64xf32>
    %50 = vector.extract_strided_slice %45 {offsets = [4, 0], sizes = [1, 64], strides = [1, 1]} : vector<8x64xf32> to vector<1x64xf32>
    %51 = vector.extract_strided_slice %45 {offsets = [5, 0], sizes = [1, 64], strides = [1, 1]} : vector<8x64xf32> to vector<1x64xf32>
    %c0_15 = arith.constant 0 : index
    %c8 = arith.constant 8 : index
    %c0_16 = arith.constant 0 : index
    %52 = vector.load %arg5[%c0_15, %c8, %c0_16] : memref<2x328x64xf32, #tpu.memory_space<vmem>>, vector<1x64x64xf32>
    %53 = vector.shape_cast %52 : vector<1x64x64xf32> to vector<64x64xf32>
    %c0_17 = arith.constant 0 : index
    %c72 = arith.constant 72 : index
    %c0_18 = arith.constant 0 : index
    %54 = vector.load %arg5[%c0_17, %c72, %c0_18] : memref<2x328x64xf32, #tpu.memory_space<vmem>>, vector<1x256x64xf32>
    %55 = vector.shape_cast %54 : vector<1x256x64xf32> to vector<256x64xf32>
    %c0_19 = arith.constant 0 : index
    %c0_20 = arith.constant 0 : index
    %c0_21 = arith.constant 0 : index
    %56 = vector.load %arg3[%c0_19, %c0_20, %c0_21] : memref<2x65x192xf32, #tpu.memory_space<vmem>>, vector<1x64x192xf32>
    %57 = vector.shape_cast %56 : vector<1x64x192xf32> to vector<64x192xf32>
    %c0_22 = arith.constant 0 : index
    %c64 = arith.constant 64 : index
    %c0_23 = arith.constant 0 : index
    %58 = vector.load %arg3[%c0_22, %c64, %c0_23] : memref<2x65x192xf32, #tpu.memory_space<vmem>>, vector<1x1x192xf32>
    %59 = vector.shape_cast %58 : vector<1x1x192xf32> to vector<1x192xf32>
    %c0_24 = arith.constant 0 : index
    %c0_25 = arith.constant 0 : index
    %c0_26 = arith.constant 0 : index
    %60 = vector.load %arg4[%c0_24, %c0_25, %c0_26] : memref<2x65x256xf32, #tpu.memory_space<vmem>>, vector<1x64x256xf32>
    %61 = vector.shape_cast %60 : vector<1x64x256xf32> to vector<64x256xf32>
    %c0_27 = arith.constant 0 : index
    %c64_28 = arith.constant 64 : index
    %c0_29 = arith.constant 0 : index
    %62 = vector.load %arg4[%c0_27, %c64_28, %c0_29] : memref<2x65x256xf32, #tpu.memory_space<vmem>>, vector<1x1x256xf32>
    %63 = vector.shape_cast %62 : vector<1x1x256xf32> to vector<1x256xf32>
    %cst_30 = arith.constant dense<0.000000e+00> : vector<24xf32>
    %64 = vector.multi_reduction <add>, %5, %cst_30 [1] : vector<24x64xf32> to vector<24xf32>
    %65 = vector.shape_cast %64 : vector<24xf32> to vector<24x1xf32>
    %cst_31 = arith.constant 6.400000e+01 : f32
    %66 = vector.broadcast %cst_31 : f32 to vector<24x1xf32>
    %67 = arith.divf %65, %66 : vector<24x1xf32>
    %68 = vector.broadcast %67 : vector<24x1xf32> to vector<24x64xf32>
    %69 = arith.subf %5, %68 : vector<24x64xf32>
    %70 = arith.mulf %69, %69 : vector<24x64xf32>
    %cst_32 = arith.constant dense<0.000000e+00> : vector<24xf32>
    %71 = vector.multi_reduction <add>, %70, %cst_32 [1] : vector<24x64xf32> to vector<24xf32>
    %72 = vector.shape_cast %71 : vector<24xf32> to vector<24x1xf32>
    %cst_33 = arith.constant 6.400000e+01 : f32
    %73 = vector.broadcast %cst_33 : f32 to vector<24x1xf32>
    %74 = arith.divf %72, %73 : vector<24x1xf32>
    %75 = vector.broadcast %67 : vector<24x1xf32> to vector<24x64xf32>
    %76 = arith.subf %5, %75 : vector<24x64xf32>
    %cst_34 = arith.constant 9.99999997E-7 : f32
    %77 = vector.broadcast %cst_34 : f32 to vector<24x1xf32>
    %78 = arith.addf %74, %77 : vector<24x1xf32>
    %79 = math.rsqrt %78 : vector<24x1xf32>
    %80 = vector.broadcast %79 : vector<24x1xf32> to vector<24x64xf32>
    %81 = arith.mulf %76, %80 : vector<24x64xf32>
    %82 = vector.broadcast %46 : vector<1x64xf32> to vector<24x64xf32>
    %83 = arith.mulf %81, %82 : vector<24x64xf32>
    %84 = vector.broadcast %47 : vector<1x64xf32> to vector<24x64xf32>
    %85 = arith.addf %83, %84 : vector<24x64xf32>
    %cst_35 = arith.constant dense<0.000000e+00> : vector<24x192xf32>
    %86 = tpu.matmul %85, %57, %cst_35 {dimension_numbers = #tpu.dot_dimension_numbers<[1], [0], [0], [1], [0, 0, 1, 1], [], []>} : vector<24x64xf32>, vector<64x192xf32>, vector<24x192xf32> -> vector<24x192xf32>
    %87 = vector.broadcast %59 : vector<1x192xf32> to vector<24x192xf32>
    %88 = arith.addf %86, %87 : vector<24x192xf32>
    %89 = vector.extract_strided_slice %88 {offsets = [0, 0], sizes = [24, 16], strides = [1, 1]} : vector<24x192xf32> to vector<24x16xf32>
    %90 = vector.extract_strided_slice %88 {offsets = [0, 16], sizes = [24, 16], strides = [1, 1]} : vector<24x192xf32> to vector<24x16xf32>
    %91 = vector.extract_strided_slice %88 {offsets = [0, 32], sizes = [24, 16], strides = [1, 1]} : vector<24x192xf32> to vector<24x16xf32>
    %92 = vector.extract_strided_slice %88 {offsets = [0, 48], sizes = [24, 16], strides = [1, 1]} : vector<24x192xf32> to vector<24x16xf32>
    %93 = tpu.concatenate %89, %90, %91, %92 in 0 : vector<24x16xf32>, vector<24x16xf32>, vector<24x16xf32>, vector<24x16xf32> -> vector<96x16xf32>
    %94 = vector.extract_strided_slice %88 {offsets = [0, 64], sizes = [24, 16], strides = [1, 1]} : vector<24x192xf32> to vector<24x16xf32>
    %95 = vector.extract_strided_slice %88 {offsets = [0, 80], sizes = [24, 16], strides = [1, 1]} : vector<24x192xf32> to vector<24x16xf32>
    %96 = vector.extract_strided_slice %88 {offsets = [0, 96], sizes = [24, 16], strides = [1, 1]} : vector<24x192xf32> to vector<24x16xf32>
    %97 = vector.extract_strided_slice %88 {offsets = [0, 112], sizes = [24, 16], strides = [1, 1]} : vector<24x192xf32> to vector<24x16xf32>
    %98 = tpu.concatenate %94, %95, %96, %97 in 0 : vector<24x16xf32>, vector<24x16xf32>, vector<24x16xf32>, vector<24x16xf32> -> vector<96x16xf32>
    %99 = vector.extract_strided_slice %88 {offsets = [0, 128], sizes = [24, 16], strides = [1, 1]} : vector<24x192xf32> to vector<24x16xf32>
    %100 = vector.extract_strided_slice %88 {offsets = [0, 144], sizes = [24, 16], strides = [1, 1]} : vector<24x192xf32> to vector<24x16xf32>
    %101 = vector.extract_strided_slice %88 {offsets = [0, 160], sizes = [24, 16], strides = [1, 1]} : vector<24x192xf32> to vector<24x16xf32>
    %102 = vector.extract_strided_slice %88 {offsets = [0, 176], sizes = [24, 16], strides = [1, 1]} : vector<24x192xf32> to vector<24x16xf32>
    %103 = tpu.concatenate %99, %100, %101, %102 in 0 : vector<24x16xf32>, vector<24x16xf32>, vector<24x16xf32>, vector<24x16xf32> -> vector<96x16xf32>
    %cst_36 = arith.constant dense<0.000000e+00> : vector<96x96xf32>
    %104 = tpu.matmul %93, %98, %cst_36 {dimension_numbers = #tpu.dot_dimension_numbers<[1], [1], [0], [0], [0, 0, 1, 0], [], []>} : vector<96x16xf32>, vector<96x16xf32>, vector<96x96xf32> -> vector<96x96xf32>
    %cst_37 = arith.constant 2.500000e-01 : f32
    %105 = vector.broadcast %cst_37 : f32 to vector<96x96xf32>
    %106 = arith.mulf %104, %105 : vector<96x96xf32>
    %107 = arith.addf %106, %43 : vector<96x96xf32>
    %cst_38 = arith.constant dense<0xFF800000> : vector<96xf32>
    %108 = vector.multi_reduction <maximumf>, %107, %cst_38 [1] : vector<96x96xf32> to vector<96xf32>
    %109 = vector.shape_cast %108 : vector<96xf32> to vector<96x1xf32>
    %110 = vector.broadcast %109 : vector<96x1xf32> to vector<96x96xf32>
    %111 = arith.subf %107, %110 : vector<96x96xf32>
    %112 = math.exp %111 : vector<96x96xf32>
    %cst_39 = arith.constant dense<0.000000e+00> : vector<96xf32>
    %113 = vector.multi_reduction <add>, %112, %cst_39 [1] : vector<96x96xf32> to vector<96xf32>
    %114 = vector.shape_cast %113 : vector<96xf32> to vector<96x1xf32>
    %115 = vector.broadcast %114 : vector<96x1xf32> to vector<96x96xf32>
    %116 = arith.divf %112, %115 : vector<96x96xf32>
    %cst_40 = arith.constant dense<0.000000e+00> : vector<96x16xf32>
    %117 = tpu.matmul %116, %103, %cst_40 {dimension_numbers = #tpu.dot_dimension_numbers<[1], [0], [0], [1], [0, 0, 1, 1], [], []>} : vector<96x96xf32>, vector<96x16xf32>, vector<96x16xf32> -> vector<96x16xf32>
    %118 = vector.extract_strided_slice %117 {offsets = [0, 0], sizes = [24, 16], strides = [1, 1]} : vector<96x16xf32> to vector<24x16xf32>
    %119 = vector.extract_strided_slice %117 {offsets = [24, 0], sizes = [24, 16], strides = [1, 1]} : vector<96x16xf32> to vector<24x16xf32>
    %120 = vector.extract_strided_slice %117 {offsets = [48, 0], sizes = [24, 16], strides = [1, 1]} : vector<96x16xf32> to vector<24x16xf32>
    %121 = vector.extract_strided_slice %117 {offsets = [72, 0], sizes = [24, 16], strides = [1, 1]} : vector<96x16xf32> to vector<24x16xf32>
    %122 = tpu.concatenate %118, %119, %120, %121 in 1 : vector<24x16xf32>, vector<24x16xf32>, vector<24x16xf32>, vector<24x16xf32> -> vector<24x64xf32>
    %cst_41 = arith.constant dense<0.000000e+00> : vector<24x64xf32>
    %123 = tpu.matmul %122, %53, %cst_41 {dimension_numbers = #tpu.dot_dimension_numbers<[1], [0], [0], [1], [0, 0, 1, 1], [], []>} : vector<24x64xf32>, vector<64x64xf32>, vector<24x64xf32> -> vector<24x64xf32>
    %124 = arith.addf %5, %123 : vector<24x64xf32>
    %125 = vector.broadcast %48 : vector<1x64xf32> to vector<24x64xf32>
    %126 = arith.addf %124, %125 : vector<24x64xf32>
    %cst_42 = arith.constant dense<0.000000e+00> : vector<24xf32>
    %127 = vector.multi_reduction <add>, %126, %cst_42 [1] : vector<24x64xf32> to vector<24xf32>
    %128 = vector.shape_cast %127 : vector<24xf32> to vector<24x1xf32>
    %cst_43 = arith.constant 6.400000e+01 : f32
    %129 = vector.broadcast %cst_43 : f32 to vector<24x1xf32>
    %130 = arith.divf %128, %129 : vector<24x1xf32>
    %131 = vector.broadcast %130 : vector<24x1xf32> to vector<24x64xf32>
    %132 = arith.subf %126, %131 : vector<24x64xf32>
    %133 = arith.mulf %132, %132 : vector<24x64xf32>
    %cst_44 = arith.constant dense<0.000000e+00> : vector<24xf32>
    %134 = vector.multi_reduction <add>, %133, %cst_44 [1] : vector<24x64xf32> to vector<24xf32>
    %135 = vector.shape_cast %134 : vector<24xf32> to vector<24x1xf32>
    %cst_45 = arith.constant 6.400000e+01 : f32
    %136 = vector.broadcast %cst_45 : f32 to vector<24x1xf32>
    %137 = arith.divf %135, %136 : vector<24x1xf32>
    %138 = vector.broadcast %130 : vector<24x1xf32> to vector<24x64xf32>
    %139 = arith.subf %126, %138 : vector<24x64xf32>
    %cst_46 = arith.constant 9.99999997E-7 : f32
    %140 = vector.broadcast %cst_46 : f32 to vector<24x1xf32>
    %141 = arith.addf %137, %140 : vector<24x1xf32>
    %142 = math.rsqrt %141 : vector<24x1xf32>
    %143 = vector.broadcast %142 : vector<24x1xf32> to vector<24x64xf32>
    %144 = arith.mulf %139, %143 : vector<24x64xf32>
    %145 = vector.broadcast %49 : vector<1x64xf32> to vector<24x64xf32>
    %146 = arith.mulf %144, %145 : vector<24x64xf32>
    %147 = vector.broadcast %50 : vector<1x64xf32> to vector<24x64xf32>
    %148 = arith.addf %146, %147 : vector<24x64xf32>
    %cst_47 = arith.constant dense<0.000000e+00> : vector<24x256xf32>
    %149 = tpu.matmul %148, %61, %cst_47 {dimension_numbers = #tpu.dot_dimension_numbers<[1], [0], [0], [1], [0, 0, 1, 1], [], []>} : vector<24x64xf32>, vector<64x256xf32>, vector<24x256xf32> -> vector<24x256xf32>
    %150 = vector.broadcast %63 : vector<1x256xf32> to vector<24x256xf32>
    %151 = arith.addf %149, %150 : vector<24x256xf32>
    %cst_48 = arith.constant 5.000000e-01 : f32
    %152 = vector.broadcast %cst_48 : f32 to vector<24x256xf32>
    %153 = arith.mulf %152, %151 : vector<24x256xf32>
    %cst_49 = arith.constant 0.707106769 : f32
    %154 = vector.broadcast %cst_49 : f32 to vector<24x256xf32>
    %155 = arith.mulf %151, %154 : vector<24x256xf32>
    %cst_50 = arith.constant -4.000000e+00 : f32
    %cst_51 = arith.constant 4.000000e+00 : f32
    %156 = vector.broadcast %cst_50 : f32 to vector<24x256xf32>
    %157 = arith.maximumf %156, %155 : vector<24x256xf32>
    %158 = vector.broadcast %cst_51 : f32 to vector<24x256xf32>
    %159 = arith.minimumf %158, %157 : vector<24x256xf32>
    %160 = arith.mulf %159, %159 : vector<24x256xf32>
    %cst_52 = arith.constant -2.72614237E-10 : f32
    %161 = vector.broadcast %cst_52 : f32 to vector<24x256xf32>
    %162 = arith.mulf %161, %160 : vector<24x256xf32>
    %cst_53 = arith.constant 2.77068146E-8 : f32
    %163 = vector.broadcast %cst_53 : f32 to vector<24x256xf32>
    %164 = arith.addf %162, %163 : vector<24x256xf32>
    %165 = arith.mulf %164, %160 : vector<24x256xf32>
    %cst_54 = arith.constant -2.10102394E-6 : f32
    %166 = vector.broadcast %cst_54 : f32 to vector<24x256xf32>
    %167 = arith.addf %165, %166 : vector<24x256xf32>
    %168 = arith.mulf %167, %160 : vector<24x256xf32>
    %cst_55 = arith.constant -5.69250624E-5 : f32
    %169 = vector.broadcast %cst_55 : f32 to vector<24x256xf32>
    %170 = arith.addf %168, %169 : vector<24x256xf32>
    %171 = arith.mulf %170, %160 : vector<24x256xf32>
    %cst_56 = arith.constant -7.34990637E-4 : f32
    %172 = vector.broadcast %cst_56 : f32 to vector<24x256xf32>
    %173 = arith.addf %171, %172 : vector<24x256xf32>
    %174 = arith.mulf %173, %160 : vector<24x256xf32>
    %cst_57 = arith.constant -2.954600e-03 : f32
    %175 = vector.broadcast %cst_57 : f32 to vector<24x256xf32>
    %176 = arith.addf %174, %175 : vector<24x256xf32>
    %177 = arith.mulf %176, %160 : vector<24x256xf32>
    %cst_58 = arith.constant -0.0160960332 : f32
    %178 = vector.broadcast %cst_58 : f32 to vector<24x256xf32>
    %179 = arith.addf %177, %178 : vector<24x256xf32>
    %cst_59 = arith.constant -1.45660715E-5 : f32
    %180 = vector.broadcast %cst_59 : f32 to vector<24x256xf32>
    %181 = arith.mulf %180, %160 : vector<24x256xf32>
    %cst_60 = arith.constant -2.13374049E-4 : f32
    %182 = vector.broadcast %cst_60 : f32 to vector<24x256xf32>
    %183 = arith.addf %181, %182 : vector<24x256xf32>
    %184 = arith.mulf %183, %160 : vector<24x256xf32>
    %cst_61 = arith.constant -0.00168282702 : f32
    %185 = vector.broadcast %cst_61 : f32 to vector<24x256xf32>
    %186 = arith.addf %184, %185 : vector<24x256xf32>
    %187 = arith.mulf %186, %160 : vector<24x256xf32>
    %cst_62 = arith.constant -0.00737332925 : f32
    %188 = vector.broadcast %cst_62 : f32 to vector<24x256xf32>
    %189 = arith.addf %187, %188 : vector<24x256xf32>
    %190 = arith.mulf %189, %160 : vector<24x256xf32>
    %cst_63 = arith.constant -0.0142647391 : f32
    %191 = vector.broadcast %cst_63 : f32 to vector<24x256xf32>
    %192 = arith.addf %190, %191 : vector<24x256xf32>
    %193 = arith.mulf %159, %179 : vector<24x256xf32>
    %194 = tpu.reciprocal %192 {approx = true} : vector<24x256xf32> -> vector<24x256xf32>
    %195 = arith.mulf %193, %194 : vector<24x256xf32>
    %cst_64 = arith.constant 1.000000e+00 : f32
    %196 = vector.broadcast %cst_64 : f32 to vector<24x256xf32>
    %197 = arith.addf %196, %195 : vector<24x256xf32>
    %198 = arith.mulf %153, %197 : vector<24x256xf32>
    %cst_65 = arith.constant dense<0.000000e+00> : vector<24x64xf32>
    %199 = tpu.matmul %198, %55, %cst_65 {dimension_numbers = #tpu.dot_dimension_numbers<[1], [0], [0], [1], [0, 0, 1, 1], [], []>} : vector<24x256xf32>, vector<256x64xf32>, vector<24x64xf32> -> vector<24x64xf32>
    %200 = arith.addf %126, %199 : vector<24x64xf32>
    %201 = vector.broadcast %51 : vector<1x64xf32> to vector<24x64xf32>
    %202 = arith.addf %200, %201 : vector<24x64xf32>
    %c1 = arith.constant 1 : index
    %c0_66 = arith.constant 0 : index
    %c0_67 = arith.constant 0 : index
    %203 = vector.load %arg5[%c1, %c0_66, %c0_67] : memref<2x328x64xf32, #tpu.memory_space<vmem>>, vector<1x8x64xf32>
    %204 = vector.shape_cast %203 : vector<1x8x64xf32> to vector<8x64xf32>
    %205 = vector.extract_strided_slice %204 {offsets = [0, 0], sizes = [1, 64], strides = [1, 1]} : vector<8x64xf32> to vector<1x64xf32>
    %206 = vector.extract_strided_slice %204 {offsets = [1, 0], sizes = [1, 64], strides = [1, 1]} : vector<8x64xf32> to vector<1x64xf32>
    %207 = vector.extract_strided_slice %204 {offsets = [2, 0], sizes = [1, 64], strides = [1, 1]} : vector<8x64xf32> to vector<1x64xf32>
    %208 = vector.extract_strided_slice %204 {offsets = [3, 0], sizes = [1, 64], strides = [1, 1]} : vector<8x64xf32> to vector<1x64xf32>
    %209 = vector.extract_strided_slice %204 {offsets = [4, 0], sizes = [1, 64], strides = [1, 1]} : vector<8x64xf32> to vector<1x64xf32>
    %210 = vector.extract_strided_slice %204 {offsets = [5, 0], sizes = [1, 64], strides = [1, 1]} : vector<8x64xf32> to vector<1x64xf32>
    %c1_68 = arith.constant 1 : index
    %c8_69 = arith.constant 8 : index
    %c0_70 = arith.constant 0 : index
    %211 = vector.load %arg5[%c1_68, %c8_69, %c0_70] : memref<2x328x64xf32, #tpu.memory_space<vmem>>, vector<1x64x64xf32>
    %212 = vector.shape_cast %211 : vector<1x64x64xf32> to vector<64x64xf32>
    %c1_71 = arith.constant 1 : index
    %c72_72 = arith.constant 72 : index
    %c0_73 = arith.constant 0 : index
    %213 = vector.load %arg5[%c1_71, %c72_72, %c0_73] : memref<2x328x64xf32, #tpu.memory_space<vmem>>, vector<1x256x64xf32>
    %214 = vector.shape_cast %213 : vector<1x256x64xf32> to vector<256x64xf32>
    %c1_74 = arith.constant 1 : index
    %c0_75 = arith.constant 0 : index
    %c0_76 = arith.constant 0 : index
    %215 = vector.load %arg3[%c1_74, %c0_75, %c0_76] : memref<2x65x192xf32, #tpu.memory_space<vmem>>, vector<1x64x192xf32>
    %216 = vector.shape_cast %215 : vector<1x64x192xf32> to vector<64x192xf32>
    %c1_77 = arith.constant 1 : index
    %c64_78 = arith.constant 64 : index
    %c0_79 = arith.constant 0 : index
    %217 = vector.load %arg3[%c1_77, %c64_78, %c0_79] : memref<2x65x192xf32, #tpu.memory_space<vmem>>, vector<1x1x192xf32>
    %218 = vector.shape_cast %217 : vector<1x1x192xf32> to vector<1x192xf32>
    %c1_80 = arith.constant 1 : index
    %c0_81 = arith.constant 0 : index
    %c0_82 = arith.constant 0 : index
    %219 = vector.load %arg4[%c1_80, %c0_81, %c0_82] : memref<2x65x256xf32, #tpu.memory_space<vmem>>, vector<1x64x256xf32>
    %220 = vector.shape_cast %219 : vector<1x64x256xf32> to vector<64x256xf32>
    %c1_83 = arith.constant 1 : index
    %c64_84 = arith.constant 64 : index
    %c0_85 = arith.constant 0 : index
    %221 = vector.load %arg4[%c1_83, %c64_84, %c0_85] : memref<2x65x256xf32, #tpu.memory_space<vmem>>, vector<1x1x256xf32>
    %222 = vector.shape_cast %221 : vector<1x1x256xf32> to vector<1x256xf32>
    %cst_86 = arith.constant dense<0.000000e+00> : vector<24xf32>
    %223 = vector.multi_reduction <add>, %202, %cst_86 [1] : vector<24x64xf32> to vector<24xf32>
    %224 = vector.shape_cast %223 : vector<24xf32> to vector<24x1xf32>
    %cst_87 = arith.constant 6.400000e+01 : f32
    %225 = vector.broadcast %cst_87 : f32 to vector<24x1xf32>
    %226 = arith.divf %224, %225 : vector<24x1xf32>
    %227 = vector.broadcast %226 : vector<24x1xf32> to vector<24x64xf32>
    %228 = arith.subf %202, %227 : vector<24x64xf32>
    %229 = arith.mulf %228, %228 : vector<24x64xf32>
    %cst_88 = arith.constant dense<0.000000e+00> : vector<24xf32>
    %230 = vector.multi_reduction <add>, %229, %cst_88 [1] : vector<24x64xf32> to vector<24xf32>
    %231 = vector.shape_cast %230 : vector<24xf32> to vector<24x1xf32>
    %cst_89 = arith.constant 6.400000e+01 : f32
    %232 = vector.broadcast %cst_89 : f32 to vector<24x1xf32>
    %233 = arith.divf %231, %232 : vector<24x1xf32>
    %234 = vector.broadcast %226 : vector<24x1xf32> to vector<24x64xf32>
    %235 = arith.subf %202, %234 : vector<24x64xf32>
    %cst_90 = arith.constant 9.99999997E-7 : f32
    %236 = vector.broadcast %cst_90 : f32 to vector<24x1xf32>
    %237 = arith.addf %233, %236 : vector<24x1xf32>
    %238 = math.rsqrt %237 : vector<24x1xf32>
    %239 = vector.broadcast %238 : vector<24x1xf32> to vector<24x64xf32>
    %240 = arith.mulf %235, %239 : vector<24x64xf32>
    %241 = vector.broadcast %205 : vector<1x64xf32> to vector<24x64xf32>
    %242 = arith.mulf %240, %241 : vector<24x64xf32>
    %243 = vector.broadcast %206 : vector<1x64xf32> to vector<24x64xf32>
    %244 = arith.addf %242, %243 : vector<24x64xf32>
    %cst_91 = arith.constant dense<0.000000e+00> : vector<24x192xf32>
    %245 = tpu.matmul %244, %216, %cst_91 {dimension_numbers = #tpu.dot_dimension_numbers<[1], [0], [0], [1], [0, 0, 1, 1], [], []>} : vector<24x64xf32>, vector<64x192xf32>, vector<24x192xf32> -> vector<24x192xf32>
    %246 = vector.broadcast %218 : vector<1x192xf32> to vector<24x192xf32>
    %247 = arith.addf %245, %246 : vector<24x192xf32>
    %248 = vector.extract_strided_slice %247 {offsets = [0, 0], sizes = [24, 16], strides = [1, 1]} : vector<24x192xf32> to vector<24x16xf32>
    %249 = vector.extract_strided_slice %247 {offsets = [0, 16], sizes = [24, 16], strides = [1, 1]} : vector<24x192xf32> to vector<24x16xf32>
    %250 = vector.extract_strided_slice %247 {offsets = [0, 32], sizes = [24, 16], strides = [1, 1]} : vector<24x192xf32> to vector<24x16xf32>
    %251 = vector.extract_strided_slice %247 {offsets = [0, 48], sizes = [24, 16], strides = [1, 1]} : vector<24x192xf32> to vector<24x16xf32>
    %252 = tpu.concatenate %248, %249, %250, %251 in 0 : vector<24x16xf32>, vector<24x16xf32>, vector<24x16xf32>, vector<24x16xf32> -> vector<96x16xf32>
    %253 = vector.extract_strided_slice %247 {offsets = [0, 64], sizes = [24, 16], strides = [1, 1]} : vector<24x192xf32> to vector<24x16xf32>
    %254 = vector.extract_strided_slice %247 {offsets = [0, 80], sizes = [24, 16], strides = [1, 1]} : vector<24x192xf32> to vector<24x16xf32>
    %255 = vector.extract_strided_slice %247 {offsets = [0, 96], sizes = [24, 16], strides = [1, 1]} : vector<24x192xf32> to vector<24x16xf32>
    %256 = vector.extract_strided_slice %247 {offsets = [0, 112], sizes = [24, 16], strides = [1, 1]} : vector<24x192xf32> to vector<24x16xf32>
    %257 = tpu.concatenate %253, %254, %255, %256 in 0 : vector<24x16xf32>, vector<24x16xf32>, vector<24x16xf32>, vector<24x16xf32> -> vector<96x16xf32>
    %258 = vector.extract_strided_slice %247 {offsets = [0, 128], sizes = [24, 16], strides = [1, 1]} : vector<24x192xf32> to vector<24x16xf32>
    %259 = vector.extract_strided_slice %247 {offsets = [0, 144], sizes = [24, 16], strides = [1, 1]} : vector<24x192xf32> to vector<24x16xf32>
    %260 = vector.extract_strided_slice %247 {offsets = [0, 160], sizes = [24, 16], strides = [1, 1]} : vector<24x192xf32> to vector<24x16xf32>
    %261 = vector.extract_strided_slice %247 {offsets = [0, 176], sizes = [24, 16], strides = [1, 1]} : vector<24x192xf32> to vector<24x16xf32>
    %262 = tpu.concatenate %258, %259, %260, %261 in 0 : vector<24x16xf32>, vector<24x16xf32>, vector<24x16xf32>, vector<24x16xf32> -> vector<96x16xf32>
    %cst_92 = arith.constant dense<0.000000e+00> : vector<96x96xf32>
    %263 = tpu.matmul %252, %257, %cst_92 {dimension_numbers = #tpu.dot_dimension_numbers<[1], [1], [0], [0], [0, 0, 1, 0], [], []>} : vector<96x16xf32>, vector<96x16xf32>, vector<96x96xf32> -> vector<96x96xf32>
    %cst_93 = arith.constant 2.500000e-01 : f32
    %264 = vector.broadcast %cst_93 : f32 to vector<96x96xf32>
    %265 = arith.mulf %263, %264 : vector<96x96xf32>
    %266 = arith.addf %265, %43 : vector<96x96xf32>
    %cst_94 = arith.constant dense<0xFF800000> : vector<96xf32>
    %267 = vector.multi_reduction <maximumf>, %266, %cst_94 [1] : vector<96x96xf32> to vector<96xf32>
    %268 = vector.shape_cast %267 : vector<96xf32> to vector<96x1xf32>
    %269 = vector.broadcast %268 : vector<96x1xf32> to vector<96x96xf32>
    %270 = arith.subf %266, %269 : vector<96x96xf32>
    %271 = math.exp %270 : vector<96x96xf32>
    %cst_95 = arith.constant dense<0.000000e+00> : vector<96xf32>
    %272 = vector.multi_reduction <add>, %271, %cst_95 [1] : vector<96x96xf32> to vector<96xf32>
    %273 = vector.shape_cast %272 : vector<96xf32> to vector<96x1xf32>
    %274 = vector.broadcast %273 : vector<96x1xf32> to vector<96x96xf32>
    %275 = arith.divf %271, %274 : vector<96x96xf32>
    %cst_96 = arith.constant dense<0.000000e+00> : vector<96x16xf32>
    %276 = tpu.matmul %275, %262, %cst_96 {dimension_numbers = #tpu.dot_dimension_numbers<[1], [0], [0], [1], [0, 0, 1, 1], [], []>} : vector<96x96xf32>, vector<96x16xf32>, vector<96x16xf32> -> vector<96x16xf32>
    %277 = vector.extract_strided_slice %276 {offsets = [0, 0], sizes = [24, 16], strides = [1, 1]} : vector<96x16xf32> to vector<24x16xf32>
    %278 = vector.extract_strided_slice %276 {offsets = [24, 0], sizes = [24, 16], strides = [1, 1]} : vector<96x16xf32> to vector<24x16xf32>
    %279 = vector.extract_strided_slice %276 {offsets = [48, 0], sizes = [24, 16], strides = [1, 1]} : vector<96x16xf32> to vector<24x16xf32>
    %280 = vector.extract_strided_slice %276 {offsets = [72, 0], sizes = [24, 16], strides = [1, 1]} : vector<96x16xf32> to vector<24x16xf32>
    %281 = tpu.concatenate %277, %278, %279, %280 in 1 : vector<24x16xf32>, vector<24x16xf32>, vector<24x16xf32>, vector<24x16xf32> -> vector<24x64xf32>
    %cst_97 = arith.constant dense<0.000000e+00> : vector<24x64xf32>
    %282 = tpu.matmul %281, %212, %cst_97 {dimension_numbers = #tpu.dot_dimension_numbers<[1], [0], [0], [1], [0, 0, 1, 1], [], []>} : vector<24x64xf32>, vector<64x64xf32>, vector<24x64xf32> -> vector<24x64xf32>
    %283 = arith.addf %202, %282 : vector<24x64xf32>
    %284 = vector.broadcast %207 : vector<1x64xf32> to vector<24x64xf32>
    %285 = arith.addf %283, %284 : vector<24x64xf32>
    %cst_98 = arith.constant dense<0.000000e+00> : vector<24xf32>
    %286 = vector.multi_reduction <add>, %285, %cst_98 [1] : vector<24x64xf32> to vector<24xf32>
    %287 = vector.shape_cast %286 : vector<24xf32> to vector<24x1xf32>
    %cst_99 = arith.constant 6.400000e+01 : f32
    %288 = vector.broadcast %cst_99 : f32 to vector<24x1xf32>
    %289 = arith.divf %287, %288 : vector<24x1xf32>
    %290 = vector.broadcast %289 : vector<24x1xf32> to vector<24x64xf32>
    %291 = arith.subf %285, %290 : vector<24x64xf32>
    %292 = arith.mulf %291, %291 : vector<24x64xf32>
    %cst_100 = arith.constant dense<0.000000e+00> : vector<24xf32>
    %293 = vector.multi_reduction <add>, %292, %cst_100 [1] : vector<24x64xf32> to vector<24xf32>
    %294 = vector.shape_cast %293 : vector<24xf32> to vector<24x1xf32>
    %cst_101 = arith.constant 6.400000e+01 : f32
    %295 = vector.broadcast %cst_101 : f32 to vector<24x1xf32>
    %296 = arith.divf %294, %295 : vector<24x1xf32>
    %297 = vector.broadcast %289 : vector<24x1xf32> to vector<24x64xf32>
    %298 = arith.subf %285, %297 : vector<24x64xf32>
    %cst_102 = arith.constant 9.99999997E-7 : f32
    %299 = vector.broadcast %cst_102 : f32 to vector<24x1xf32>
    %300 = arith.addf %296, %299 : vector<24x1xf32>
    %301 = math.rsqrt %300 : vector<24x1xf32>
    %302 = vector.broadcast %301 : vector<24x1xf32> to vector<24x64xf32>
    %303 = arith.mulf %298, %302 : vector<24x64xf32>
    %304 = vector.broadcast %208 : vector<1x64xf32> to vector<24x64xf32>
    %305 = arith.mulf %303, %304 : vector<24x64xf32>
    %306 = vector.broadcast %209 : vector<1x64xf32> to vector<24x64xf32>
    %307 = arith.addf %305, %306 : vector<24x64xf32>
    %cst_103 = arith.constant dense<0.000000e+00> : vector<24x256xf32>
    %308 = tpu.matmul %307, %220, %cst_103 {dimension_numbers = #tpu.dot_dimension_numbers<[1], [0], [0], [1], [0, 0, 1, 1], [], []>} : vector<24x64xf32>, vector<64x256xf32>, vector<24x256xf32> -> vector<24x256xf32>
    %309 = vector.broadcast %222 : vector<1x256xf32> to vector<24x256xf32>
    %310 = arith.addf %308, %309 : vector<24x256xf32>
    %cst_104 = arith.constant 5.000000e-01 : f32
    %311 = vector.broadcast %cst_104 : f32 to vector<24x256xf32>
    %312 = arith.mulf %311, %310 : vector<24x256xf32>
    %cst_105 = arith.constant 0.707106769 : f32
    %313 = vector.broadcast %cst_105 : f32 to vector<24x256xf32>
    %314 = arith.mulf %310, %313 : vector<24x256xf32>
    %cst_106 = arith.constant -4.000000e+00 : f32
    %cst_107 = arith.constant 4.000000e+00 : f32
    %315 = vector.broadcast %cst_106 : f32 to vector<24x256xf32>
    %316 = arith.maximumf %315, %314 : vector<24x256xf32>
    %317 = vector.broadcast %cst_107 : f32 to vector<24x256xf32>
    %318 = arith.minimumf %317, %316 : vector<24x256xf32>
    %319 = arith.mulf %318, %318 : vector<24x256xf32>
    %cst_108 = arith.constant -2.72614237E-10 : f32
    %320 = vector.broadcast %cst_108 : f32 to vector<24x256xf32>
    %321 = arith.mulf %320, %319 : vector<24x256xf32>
    %cst_109 = arith.constant 2.77068146E-8 : f32
    %322 = vector.broadcast %cst_109 : f32 to vector<24x256xf32>
    %323 = arith.addf %321, %322 : vector<24x256xf32>
    %324 = arith.mulf %323, %319 : vector<24x256xf32>
    %cst_110 = arith.constant -2.10102394E-6 : f32
    %325 = vector.broadcast %cst_110 : f32 to vector<24x256xf32>
    %326 = arith.addf %324, %325 : vector<24x256xf32>
    %327 = arith.mulf %326, %319 : vector<24x256xf32>
    %cst_111 = arith.constant -5.69250624E-5 : f32
    %328 = vector.broadcast %cst_111 : f32 to vector<24x256xf32>
    %329 = arith.addf %327, %328 : vector<24x256xf32>
    %330 = arith.mulf %329, %319 : vector<24x256xf32>
    %cst_112 = arith.constant -7.34990637E-4 : f32
    %331 = vector.broadcast %cst_112 : f32 to vector<24x256xf32>
    %332 = arith.addf %330, %331 : vector<24x256xf32>
    %333 = arith.mulf %332, %319 : vector<24x256xf32>
    %cst_113 = arith.constant -2.954600e-03 : f32
    %334 = vector.broadcast %cst_113 : f32 to vector<24x256xf32>
    %335 = arith.addf %333, %334 : vector<24x256xf32>
    %336 = arith.mulf %335, %319 : vector<24x256xf32>
    %cst_114 = arith.constant -0.0160960332 : f32
    %337 = vector.broadcast %cst_114 : f32 to vector<24x256xf32>
    %338 = arith.addf %336, %337 : vector<24x256xf32>
    %cst_115 = arith.constant -1.45660715E-5 : f32
    %339 = vector.broadcast %cst_115 : f32 to vector<24x256xf32>
    %340 = arith.mulf %339, %319 : vector<24x256xf32>
    %cst_116 = arith.constant -2.13374049E-4 : f32
    %341 = vector.broadcast %cst_116 : f32 to vector<24x256xf32>
    %342 = arith.addf %340, %341 : vector<24x256xf32>
    %343 = arith.mulf %342, %319 : vector<24x256xf32>
    %cst_117 = arith.constant -0.00168282702 : f32
    %344 = vector.broadcast %cst_117 : f32 to vector<24x256xf32>
    %345 = arith.addf %343, %344 : vector<24x256xf32>
    %346 = arith.mulf %345, %319 : vector<24x256xf32>
    %cst_118 = arith.constant -0.00737332925 : f32
    %347 = vector.broadcast %cst_118 : f32 to vector<24x256xf32>
    %348 = arith.addf %346, %347 : vector<24x256xf32>
    %349 = arith.mulf %348, %319 : vector<24x256xf32>
    %cst_119 = arith.constant -0.0142647391 : f32
    %350 = vector.broadcast %cst_119 : f32 to vector<24x256xf32>
    %351 = arith.addf %349, %350 : vector<24x256xf32>
    %352 = arith.mulf %318, %338 : vector<24x256xf32>
    %353 = tpu.reciprocal %351 {approx = true} : vector<24x256xf32> -> vector<24x256xf32>
    %354 = arith.mulf %352, %353 : vector<24x256xf32>
    %cst_120 = arith.constant 1.000000e+00 : f32
    %355 = vector.broadcast %cst_120 : f32 to vector<24x256xf32>
    %356 = arith.addf %355, %354 : vector<24x256xf32>
    %357 = arith.mulf %312, %356 : vector<24x256xf32>
    %cst_121 = arith.constant dense<0.000000e+00> : vector<24x64xf32>
    %358 = tpu.matmul %357, %214, %cst_121 {dimension_numbers = #tpu.dot_dimension_numbers<[1], [0], [0], [1], [0, 0, 1, 1], [], []>} : vector<24x256xf32>, vector<256x64xf32>, vector<24x64xf32> -> vector<24x64xf32>
    %359 = arith.addf %285, %358 : vector<24x64xf32>
    %360 = vector.broadcast %210 : vector<1x64xf32> to vector<24x64xf32>
    %361 = arith.addf %359, %360 : vector<24x64xf32>
    %c56 = arith.constant 56 : index
    %c0_122 = arith.constant 0 : index
    %362 = vector.load %arg2[%c56, %c0_122] : memref<58x64xf32, #tpu.memory_space<vmem>>, vector<1x64xf32>
    %c57 = arith.constant 57 : index
    %c0_123 = arith.constant 0 : index
    %363 = vector.load %arg2[%c57, %c0_123] : memref<58x64xf32, #tpu.memory_space<vmem>>, vector<1x64xf32>
    %c0_124 = arith.constant 0 : index
    %c0_125 = arith.constant 0 : index
    %364 = vector.load %arg6[%c0_124, %c0_125] : memref<65x128xf32, #tpu.memory_space<vmem>>, vector<64x128xf32>
    %c64_126 = arith.constant 64 : index
    %c0_127 = arith.constant 0 : index
    %365 = vector.load %arg6[%c64_126, %c0_127] : memref<65x128xf32, #tpu.memory_space<vmem>>, vector<1x128xf32>
    %366 = vector.extract_strided_slice %361 {offsets = [0, 0], sizes = [8, 64], strides = [1, 1]} : vector<24x64xf32> to vector<8x64xf32>
    %cst_128 = arith.constant dense<0.000000e+00> : vector<8xf32>
    %367 = vector.multi_reduction <add>, %366, %cst_128 [1] : vector<8x64xf32> to vector<8xf32>
    %368 = vector.shape_cast %367 : vector<8xf32> to vector<8x1xf32>
    %cst_129 = arith.constant 6.400000e+01 : f32
    %369 = vector.broadcast %cst_129 : f32 to vector<8x1xf32>
    %370 = arith.divf %368, %369 : vector<8x1xf32>
    %371 = vector.broadcast %370 : vector<8x1xf32> to vector<8x64xf32>
    %372 = arith.subf %366, %371 : vector<8x64xf32>
    %373 = arith.mulf %372, %372 : vector<8x64xf32>
    %cst_130 = arith.constant dense<0.000000e+00> : vector<8xf32>
    %374 = vector.multi_reduction <add>, %373, %cst_130 [1] : vector<8x64xf32> to vector<8xf32>
    %375 = vector.shape_cast %374 : vector<8xf32> to vector<8x1xf32>
    %cst_131 = arith.constant 6.400000e+01 : f32
    %376 = vector.broadcast %cst_131 : f32 to vector<8x1xf32>
    %377 = arith.divf %375, %376 : vector<8x1xf32>
    %378 = vector.broadcast %370 : vector<8x1xf32> to vector<8x64xf32>
    %379 = arith.subf %366, %378 : vector<8x64xf32>
    %cst_132 = arith.constant 9.99999997E-7 : f32
    %380 = vector.broadcast %cst_132 : f32 to vector<8x1xf32>
    %381 = arith.addf %377, %380 : vector<8x1xf32>
    %382 = math.rsqrt %381 : vector<8x1xf32>
    %383 = vector.broadcast %382 : vector<8x1xf32> to vector<8x64xf32>
    %384 = arith.mulf %379, %383 : vector<8x64xf32>
    %385 = vector.broadcast %362 : vector<1x64xf32> to vector<8x64xf32>
    %386 = arith.mulf %384, %385 : vector<8x64xf32>
    %387 = vector.broadcast %363 : vector<1x64xf32> to vector<8x64xf32>
    %388 = arith.addf %386, %387 : vector<8x64xf32>
    %cst_133 = arith.constant dense<0.000000e+00> : vector<8x128xf32>
    %389 = tpu.matmul %388, %364, %cst_133 {dimension_numbers = #tpu.dot_dimension_numbers<[1], [0], [0], [1], [0, 0, 1, 1], [], []>} : vector<8x64xf32>, vector<64x128xf32>, vector<8x128xf32> -> vector<8x128xf32>
    %390 = vector.broadcast %365 : vector<1x128xf32> to vector<8x128xf32>
    %391 = arith.addf %389, %390 : vector<8x128xf32>
    %c0_134 = arith.constant 0 : index
    %c0_135 = arith.constant 0 : index
    %c0_136 = arith.constant 0 : index
    %392 = vector.load %arg7[%c0_134, %c0_135, %c0_136] : memref<1x8x128xf32, #tpu.memory_space<vmem>>, vector<1x8x128xf32>
    %393 = vector.shape_cast %392 : vector<1x8x128xf32> to vector<8x128xf32>
    %394 = vector.shape_cast %391 : vector<8x128xf32> to vector<1x8x128xf32>
    tpu.vector_store %arg7[%c0_134, %c0_135, %c0_136], %394 {strides = array<i32>} : memref<1x8x128xf32, #tpu.memory_space<vmem>>, vector<1x8x128xf32>,
    return
  }
  func.func @transform_0(%arg0: i32) -> (i32, i32, i32) {
    %c0_i32 = arith.constant 0 : i32
    %c0_i32_0 = arith.constant 0 : i32
    %c0_i32_1 = arith.constant 0 : i32
    return %arg0, %c0_i32, %c0_i32_0 : i32, i32, i32
  }
  func.func @transform_1(%arg0: i32) -> (i32, i32) {
    %c0_i32 = arith.constant 0 : i32
    %c0_i32_0 = arith.constant 0 : i32
    %c0_i32_1 = arith.constant 0 : i32
    return %c0_i32, %c0_i32_0 : i32, i32
  }
  func.func @transform_2(%arg0: i32) -> (i32, i32, i32) {
    %c0_i32 = arith.constant 0 : i32
    %c0_i32_0 = arith.constant 0 : i32
    %c0_i32_1 = arith.constant 0 : i32
    %c0_i32_2 = arith.constant 0 : i32
    return %c0_i32, %c0_i32_0, %c0_i32_1 : i32, i32, i32
  }
  func.func @transform_3(%arg0: i32) -> (i32, i32, i32) {
    %c0_i32 = arith.constant 0 : i32
    %c0_i32_0 = arith.constant 0 : i32
    %c0_i32_1 = arith.constant 0 : i32
    %c0_i32_2 = arith.constant 0 : i32
    return %c0_i32, %c0_i32_0, %c0_i32_1 : i32, i32, i32
  }
  func.func @transform_4(%arg0: i32) -> (i32, i32, i32) {
    %c0_i32 = arith.constant 0 : i32
    %c0_i32_0 = arith.constant 0 : i32
    %c0_i32_1 = arith.constant 0 : i32
    %c0_i32_2 = arith.constant 0 : i32
    return %c0_i32, %c0_i32_0, %c0_i32_1 : i32, i32, i32
  }
  func.func @transform_5(%arg0: i32) -> (i32, i32) {
    %c0_i32 = arith.constant 0 : i32
    %c0_i32_0 = arith.constant 0 : i32
    %c0_i32_1 = arith.constant 0 : i32
    return %c0_i32, %c0_i32_0 : i32, i32
  }
  func.func @transform_6(%arg0: i32) -> (i32, i32, i32) {
    %c0_i32 = arith.constant 0 : i32
    %c0_i32_0 = arith.constant 0 : i32
    %c0_i32_1 = arith.constant 0 : i32
    return %arg0, %c0_i32, %c0_i32_0 : i32, i32, i32
  }
}

</mosaic_0001>

<llo_original>
// kernel: forward.1
$region0: #{forward.1}
  #allocation0 [shape = 'u32[]', space=smem, size = 0x4, offset = 0x4, fixed_abs, tag = 'smem constant byte address 0x4 - core index']
  #allocation1 [shape = 'u32[144,128]{1,0:T(1,128)}', space=vmem, size = 0x12000, scoped, tag = 'internal scratch']
  %s0 = inlined_call_operand.vmem [shape: f32[2,24,32], index: 0, kind: input, shape index: {}]
  %s1 = inlined_call_operand.vmem [shape: f32[58,64], index: 1, kind: input, shape index: {}]
  %s2 = inlined_call_operand.vmem [shape: f32[2,65,192], index: 2, kind: input, shape index: {}]
  %s3 = inlined_call_operand.vmem [shape: f32[2,65,256], index: 3, kind: input, shape index: {}]
  %s4 = inlined_call_operand.vmem [shape: f32[2,328,64], index: 4, kind: input, shape index: {}]
  %s5 = inlined_call_operand.vmem [shape: f32[65,128], index: 5, kind: input, shape index: {}]
  %s6 = inlined_call_operand.vmem [shape: f32[2,8,128], index: 6, kind: output, shape index: {}]
  %s7 = sld [smem:[#allocation0]]
  $region57: #{forward.1} parent=0
    _
  %s9 = ssub.s32 1, %s7
  %s10 = scalar_select 0, %s9, %s7
  loop: start=0, step=1, limit=4
  $region2: #{forward.1} parent=0 // loop_pre_header
    _
  $region3: #{forward.1} parent=0 // loop_header
    %s12 = sphi 0, %s16
    %p13 = scmp.ge.s32.totalorder %s12, 4
    %s22 = sphi 0, %s24
    %s25 = sphi 0, %s22
    %s26 = sphi 0, %s25
    %s42 = sphi 0, %s26
    %s46 = sphi 0, %s46
    %s48 = sphi 0, %s46
    %s49 = sphi 0, %s48
    %s63 = sphi 0, %s49
    %s67 = sphi 0, %s67
    %s69 = sphi 0, %s67
    %s70 = sphi 0, %s69
    %s84 = sphi 0, %s70
    %s88 = sphi 0, %s88
    %s90 = sphi 0, %s88
    %s91 = sphi 0, %s90
    %s105 = sphi 0, %s91
    %s109 = sphi 0, %s109
    %s111 = sphi 0, %s109
    %s112 = sphi 0, %s111
    %s126 = sphi 0, %s112
    %s130 = sphi 0, %s130
    %s132 = sphi 0, %s130
    %s133 = sphi 0, %s132
    %s147 = sphi 0, %s133
    %s153 = sphi 0, %s155
    %s156 = sphi 0, %s153
    %s157 = sphi 0, %s156
    %s173 = sphi 0, %s157
  $region4: #{forward.1} parent=0 // loop_header_branch
    %15 = sbr.rel (%p13) target = $region8
  $region5: #{forward.1} parent=0 // loop_body
    %s17 = ssub.s32 %s12, 1
    %s18 = ssub.s32 %s12, 2
    %s19 = sadd.s32 %s12, 1
    %s20 = ssub.s32 %s12, %s19
    %p21 = scmp.eq.s32.totalorder %s20, 0
    %s23 = sadd.s32 %s22, 1
    %s24 = scalar_select %p21, %s22, %s23
    %p27 = pneg %p21
    %p28 = scmp.eq.s32.totalorder %s12, 1
    %p29 = por %p27, %p28
    %p30 = scmp.ne.s32.totalorder %s22, %s25
    %p31 = scmp.eq.s32.totalorder %s12, 0
    %p32 = por %p30, %p31
    %p33 = scmp.ne.s32.totalorder %s22, %s25
    %p34 = scmp.eq.s32.totalorder %s17, 1
    %p35 = por %p33, %p34
    %p36 = scmp.ne.s32.totalorder %s25, %s26
    %p37 = scmp.eq.s32.totalorder %s17, 0
    %p38 = por %p36, %p37
    %p39 = scmp.ne.s32.totalorder %s25, %s26
    %p40 = scmp.eq.s32.totalorder %s18, 1
    %p41 = por %p39, %p40
    %p43 = scmp.ne.s32.totalorder %s26, %s42
    %p44 = scmp.eq.s32.totalorder %s18, 0
    %p45 = por %p43, %p44
    %s47 = sadd.s32 %s46, 1
    %p50 = scmp.eq.s32.totalorder %s12, 1
    %p51 = scmp.ne.s32.totalorder %s46, %s48
    %p52 = scmp.eq.s32.totalorder %s12, 0
    %p53 = por %p51, %p52
    %p54 = scmp.ne.s32.totalorder %s46, %s48
    %p55 = scmp.eq.s32.totalorder %s17, 1
    %p56 = por %p54, %p55
    %p57 = scmp.ne.s32.totalorder %s48, %s49
    %p58 = scmp.eq.s32.totalorder %s17, 0
    %p59 = por %p57, %p58
    %p60 = scmp.ne.s32.totalorder %s48, %s49
    %p61 = scmp.eq.s32.totalorder %s18, 1
    %p62 = por %p60, %p61
    %p64 = scmp.ne.s32.totalorder %s49, %s63
    %p65 = scmp.eq.s32.totalorder %s18, 0
    %p66 = por %p64, %p65
    %s68 = sadd.s32 %s67, 1
    %p71 = scmp.eq.s32.totalorder %s12, 1
    %p72 = scmp.ne.s32.totalorder %s67, %s69
    %p73 = scmp.eq.s32.totalorder %s12, 0
    %p74 = por %p72, %p73
    %p75 = scmp.ne.s32.totalorder %s67, %s69
    %p76 = scmp.eq.s32.totalorder %s17, 1
    %p77 = por %p75, %p76
    %p78 = scmp.ne.s32.totalorder %s69, %s70
    %p79 = scmp.eq.s32.totalorder %s17, 0
    %p80 = por %p78, %p79
    %p81 = scmp.ne.s32.totalorder %s69, %s70
    %p82 = scmp.eq.s32.totalorder %s18, 1
    %p83 = por %p81, %p82
    %p85 = scmp.ne.s32.totalorder %s70, %s84
    %p86 = scmp.eq.s32.totalorder %s18, 0
    %p87 = por %p85, %p86
    %s89 = sadd.s32 %s88, 1
    %p92 = scmp.eq.s32.totalorder %s12, 1
    %p93 = scmp.ne.s32.totalorder %s88, %s90
    %p94 = scmp.eq.s32.totalorder %s12, 0
    %p95 = por %p93, %p94
    %p96 = scmp.ne.s32.totalorder %s88, %s90
    %p97 = scmp.eq.s32.totalorder %s17, 1
    %p98 = por %p96, %p97
    %p99 = scmp.ne.s32.totalorder %s90, %s91
    %p100 = scmp.eq.s32.totalorder %s17, 0
    %p101 = por %p99, %p100
    %p102 = scmp.ne.s32.totalorder %s90, %s91
    %p103 = scmp.eq.s32.totalorder %s18, 1
    %p104 = por %p102, %p103
    %p106 = scmp.ne.s32.totalorder %s91, %s105
    %p107 = scmp.eq.s32.totalorder %s18, 0
    %p108 = por %p106, %p107
    %s110 = sadd.s32 %s109, 1
    %p113 = scmp.eq.s32.totalorder %s12, 1
    %p114 = scmp.ne.s32.totalorder %s109, %s111
    %p115 = scmp.eq.s32.totalorder %s12, 0
    %p116 = por %p114, %p115
    %p117 = scmp.ne.s32.totalorder %s109, %s111
    %p118 = scmp.eq.s32.totalorder %s17, 1
    %p119 = por %p117, %p118
    %p120 = scmp.ne.s32.totalorder %s111, %s112
    %p121 = scmp.eq.s32.totalorder %s17, 0
    %p122 = por %p120, %p121
    %p123 = scmp.ne.s32.totalorder %s111, %s112
    %p124 = scmp.eq.s32.totalorder %s18, 1
    %p125 = por %p123, %p124
    %p127 = scmp.ne.s32.totalorder %s112, %s126
    %p128 = scmp.eq.s32.totalorder %s18, 0
    %p129 = por %p127, %p128
    %s131 = sadd.s32 %s130, 1
    %p134 = scmp.eq.s32.totalorder %s12, 1
    %p135 = scmp.ne.s32.totalorder %s130, %s132
    %p136 = scmp.eq.s32.totalorder %s12, 0
    %p137 = por %p135, %p136
    %p138 = scmp.ne.s32.totalorder %s130, %s132
    %p139 = scmp.eq.s32.totalorder %s17, 1
    %p140 = por %p138, %p139
    %p141 = scmp.ne.s32.totalorder %s132, %s133
    %p142 = scmp.eq.s32.totalorder %s17, 0
    %p143 = por %p141, %p142
    %p144 = scmp.ne.s32.totalorder %s132, %s133
    %p145 = scmp.eq.s32.totalorder %s18, 1
    %p146 = por %p144, %p145
    %p148 = scmp.ne.s32.totalorder %s133, %s147
    %p149 = scmp.eq.s32.totalorder %s18, 0
    %p150 = por %p148, %p149
    %s151 = ssub.s32 %s12, %s19
    %p152 = scmp.eq.s32.totalorder %s151, 0
    %s154 = sadd.s32 %s153, 1
    %s155 = scalar_select %p152, %s153, %s154
    %p158 = pneg %p152
    %p159 = scmp.eq.s32.totalorder %s12, 1
    %p160 = por %p158, %p159
    %p161 = scmp.ne.s32.totalorder %s153, %s156
    %p162 = scmp.eq.s32.totalorder %s12, 0
    %p163 = por %p161, %p162
    %p164 = scmp.ne.s32.totalorder %s153, %s156
    %p165 = scmp.eq.s32.totalorder %s17, 1
    %p166 = por %p164, %p165
    %p167 = scmp.ne.s32.totalorder %s156, %s157
    %p168 = scmp.eq.s32.totalorder %s17, 0
    %p169 = por %p167, %p168
    %p170 = scmp.ne.s32.totalorder %s156, %s157
    %p171 = scmp.eq.s32.totalorder %s18, 1
    %p172 = por %p170, %p171
    %p174 = scmp.ne.s32.totalorder %s157, %s173
    %p175 = scmp.eq.s32.totalorder %s18, 0
    %p176 = por %p174, %p175
    %p177 = scmp.le.s32.totalorder 1, %s12
    %p178 = scmp.lt.s32.totalorder %s12, 3
    %p179 = pnand %p177, %p178
    %p180 = pneg %p179
    // Predicated region
    $region9: #{forward.1} parent=5 // pred_check
      _
    $region10: #{forward.1} parent=5 // pred_check_branch
      %182 = sbr.rel (%p179) target = $region12
    $region11: #{forward.1} parent=5 // pred_region
      %s183 = ssub.s32 %s12, 1
      // Predicated region
      $region13: #{forward.1} parent=11 // pred_check
        %p184 = pneg %p59
      $region14: #{forward.1} parent=11 // pred_check_branch
        %186 = sbr.rel (%p184) target = $region16
      $region15: #{forward.1} parent=11 // pred_region
        _
      $region16: #{forward.1} parent=11 // pred_fallthru
        _
      // Predicated region
      $region17: #{forward.1} parent=11 // pred_check
        %p187 = pneg %p80
      $region18: #{forward.1} parent=11 // pred_check_branch
        %189 = sbr.rel (%p187) target = $region20
      $region19: #{forward.1} parent=11 // pred_region
        _
      $region20: #{forward.1} parent=11 // pred_fallthru
        _
      // Predicated region
      $region21: #{forward.1} parent=11 // pred_check
        %p190 = pneg %p101
      $region22: #{forward.1} parent=11 // pred_check_branch
        %192 = sbr.rel (%p190) target = $region24
      $region23: #{forward.1} parent=11 // pred_region
        _
      $region24: #{forward.1} parent=11 // pred_fallthru
        _
      // Predicated region
      $region25: #{forward.1} parent=11 // pred_check
        %p193 = pneg %p122
      $region26: #{forward.1} parent=11 // pred_check_branch
        %195 = sbr.rel (%p193) target = $region28
      $region27: #{forward.1} parent=11 // pred_region
        _
      $region28: #{forward.1} parent=11 // pred_fallthru
        _
      // Predicated region
      $region29: #{forward.1} parent=11 // pred_check
        %p196 = pneg %p143
      $region30: #{forward.1} parent=11 // pred_check_branch
        %198 = sbr.rel (%p196) target = $region32
      $region31: #{forward.1} parent=11 // pred_region
        _
      $region32: #{forward.1} parent=11 // pred_fallthru
        _
    $region12: #{forward.1} parent=5 // pred_fallthru
      _
    %p199 = scmp.lt.s32.totalorder %s12, 2
    // Predicated region
    $region33: #{forward.1} parent=5 // pred_check
      %p200 = pneg %p199
    $region34: #{forward.1} parent=5 // pred_check_branch
      %202 = sbr.rel (%p200) target = $region36
    $region35: #{forward.1} parent=5 // pred_region
      // Predicated region
      $region37: #{forward.1} parent=35 // pred_check
        %p203 = pneg %p32
      $region38: #{forward.1} parent=35 // pred_check_branch
        %205 = sbr.rel (%p203) target = $region40
      $region39: #{forward.1} parent=35 // pred_region
        %p206 = scmp.lt.s32.totalorder %s12, 1
        %s207 = scalar_select %p206, %s12, 1
        %s208 = smul.addr %s207, 3
        %s209 = smul.addr %s208, 8
        %s210 = scalar_lea.vmem %s0, %s209
      $region40: #{forward.1} parent=35 // pred_fallthru
        _
    $region36: #{forward.1} parent=5 // pred_fallthru
      _
    %p211 = scmp.le.s32.totalorder 1, %s12
    %p212 = scmp.lt.s32.totalorder %s12, 3
    %p213 = pnand %p211, %p212
    %p214 = pneg %p213
    // Predicated region
    $region41: #{forward.1} parent=5 // pred_check
      _
    $region42: #{forward.1} parent=5 // pred_check_branch
      %216 = sbr.rel (%p213) target = $region44
    $region43: #{forward.1} parent=5 // pred_region
      %s217 = ssub.s32 %s12, 1
      %p218 = scmp.lt.s32.totalorder %s17, 1
      %s219 = scalar_select %p218, %s17, 1
      %s220 = smul.addr %s219, 3
      %s221 = smul.addr %s220, 8
      %s222 = scalar_lea.vmem %s0, %s221
      %p223 = pneg %p38
      %p224 = pneg %p35
      %p225 = pneg %p59
      %p226 = pneg %p56
      %p227 = pneg %p80
      %p228 = pneg %p77
      %p229 = pneg %p101
      %p230 = pneg %p98
      %p231 = pneg %p122
      %p232 = pneg %p119
      %p233 = pneg %p143
      %p234 = pneg %p140
      %p235 = pneg %p169
      %p236 = pneg %p166
      %p237 = scmp.lt.s32.totalorder %s17, 1
      %s238 = scalar_select %p237, %s17, 1
      %s239 = smul.addr %s238, 8
      %s240 = scalar_lea.vmem %s6, %s239
      %p241 = scmp.lt.s32.totalorder %s17, 1
      %s242 = scalar_select %p241, %s17, 1
      %s243 = smul.addr %s242, 3
      %s244 = smul.addr %s243, 8
      %s245 = scalar_lea.vmem %s0, %s244
      %p246 = scmp.lt.s32.totalorder %s17, 1
      %s247 = scalar_select %p246, %s17, 1
      %s248 = smul.addr %s247, 8
      %s249 = scalar_lea.vmem %s6, %s248
      %v250 = vld [vmem:[%s1] sm:$0xff]
      %v251 = vld [vmem:[%s1 + $0x8] sm:$0xff]
      %v252 = vld [vmem:[%s1 + $0x10] sm:$0xff]
      %v253 = vld [vmem:[%s1 + $0x18] sm:$0xff]
      %v254 = vld [vmem:[%s1 + $0x20] sm:$0xff]
      %v255 = vld [vmem:[%s1 + $0x28] sm:$0xff]
      %v256 = vld [vmem:[%s1 + $0x30] sm:$0xff]
      %v257 = vld [vmem:[%s245] sm:$0xff]
      %v258 = vld [vmem:[%s245 + $0x8] sm:$0xff]
      %v259 = vld [vmem:[%s245 + $0x10] sm:$0xff]
      %vm260 = vcmask 261120
      %v262 = vsel %vm260, %v257, 0
      %v265 = vsel %vm260, %v258, 0
      %v268 = vsel %vm260, %v259, 0
      %270 = vmatprep.subr.mxu0 0.0
      %271 = vmatpush1.msra.mxu0 %v250
      %272 = vmatprep.subr.mxu0 0.0
      %273 = vmatpush1.msra.mxu0 %v251
      %274 = vmatprep.subr.mxu0 0.0
      %275 = vmatpush1.msra.mxu0 %v252
      %276 = vmatprep.subr.mxu0 0.0
      %277 = vmatpush1.msra.mxu0 %v253
      %278 = vmatprep.subr.mxu0 0.0
      %279 = vmatpush1.msra.mxu0 0.0
      %280 = vmatprep.subr.mxu0 0.0
      %281 = vmatpush1.msra.mxu0 0.0
      %282 = vmatprep.subr.mxu0 0.0
      %283 = vmatpush1.msra.mxu0 0.0
      %284 = vmatprep.subr.mxu0 0.0
      %285 = vmatpush1.msra.mxu0 0.0
      %286 = vmatprep.subr.mxu0 0.0
      %287 = vmatpush1.msra.mxu0 0.0
      %288 = vmatprep.subr.mxu0 0.0
      %289 = vmatpush1.msra.mxu0 0.0
      %290 = vmatprep.subr.mxu0 0.0
      %291 = vmatpush1.msra.mxu0 0.0
      %292 = vmatprep.subr.mxu0 0.0
      %293 = vmatpush1.msra.mxu0 0.0
      %294 = vmatprep.subr.mxu0 0.0
      %295 = vmatpush1.msra.mxu0 0.0
      %296 = vmatprep.subr.mxu0 0.0
      %297 = vmatpush1.msra.mxu0 0.0
      %298 = vmatprep.subr.mxu0 0.0
      %299 = vmatpush1.msra.mxu0 0.0
      %300 = vmatprep.subr.mxu0 0.0
      %301 = vmatpush1.msra.mxu0 0.0
      %302 = vmatprep.subr.mxu0 0.0
      %303 = vmatpush1.msra.mxu0 0.0
      %304 = vmatprep.subr.mxu0 0.0
      %305 = vmatpush1.msra.mxu0 0.0
      %306 = vmatprep.subr.mxu0 0.0
      %307 = vmatpush1.msra.mxu0 0.0
      %308 = vmatprep.subr.mxu0 0.0
      %309 = vmatpush1.msra.mxu0 0.0
      %310 = vmatprep.subr.mxu0 0.0
      %311 = vmatpush1.msra.mxu0 0.0
      %312 = vmatprep.subr.mxu0 0.0
      %313 = vmatpush1.msra.mxu0 0.0
      %314 = vmatprep.subr.mxu0 0.0
      %315 = vmatpush1.msra.mxu0 0.0
      %316 = vmatprep.subr.mxu0 0.0
      %317 = vmatpush1.msra.mxu0 0.0
      %318 = vmatprep.subr.mxu0 0.0
      %319 = vmatpush1.msra.mxu0 0.0
      %320 = vmatprep.subr.mxu0 0.0
      %321 = vmatpush1.msra.mxu0 0.0
      %322 = vmatprep.subr.mxu0 0.0
      %323 = vmatpush1.msra.mxu0 0.0
      %324 = vmatprep.subr.mxu0 0.0
      %325 = vmatpush1.msra.mxu0 0.0
      %326 = vmatprep.subr.mxu0 0.0
      %327 = vmatpush1.msra.mxu0 0.0
      %328 = vmatprep.subr.mxu0 0.0
      %329 = vmatpush1.msra.mxu0 0.0
      %330 = vmatprep.subr.mxu0 0.0
      %331 = vmatpush1.msra.mxu0 0.0
      %332 = vmatprep.subr.mxu0 0.0
      %333 = vmatpush1.msra.mxu0 0.0
      %334 = vmatprep.mubr.f32.mxu0 0.0
      %335 = vmatmul.mubr.f32.gmra.mrb[0].mxu0 %v262
      %v336 = vpop.f32.mrb[0].mxu0
      %v337 = vadd.f32 %v254, %v336
      %v338 = vpop.f32.mrb[0].mxu0
      %339 = vmatprep.mubr.f32.mxu0 0.0
      %340 = vmatmul.mubr.f32.gmra.mrb[0].mxu0 %v265
      %v341 = vpop.f32.mrb[0].mxu0
      %v342 = vadd.f32 %v255, %v341
      %v343 = vpop.f32.mrb[0].mxu0
      %344 = vmatprep.mubr.f32.mxu0 0.0
      %345 = vmatmul.mubr.f32.gmra.mrb[0].mxu0 %v268
      %v346 = vpop.f32.mrb[0].mxu0
      %v347 = vadd.f32 %v256, %v346
      %v348 = vpop.f32.mrb[0].mxu0
      %349 = vdwg.mxu0
      %v350 = vlaneseq
      %v351 = vshrl.u32 %v350, 7
      %v352 = vadd.s32 %v351, 8
      %v353 = vadd.s32 %v351, 16
      %v354 = vadd.s32 %v351, 24
      %v355 = vadd.s32 %v351, 32
      %v356 = vadd.s32 %v351, 40
      %v357 = vadd.s32 %v351, 48
      %v358 = vadd.s32 %v351, 56
      %v359 = vadd.s32 %v351, 64
      %v360 = vadd.s32 %v351, 72
      %v361 = vadd.s32 %v351, 80
      %v362 = vadd.s32 %v351, 88
      %v363 = vlaneseq
      %v364 = vand.u32 %v363, 127
      %vm365 = vcmp.ge.s32.totalorder %v351, 24
      %vm366 = vcmp.ge.s32.totalorder %v352, 24
      %vm367 = vcmp.ge.s32.totalorder %v353, 24
      %vm368 = vcmp.ge.s32.totalorder %v354, 24
      %vm369 = vcmp.ge.s32.totalorder %v355, 24
      %vm370 = vcmp.ge.s32.totalorder %v356, 24
      %vm371 = vcmp.ge.s32.totalorder %v357, 24
      %vm372 = vcmp.ge.s32.totalorder %v358, 24
      %vm373 = vcmp.ge.s32.totalorder %v359, 24
      %vm374 = vcmp.ge.s32.totalorder %v360, 24
      %vm375 = vcmp.ge.s32.totalorder %v361, 24
      %vm376 = vcmp.ge.s32.totalorder %v362, 24
      %v377 = vsel %vm365, 1, 0
      %v378 = vsel %vm366, 1, 0
      %v379 = vsel %vm367, 1, 0
      %v380 = vsel %vm368, 1, 0
      %v381 = vsel %vm369, 1, 0
      %v382 = vsel %vm370, 1, 0
      %v383 = vsel %vm371, 1, 0
      %v384 = vsel %vm372, 1, 0
      %v385 = vsel %vm373, 1, 0
      %v386 = vsel %vm374, 1, 0
      %v387 = vsel %vm375, 1, 0
      %v388 = vsel %vm376, 1, 0
      %vm389 = vcmp.ge.s32.totalorder %v364, 24
      %v390 = vsel %vm389, 1, 0
      %vm391 = vcmp.ge.s32.totalorder %v351, 48
      %vm392 = vcmp.ge.s32.totalorder %v352, 48
      %vm393 = vcmp.ge.s32.totalorder %v353, 48
      %vm394 = vcmp.ge.s32.totalorder %v354, 48
      %vm395 = vcmp.ge.s32.totalorder %v355, 48
      %vm396 = vcmp.ge.s32.totalorder %v356, 48
      %vm397 = vcmp.ge.s32.totalorder %v357, 48
      %vm398 = vcmp.ge.s32.totalorder %v358, 48
      %vm399 = vcmp.ge.s32.totalorder %v359, 48
      %vm400 = vcmp.ge.s32.totalorder %v360, 48
      %vm401 = vcmp.ge.s32.totalorder %v361, 48
      %vm402 = vcmp.ge.s32.totalorder %v362, 48
      %v403 = vsel %vm391, 1, 0
      %v404 = vsel %vm392, 1, 0
      %v405 = vsel %vm393, 1, 0
      %v406 = vsel %vm394, 1, 0
      %v407 = vsel %vm395, 1, 0
      %v408 = vsel %vm396, 1, 0
      %v409 = vsel %vm397, 1, 0
      %v410 = vsel %vm398, 1, 0
      %v411 = vsel %vm399, 1, 0
      %v412 = vsel %vm400, 1, 0
      %v413 = vsel %vm401, 1, 0
      %v414 = vsel %vm402, 1, 0
      %v415 = vadd.s32 %v377, %v403
      %v416 = vadd.s32 %v378, %v404
      %v417 = vadd.s32 %v379, %v405
      %v418 = vadd.s32 %v380, %v406
      %v419 = vadd.s32 %v381, %v407
      %v420 = vadd.s32 %v382, %v408
      %v421 = vadd.s32 %v383, %v409
      %v422 = vadd.s32 %v384, %v410
      %v423 = vadd.s32 %v385, %v411
      %v424 = vadd.s32 %v386, %v412
      %v425 = vadd.s32 %v387, %v413
      %v426 = vadd.s32 %v388, %v414
      %vm427 = vcmp.ge.s32.totalorder %v364, 48
      %v428 = vsel %vm427, 1, 0
      %v429 = vadd.s32 %v390, %v428
      %vm430 = vcmp.ge.s32.totalorder %v351, 72
      %vm431 = vcmp.ge.s32.totalorder %v352, 72
      %vm432 = vcmp.ge.s32.totalorder %v353, 72
      %vm433 = vcmp.ge.s32.totalorder %v354, 72
      %vm434 = vcmp.ge.s32.totalorder %v355, 72
      %vm435 = vcmp.ge.s32.totalorder %v356, 72
      %vm436 = vcmp.ge.s32.totalorder %v357, 72
      %vm437 = vcmp.ge.s32.totalorder %v358, 72
      %vm438 = vcmp.ge.s32.totalorder %v359, 72
      %vm439 = vcmp.ge.s32.totalorder %v360, 72
      %vm440 = vcmp.ge.s32.totalorder %v361, 72
      %vm441 = vcmp.ge.s32.totalorder %v362, 72
      %v442 = vsel %vm430, 1, 0
      %v443 = vsel %vm431, 1, 0
      %v444 = vsel %vm432, 1, 0
      %v445 = vsel %vm433, 1, 0
      %v446 = vsel %vm434, 1, 0
      %v447 = vsel %vm435, 1, 0
      %v448 = vsel %vm436, 1, 0
      %v449 = vsel %vm437, 1, 0
      %v450 = vsel %vm438, 1, 0
      %v451 = vsel %vm439, 1, 0
      %v452 = vsel %vm440, 1, 0
      %v453 = vsel %vm441, 1, 0
      %v454 = vadd.s32 %v415, %v442
      %v455 = vadd.s32 %v416, %v443
      %v456 = vadd.s32 %v417, %v444
      %v457 = vadd.s32 %v418, %v445
      %v458 = vadd.s32 %v419, %v446
      %v459 = vadd.s32 %v420, %v447
      %v460 = vadd.s32 %v421, %v448
      %v461 = vadd.s32 %v422, %v449
      %v462 = vadd.s32 %v423, %v450
      %v463 = vadd.s32 %v424, %v451
      %v464 = vadd.s32 %v425, %v452
      %v465 = vadd.s32 %v426, %v453
      %vm466 = vcmp.ge.s32.totalorder %v364, 72
      %v467 = vsel %vm466, 1, 0
      %v468 = vadd.s32 %v429, %v467
      %vm469 = vcmp.eq.s32.totalorder %v454, %v468
      %vm470 = vcmp.eq.s32.totalorder %v455, %v468
      %vm471 = vcmp.eq.s32.totalorder %v456, %v468
      %vm472 = vcmp.eq.s32.totalorder %v457, %v468
      %vm473 = vcmp.eq.s32.totalorder %v458, %v468
      %vm474 = vcmp.eq.s32.totalorder %v459, %v468
      %vm475 = vcmp.eq.s32.totalorder %v460, %v468
      %vm476 = vcmp.eq.s32.totalorder %v461, %v468
      %vm477 = vcmp.eq.s32.totalorder %v462, %v468
      %vm478 = vcmp.eq.s32.totalorder %v463, %v468
      %vm479 = vcmp.eq.s32.totalorder %v464, %v468
      %vm480 = vcmp.eq.s32.totalorder %v465, %v468
      %v481 = vmul.u32 %v468, 24
      %v482 = vsub.s32 %v364, %v481
      %vm483 = vcmp.lt.s32.totalorder %v482, 17
      %vm484 = vmand %vm469, %vm483
      %vm485 = vmand %vm470, %vm483
      %vm486 = vmand %vm471, %vm483
      %vm487 = vmand %vm472, %vm483
      %vm488 = vmand %vm473, %vm483
      %vm489 = vmand %vm474, %vm483
      %vm490 = vmand %vm475, %vm483
      %vm491 = vmand %vm476, %vm483
      %vm492 = vmand %vm477, %vm483
      %vm493 = vmand %vm478, %vm483
      %vm494 = vmand %vm479, %vm483
      %vm495 = vmand %vm480, %vm483
      %v496 = vsel %vm484, 0.0, -1e+30
      %v497 = vsel %vm485, 0.0, -1e+30
      %v498 = vsel %vm486, 0.0, -1e+30
      %v499 = vsel %vm487, 0.0, -1e+30
      %v500 = vsel %vm488, 0.0, -1e+30
      %v501 = vsel %vm489, 0.0, -1e+30
      %v502 = vsel %vm490, 0.0, -1e+30
      %v503 = vsel %vm491, 0.0, -1e+30
      %v504 = vsel %vm492, 0.0, -1e+30
      %v505 = vsel %vm493, 0.0, -1e+30
      %v506 = vsel %vm494, 0.0, -1e+30
      %v507 = vsel %vm495, 0.0, -1e+30
      %v508 = vld [vmem:[%s4] sm:$0xff]
      %v509 = vld [vmem:[%s4 + $0x8] sm:$0xff]
      %v510 = vld [vmem:[%s4 + $0x10] sm:$0xff]
      %v511 = vld [vmem:[%s4 + $0x18] sm:$0xff]
      %v512 = vld [vmem:[%s4 + $0x20] sm:$0xff]
      %v513 = vld [vmem:[%s4 + $0x28] sm:$0xff]
      %v514 = vld [vmem:[%s4 + $0x30] sm:$0xff]
      %v515 = vld [vmem:[%s4 + $0x38] sm:$0xff]
      %v516 = vld [vmem:[%s4 + $0x40] sm:$0xff]
      %v517 = vld [vmem:[%s4 + $0x48] sm:$0xff]
      %v518 = vld [vmem:[%s4 + $0x50] sm:$0xff]
      %v519 = vld [vmem:[%s4 + $0x58] sm:$0xff]
      %v520 = vld [vmem:[%s4 + $0x60] sm:$0xff]
      %v521 = vld [vmem:[%s4 + $0x68] sm:$0xff]
      %v522 = vld [vmem:[%s4 + $0x70] sm:$0xff]
      %v523 = vld [vmem:[%s4 + $0x78] sm:$0xff]
      %v524 = vld [vmem:[%s4 + $0x80] sm:$0xff]
      %v525 = vld [vmem:[%s4 + $0x88] sm:$0xff]
      %v526 = vld [vmem:[%s4 + $0x90] sm:$0xff]
      %v527 = vld [vmem:[%s4 + $0x98] sm:$0xff]
      %v528 = vld [vmem:[%s4 + $0xa0] sm:$0xff]
      %v529 = vld [vmem:[%s4 + $0xa8] sm:$0xff]
      %v530 = vld [vmem:[%s4 + $0xb0] sm:$0xff]
      %v531 = vld [vmem:[%s4 + $0xb8] sm:$0xff]
      %v532 = vld [vmem:[%s4 + $0xc0] sm:$0xff]
      %v533 = vld [vmem:[%s4 + $0xc8] sm:$0xff]
      %v534 = vld [vmem:[%s4 + $0xd0] sm:$0xff]
      %v535 = vld [vmem:[%s4 + $0xd8] sm:$0xff]
      %v536 = vld [vmem:[%s4 + $0xe0] sm:$0xff]
      %v537 = vld [vmem:[%s4 + $0xe8] sm:$0xff]
      %v538 = vld [vmem:[%s4 + $0xf0] sm:$0xff]
      %v539 = vld [vmem:[%s4 + $0xf8] sm:$0xff]
      %v540 = vld [vmem:[%s4 + $0x100] sm:$0xff]
      %v541 = vld [vmem:[%s4 + $0x108] sm:$0xff]
      %v542 = vld [vmem:[%s4 + $0x110] sm:$0xff]
      %v543 = vld [vmem:[%s4 + $0x118] sm:$0xff]
      %v544 = vld [vmem:[%s4 + $0x120] sm:$0xff]
      %v545 = vld [vmem:[%s4 + $0x128] sm:$0xff]
      %v546 = vld [vmem:[%s4 + $0x130] sm:$0xff]
      %v547 = vld [vmem:[%s4 + $0x138] sm:$0xff]
      %v548 = vld [vmem:[%s4 + $0x140] sm:$0xff]
      %v549 = vld [vmem:[%s2] sm:$0xff]
      %v550 = vld [vmem:[%s2 + $0x8] sm:$0xff]
      %v551 = vld [vmem:[%s2 + $0x10] sm:$0xff]
      %v552 = vld [vmem:[%s2 + $0x18] sm:$0xff]
      %v553 = vld [vmem:[%s2 + $0x20] sm:$0xff]
      %v554 = vld [vmem:[%s2 + $0x28] sm:$0xff]
      %v555 = vld [vmem:[%s2 + $0x30] sm:$0xff]
      %v556 = vld [vmem:[%s2 + $0x38] sm:$0xff]
      %v557 = vld [vmem:[%s2 + $0x40] sm:$0xff]
      %v558 = vld [vmem:[%s2 + $0x48] sm:$0xff]
      %v559 = vld [vmem:[%s2 + $0x50] sm:$0xff]
      %v560 = vld [vmem:[%s2 + $0x58] sm:$0xff]
      %v561 = vld [vmem:[%s2 + $0x60] sm:$0xff]
      %v562 = vld [vmem:[%s2 + $0x68] sm:$0xff]
      %v563 = vld [vmem:[%s2 + $0x70] sm:$0xff]
      %v564 = vld [vmem:[%s2 + $0x78] sm:$0xff]
      %s565 = scalar_lea.vmem %s2, 128
      %v566 = vld [vmem:[%s565] ss:$8 sm:$0x3]
      %v567 = vld [vmem:[%s3] sm:$0xff]
      %v568 = vld [vmem:[%s3 + $0x8] sm:$0xff]
      %v569 = vld [vmem:[%s3 + $0x10] sm:$0xff]
      %v570 = vld [vmem:[%s3 + $0x18] sm:$0xff]
      %v571 = vld [vmem:[%s3 + $0x20] sm:$0xff]
      %v572 = vld [vmem:[%s3 + $0x28] sm:$0xff]
      %v573 = vld [vmem:[%s3 + $0x30] sm:$0xff]
      %v574 = vld [vmem:[%s3 + $0x38] sm:$0xff]
      %v575 = vld [vmem:[%s3 + $0x40] sm:$0xff]
      %v576 = vld [vmem:[%s3 + $0x48] sm:$0xff]
      %v577 = vld [vmem:[%s3 + $0x50] sm:$0xff]
      %v578 = vld [vmem:[%s3 + $0x58] sm:$0xff]
      %v579 = vld [vmem:[%s3 + $0x60] sm:$0xff]
      %v580 = vld [vmem:[%s3 + $0x68] sm:$0xff]
      %v581 = vld [vmem:[%s3 + $0x70] sm:$0xff]
      %v582 = vld [vmem:[%s3 + $0x78] sm:$0xff]
      %s583 = scalar_lea.vmem %s3, 128
      %v584 = vld [vmem:[%s583] ss:$8 sm:$0x3]
      %vm585 = vcmask 523264
      %v586 = vsel %vm585, %v337, 0.0
      %587 = vadd.xlane.f32.xlu0 %v586
      %v588 = vpop.xlane.xlu0 %587
      %v589 = vsel %vm585, %v342, 0.0
      %590 = vadd.xlane.f32.xlu0 %v589
      %v591 = vpop.xlane.xlu0 %590
      %v592 = vsel %vm585, %v347, 0.0
      %593 = vadd.xlane.f32.xlu0 %v592
      %v594 = vpop.xlane.xlu0 %593
      %v595 = vrcp.pop 64.0
      %v596 = vmul.f32 %v588, %v595
      %v597 = vmul.f32 %v591, %v595
      %v598 = vmul.f32 %v594, %v595
      %v599 = vsub.f32 %v337, %v596
      %v600 = vsub.f32 %v342, %v597
      %v601 = vsub.f32 %v347, %v598
      %v602 = vmul.f32 %v599, %v599
      %v603 = vmul.f32 %v600, %v600
      %v604 = vmul.f32 %v601, %v601
      %v605 = vsel %vm585, %v602, 0.0
      %606 = vadd.xlane.f32.xlu0 %v605
      %v607 = vpop.xlane.xlu0 %606
      %v608 = vsel %vm585, %v603, 0.0
      %609 = vadd.xlane.f32.xlu0 %v608
      %v610 = vpop.xlane.xlu0 %609
      %v611 = vsel %vm585, %v604, 0.0
      %612 = vadd.xlane.f32.xlu0 %v611
      %v613 = vpop.xlane.xlu0 %612
      %v614 = vmul.f32 %v607, %v595
      %v615 = vmul.f32 %v610, %v595
      %v616 = vmul.f32 %v613, %v595
      %v617 = vadd.f32 %v614, 1e-06
      %v618 = vadd.f32 %v615, 1e-06
      %v619 = vadd.f32 %v616, 1e-06
      %v620 = vrsqrt.pop %v617
      %v621 = vrsqrt.pop %v618
      %v622 = vrsqrt.pop %v619
      %v623 = vmul.f32 %v599, %v620
      %v624 = vmul.f32 %v600, %v621
      %v625 = vmul.f32 %v601, %v622
      %v626 = vlaneseq
      %v627 = vshrl.u32 %v626, 7
      %v628 = vsub.s32 0, %v627
      %v629 = vrot.slane %v508, %v628
      %v630 = vmul.f32 %v623, %v629
      %v631 = vmul.f32 %v624, %v629
      %v632 = vmul.f32 %v625, %v629
      %v633 = vlaneseq
      %v634 = vshrl.u32 %v633, 7
      %v635 = vsub.s32 1, %v634
      %v636 = vrot.slane %v508, %v635
      %v637 = vadd.f32 %v630, %v636
      %v638 = vadd.f32 %v631, %v636
      %v639 = vadd.f32 %v632, %v636
      %v641 = vlaneseq
      %v642 = vshrl.u32 %v641, 7
      %v643 = vsub.s32 0, %v642
      %v644 = vrot.slane %v566, %v643
      %v645 = vlaneseq
      %v646 = vshrl.u32 %v645, 7
      %v647 = vsub.s32 1, %v646
      %v648 = vrot.slane %v566, %v647
      %v652 = vsel %vm585, %v637, 0
      %v655 = vsel %vm585, %v638, 0
      %v658 = vsel %vm585, %v639, 0
      %660 = vmatprep.subr.mxu0 %v550
      %661 = vmatpush1.msra.mxu0 %v549
      %662 = vmatprep.subr.mxu0 %v552
      %663 = vmatpush1.msra.mxu0 %v551
      %664 = vmatprep.subr.mxu0 %v554
      %665 = vmatpush1.msra.mxu0 %v553
      %666 = vmatprep.subr.mxu0 %v556
      %667 = vmatpush1.msra.mxu0 %v555
      %668 = vmatprep.subr.mxu0 %v558
      %669 = vmatpush1.msra.mxu0 %v557
      %670 = vmatprep.subr.mxu0 %v560
      %671 = vmatpush1.msra.mxu0 %v559
      %672 = vmatprep.subr.mxu0 %v562
      %673 = vmatpush1.msra.mxu0 %v561
      %674 = vmatprep.subr.mxu0 %v564
      %675 = vmatpush1.msra.mxu0 %v563
      %676 = vmatprep.subr.mxu0 0.0
      %677 = vmatpush1.msra.mxu0 0.0
      %678 = vmatprep.subr.mxu0 0.0
      %679 = vmatpush1.msra.mxu0 0.0
      %680 = vmatprep.subr.mxu0 0.0
      %681 = vmatpush1.msra.mxu0 0.0
      %682 = vmatprep.subr.mxu0 0.0
      %683 = vmatpush1.msra.mxu0 0.0
      %684 = vmatprep.subr.mxu0 0.0
      %685 = vmatpush1.msra.mxu0 0.0
      %686 = vmatprep.subr.mxu0 0.0
      %687 = vmatpush1.msra.mxu0 0.0
      %688 = vmatprep.subr.mxu0 0.0
      %689 = vmatpush1.msra.mxu0 0.0
      %690 = vmatprep.subr.mxu0 0.0
      %691 = vmatpush1.msra.mxu0 0.0
      %692 = vmatprep.subr.mxu0 0.0
      %693 = vmatpush1.msra.mxu0 0.0
      %694 = vmatprep.subr.mxu0 0.0
      %695 = vmatpush1.msra.mxu0 0.0
      %696 = vmatprep.subr.mxu0 0.0
      %697 = vmatpush1.msra.mxu0 0.0
      %698 = vmatprep.subr.mxu0 0.0
      %699 = vmatpush1.msra.mxu0 0.0
      %700 = vmatprep.subr.mxu0 0.0
      %701 = vmatpush1.msra.mxu0 0.0
      %702 = vmatprep.subr.mxu0 0.0
      %703 = vmatpush1.msra.mxu0 0.0
      %704 = vmatprep.subr.mxu0 0.0
      %705 = vmatpush1.msra.mxu0 0.0
      %706 = vmatprep.subr.mxu0 0.0
      %707 = vmatpush1.msra.mxu0 0.0
      %708 = vmatprep.subr.mxu0 0.0
      %709 = vmatpush1.msra.mxu0 0.0
      %710 = vmatprep.subr.mxu0 0.0
      %711 = vmatpush1.msra.mxu0 0.0
      %712 = vmatprep.subr.mxu0 0.0
      %713 = vmatpush1.msra.mxu0 0.0
      %714 = vmatprep.subr.mxu0 0.0
      %715 = vmatpush1.msra.mxu0 0.0
      %716 = vmatprep.subr.mxu0 0.0
      %717 = vmatpush1.msra.mxu0 0.0
      %718 = vmatprep.subr.mxu0 0.0
      %719 = vmatpush1.msra.mxu0 0.0
      %720 = vmatprep.subr.mxu0 0.0
      %721 = vmatpush1.msra.mxu0 0.0
      %722 = vmatprep.subr.mxu0 0.0
      %723 = vmatpush1.msra.mxu0 0.0
      %724 = vmatprep.mubr.f32.mxu0 0.0
      %725 = vmatmul.mubr.f32.gmra.mrb[0].mxu0 %v652
      %v726 = vpop.f32.mrb[0].mxu0
      %v727 = vadd.f32 %v644, %v726
      %v728 = vpop.f32.mrb[0].mxu0
      %v729 = vadd.f32 %v648, %v728
      %730 = vmatprep.mubr.f32.mxu0 0.0
      %731 = vmatmul.mubr.f32.gmra.mrb[0].mxu0 %v655
      %v732 = vpop.f32.mrb[0].mxu0
      %v733 = vadd.f32 %v644, %v732
      %v734 = vpop.f32.mrb[0].mxu0
      %v735 = vadd.f32 %v648, %v734
      %736 = vmatprep.mubr.f32.mxu0 0.0
      %737 = vmatmul.mubr.f32.gmra.mrb[0].mxu0 %v658
      %v738 = vpop.f32.mrb[0].mxu0
      %v739 = vadd.f32 %v644, %v738
      %v740 = vpop.f32.mrb[0].mxu0
      %v741 = vadd.f32 %v648, %v740
      %742 = vdwg.mxu0
      %746 = vrot.lane.b32.xlu0 %v727, 112
      %v747 = vpop.permute.xlu0 %746
      %748 = vrot.lane.b32.xlu0 %v733, 112
      %v749 = vpop.permute.xlu0 %748
      %750 = vrot.lane.b32.xlu0 %v739, 112
      %v751 = vpop.permute.xlu0 %750
      %752 = vrot.lane.b32.xlu0 %v727, 96
      %v753 = vpop.permute.xlu0 %752
      %754 = vrot.lane.b32.xlu0 %v733, 96
      %v755 = vpop.permute.xlu0 %754
      %756 = vrot.lane.b32.xlu0 %v739, 96
      %v757 = vpop.permute.xlu0 %756
      %758 = vrot.lane.b32.xlu0 %v727, 80
      %v759 = vpop.permute.xlu0 %758
      %760 = vrot.lane.b32.xlu0 %v733, 80
      %v761 = vpop.permute.xlu0 %760
      %762 = vrot.lane.b32.xlu0 %v739, 80
      %v763 = vpop.permute.xlu0 %762
      %767 = vrot.lane.b32.xlu0 %v729, 112
      %v768 = vpop.permute.xlu0 %767
      %769 = vrot.lane.b32.xlu0 %v735, 112
      %v770 = vpop.permute.xlu0 %769
      %771 = vrot.lane.b32.xlu0 %v741, 112
      %v772 = vpop.permute.xlu0 %771
      %776 = vrot.lane.b32.xlu0 %v729, 96
      %v777 = vpop.permute.xlu0 %776
      %778 = vrot.lane.b32.xlu0 %v735, 96
      %v779 = vpop.permute.xlu0 %778
      %780 = vrot.lane.b32.xlu0 %v741, 96
      %v781 = vpop.permute.xlu0 %780
      %785 = vrot.lane.b32.xlu0 %v729, 80
      %v786 = vpop.permute.xlu0 %785
      %787 = vrot.lane.b32.xlu0 %v735, 80
      %v788 = vpop.permute.xlu0 %787
      %789 = vrot.lane.b32.xlu0 %v741, 80
      %v790 = vpop.permute.xlu0 %789
      %794 = vrot.lane.b32.xlu0 %v727, 64
      %v795 = vpop.permute.xlu0 %794
      %796 = vrot.lane.b32.xlu0 %v733, 64
      %v797 = vpop.permute.xlu0 %796
      %798 = vrot.lane.b32.xlu0 %v739, 64
      %v799 = vpop.permute.xlu0 %798
      %800 = vrot.lane.b32.xlu0 %v747, 64
      %v801 = vpop.permute.xlu0 %800
      %802 = vrot.lane.b32.xlu0 %v749, 64
      %v803 = vpop.permute.xlu0 %802
      %804 = vrot.lane.b32.xlu0 %v751, 64
      %v805 = vpop.permute.xlu0 %804
      %806 = vrot.lane.b32.xlu0 %v753, 64
      %v807 = vpop.permute.xlu0 %806
      %808 = vrot.lane.b32.xlu0 %v755, 64
      %v809 = vpop.permute.xlu0 %808
      %810 = vrot.lane.b32.xlu0 %v757, 64
      %v811 = vpop.permute.xlu0 %810
      %812 = vrot.lane.b32.xlu0 %v759, 64
      %v813 = vpop.permute.xlu0 %812
      %814 = vrot.lane.b32.xlu0 %v761, 64
      %v815 = vpop.permute.xlu0 %814
      %816 = vrot.lane.b32.xlu0 %v763, 64
      %v817 = vpop.permute.xlu0 %816
      %vm818 = vcmask 130048
      %v819 = vsel %vm818, %v727, 0
      %v821 = vsel %vm818, %v733, 0
      %v823 = vsel %vm818, %v739, 0
      %v825 = vsel %vm818, %v747, 0
      %v827 = vsel %vm818, %v749, 0
      %v829 = vsel %vm818, %v751, 0
      %v831 = vsel %vm818, %v753, 0
      %v833 = vsel %vm818, %v755, 0
      %v835 = vsel %vm818, %v757, 0
      %v837 = vsel %vm818, %v759, 0
      %v839 = vsel %vm818, %v761, 0
      %v841 = vsel %vm818, %v763, 0
      %v843 = vsel %vm818, %v795, 0
      %v845 = vsel %vm818, %v797, 0
      %v847 = vsel %vm818, %v799, 0
      %v849 = vsel %vm818, %v801, 0
      %v851 = vsel %vm818, %v803, 0
      %v853 = vsel %vm818, %v805, 0
      %v855 = vsel %vm818, %v807, 0
      %v857 = vsel %vm818, %v809, 0
      %v859 = vsel %vm818, %v811, 0
      %v861 = vsel %vm818, %v813, 0
      %v863 = vsel %vm818, %v815, 0
      %v865 = vsel %vm818, %v817, 0
      %867 = vmatprep.subr.mxu0 0.0
      %868 = vmatpush1.xpose.msra.mxu0 %v843
      %869 = vmatprep.subr.mxu0 0.0
      %870 = vmatpush1.xpose.msra.mxu0 %v845
      %871 = vmatprep.subr.mxu0 0.0
      %872 = vmatpush1.xpose.msra.mxu0 %v847
      %873 = vmatprep.subr.mxu0 0.0
      %874 = vmatpush1.xpose.msra.mxu0 %v849
      %875 = vmatprep.subr.mxu0 0.0
      %876 = vmatpush1.xpose.msra.mxu0 %v851
      %877 = vmatprep.subr.mxu0 0.0
      %878 = vmatpush1.xpose.msra.mxu0 %v853
      %879 = vmatprep.subr.mxu0 0.0
      %880 = vmatpush1.xpose.msra.mxu0 %v855
      %881 = vmatprep.subr.mxu0 0.0
      %882 = vmatpush1.xpose.msra.mxu0 %v857
      %883 = vmatprep.subr.mxu0 0.0
      %884 = vmatpush1.xpose.msra.mxu0 %v859
      %885 = vmatprep.subr.mxu0 0.0
      %886 = vmatpush1.xpose.msra.mxu0 %v861
      %887 = vmatprep.subr.mxu0 0.0
      %888 = vmatpush1.xpose.msra.mxu0 %v863
      %889 = vmatprep.subr.mxu0 0.0
      %890 = vmatpush1.xpose.msra.mxu0 %v865
      %891 = vmatprep.subr.mxu0 0.0
      %892 = vmatpush1.xpose.msra.mxu0 0.0
      %893 = vmatprep.subr.mxu0 0.0
      %894 = vmatpush1.xpose.msra.mxu0 0.0
      %895 = vmatprep.subr.mxu0 0.0
      %896 = vmatpush1.xpose.msra.mxu0 0.0
      %897 = vmatprep.subr.mxu0 0.0
      %898 = vmatpush1.xpose.msra.mxu0 0.0
      %899 = vmatprep.subr.mxu0 0.0
      %900 = vmatpush1.xpose.msra.mxu0 0.0
      %901 = vmatprep.subr.mxu0 0.0
      %902 = vmatpush1.xpose.msra.mxu0 0.0
      %903 = vmatprep.subr.mxu0 0.0
      %904 = vmatpush1.xpose.msra.mxu0 0.0
      %905 = vmatprep.subr.mxu0 0.0
      %906 = vmatpush1.xpose.msra.mxu0 0.0
      %907 = vmatprep.subr.mxu0 0.0
      %908 = vmatpush1.xpose.msra.mxu0 0.0
      %909 = vmatprep.subr.mxu0 0.0
      %910 = vmatpush1.xpose.msra.mxu0 0.0
      %911 = vmatprep.subr.mxu0 0.0
      %912 = vmatpush1.xpose.msra.mxu0 0.0
      %913 = vmatprep.subr.mxu0 0.0
      %914 = vmatpush1.xpose.msra.mxu0 0.0
      %915 = vmatprep.subr.mxu0 0.0
      %916 = vmatpush1.xpose.msra.mxu0 0.0
      %917 = vmatprep.subr.mxu0 0.0
      %918 = vmatpush1.xpose.msra.mxu0 0.0
      %919 = vmatprep.subr.mxu0 0.0
      %920 = vmatpush1.xpose.msra.mxu0 0.0
      %921 = vmatprep.subr.mxu0 0.0
      %922 = vmatpush1.xpose.msra.mxu0 0.0
      %923 = vmatprep.subr.mxu0 0.0
      %924 = vmatpush1.xpose.msra.mxu0 0.0
      %925 = vmatprep.subr.mxu0 0.0
      %926 = vmatpush1.xpose.msra.mxu0 0.0
      %927 = vmatprep.subr.mxu0 0.0
      %928 = vmatpush1.xpose.msra.mxu0 0.0
      %929 = vmatprep.subr.mxu0 0.0
      %930 = vmatpush1.xpose.msra.mxu0 0.0
      %931 = vmatprep.mubr.f32.mxu0 0.0
      %932 = vmatmul.mubr.f32.gmra.mrb[0].mxu0 %v819
      %v933 = vpop.f32.mrb[0].mxu0
      %v934 = vadd.f32 0.0, %v933
      %v935 = vpop.f32.mrb[0].mxu0
      %936 = vmatprep.mubr.f32.mxu0 0.0
      %937 = vmatmul.mubr.f32.gmra.mrb[0].mxu0 %v821
      %v938 = vpop.f32.mrb[0].mxu0
      %v939 = vadd.f32 0.0, %v938
      %v940 = vpop.f32.mrb[0].mxu0
      %941 = vmatprep.mubr.f32.mxu0 0.0
      %942 = vmatmul.mubr.f32.gmra.mrb[0].mxu0 %v823
      %v943 = vpop.f32.mrb[0].mxu0
      %v944 = vadd.f32 0.0, %v943
      %v945 = vpop.f32.mrb[0].mxu0
      %946 = vmatprep.mubr.f32.mxu0 0.0
      %947 = vmatmul.mubr.f32.gmra.mrb[0].mxu0 %v825
      %v948 = vpop.f32.mrb[0].mxu0
      %v949 = vadd.f32 0.0, %v948
      %v950 = vpop.f32.mrb[0].mxu0
      %951 = vmatprep.mubr.f32.mxu0 0.0
      %952 = vmatmul.mubr.f32.gmra.mrb[0].mxu0 %v827
      %v953 = vpop.f32.mrb[0].mxu0
      %v954 = vadd.f32 0.0, %v953
      %v955 = vpop.f32.mrb[0].mxu0
      %956 = vmatprep.mubr.f32.mxu0 0.0
      %957 = vmatmul.mubr.f32.gmra.mrb[0].mxu0 %v829
      %v958 = vpop.f32.mrb[0].mxu0
      %v959 = vadd.f32 0.0, %v958
      %v960 = vpop.f32.mrb[0].mxu0
      %961 = vmatprep.mubr.f32.mxu0 0.0
      %962 = vmatmul.mubr.f32.gmra.mrb[0].mxu0 %v831
      %v963 = vpop.f32.mrb[0].mxu0
      %v964 = vadd.f32 0.0, %v963
      %v965 = vpop.f32.mrb[0].mxu0
      %966 = vmatprep.mubr.f32.mxu0 0.0
      %967 = vmatmul.mubr.f32.gmra.mrb[0].mxu0 %v833
      %v968 = vpop.f32.mrb[0].mxu0
      %v969 = vadd.f32 0.0, %v968
      %v970 = vpop.f32.mrb[0].mxu0
      %971 = vmatprep.mubr.f32.mxu0 0.0
      %972 = vmatmul.mubr.f32.gmra.mrb[0].mxu0 %v835
      %v973 = vpop.f32.mrb[0].mxu0
      %v974 = vadd.f32 0.0, %v973
      %v975 = vpop.f32.mrb[0].mxu0
      %976 = vmatprep.mubr.f32.mxu0 0.0
      %977 = vmatmul.mubr.f32.gmra.mrb[0].mxu0 %v837
      %v978 = vpop.f32.mrb[0].mxu0
      %v979 = vadd.f32 0.0, %v978
      %v980 = vpop.f32.mrb[0].mxu0
      %981 = vmatprep.mubr.f32.mxu0 0.0
      %982 = vmatmul.mubr.f32.gmra.mrb[0].mxu0 %v839
      %v983 = vpop.f32.mrb[0].mxu0
      %v984 = vadd.f32 0.0, %v983
      %v985 = vpop.f32.mrb[0].mxu0
      %986 = vmatprep.mubr.f32.mxu0 0.0
      %987 = vmatmul.mubr.f32.gmra.mrb[0].mxu0 %v841
      %v988 = vpop.f32.mrb[0].mxu0
      %v989 = vadd.f32 0.0, %v988
      %v990 = vpop.f32.mrb[0].mxu0
      %991 = vdwg.mxu0
      %v992 = vmul.f32 %v934, 0.25
      %v993 = vmul.f32 %v939, 0.25
      %v994 = vmul.f32 %v944, 0.25
      %v995 = vmul.f32 %v949, 0.25
      %v996 = vmul.f32 %v954, 0.25
      %v997 = vmul.f32 %v959, 0.25
      %v998 = vmul.f32 %v964, 0.25
      %v999 = vmul.f32 %v969, 0.25
      %v1000 = vmul.f32 %v974, 0.25
      %v1001 = vmul.f32 %v979, 0.25
      %v1002 = vmul.f32 %v984, 0.25
      %v1003 = vmul.f32 %v989, 0.25
      %v1004 = vadd.f32 %v992, %v496
      %v1005 = vadd.f32 %v993, %v497
      %v1006 = vadd.f32 %v994, %v498
      %v1007 = vadd.f32 %v995, %v499
      %v1008 = vadd.f32 %v996, %v500
      %v1009 = vadd.f32 %v997, %v501
      %v1010 = vadd.f32 %v998, %v502
      %v1011 = vadd.f32 %v999, %v503
      %v1012 = vadd.f32 %v1000, %v504
      %v1013 = vadd.f32 %v1001, %v505
      %v1014 = vadd.f32 %v1002, %v506
      %v1015 = vadd.f32 %v1003, %v507
      %vm1016 = vcmask 785408
      %v1017 = vsel %vm1016, %v1004, -inf
      %1018 = vmax.xlane.f32.xlu0 %v1017
      %v1019 = vpop.xlane.xlu0 %1018
      %v1020 = vsel %vm1016, %v1005, -inf
      %1021 = vmax.xlane.f32.xlu0 %v1020
      %v1022 = vpop.xlane.xlu0 %1021
      %v1023 = vsel %vm1016, %v1006, -inf
      %1024 = vmax.xlane.f32.xlu0 %v1023
      %v1025 = vpop.xlane.xlu0 %1024
      %v1026 = vsel %vm1016, %v1007, -inf
      %1027 = vmax.xlane.f32.xlu0 %v1026
      %v1028 = vpop.xlane.xlu0 %1027
      %v1029 = vsel %vm1016, %v1008, -inf
      %1030 = vmax.xlane.f32.xlu0 %v1029
      %v1031 = vpop.xlane.xlu0 %1030
      %v1032 = vsel %vm1016, %v1009, -inf
      %1033 = vmax.xlane.f32.xlu0 %v1032
      %v1034 = vpop.xlane.xlu0 %1033
      %v1035 = vsel %vm1016, %v1010, -inf
      %1036 = vmax.xlane.f32.xlu0 %v1035
      %v1037 = vpop.xlane.xlu0 %1036
      %v1038 = vsel %vm1016, %v1011, -inf
      %1039 = vmax.xlane.f32.xlu0 %v1038
      %v1040 = vpop.xlane.xlu0 %1039
      %v1041 = vsel %vm1016, %v1012, -inf
      %1042 = vmax.xlane.f32.xlu0 %v1041
      %v1043 = vpop.xlane.xlu0 %1042
      %v1044 = vsel %vm1016, %v1013, -inf
      %1045 = vmax.xlane.f32.xlu0 %v1044
      %v1046 = vpop.xlane.xlu0 %1045
      %v1047 = vsel %vm1016, %v1014, -inf
      %1048 = vmax.xlane.f32.xlu0 %v1047
      %v1049 = vpop.xlane.xlu0 %1048
      %v1050 = vsel %vm1016, %v1015, -inf
      %1051 = vmax.xlane.f32.xlu0 %v1050
      %v1052 = vpop.xlane.xlu0 %1051
      %v1053 = vsub.f32 %v1004, %v1019
      %v1054 = vsub.f32 %v1005, %v1022
      %v1055 = vsub.f32 %v1006, %v1025
      %v1056 = vsub.f32 %v1007, %v1028
      %v1057 = vsub.f32 %v1008, %v1031
      %v1058 = vsub.f32 %v1009, %v1034
      %v1059 = vsub.f32 %v1010, %v1037
      %v1060 = vsub.f32 %v1011, %v1040
      %v1061 = vsub.f32 %v1012, %v1043
      %v1062 = vsub.f32 %v1013, %v1046
      %v1063 = vsub.f32 %v1014, %v1049
      %v1064 = vsub.f32 %v1015, %v1052
      %v1065 = vmul.f32 %v1053, 1.442695
      %v1066 = vpow.pop %v1065
      %v1067 = vmul.f32 %v1054, 1.442695
      %v1068 = vpow.pop %v1067
      %v1069 = vmul.f32 %v1055, 1.442695
      %v1070 = vpow.pop %v1069
      %v1071 = vmul.f32 %v1056, 1.442695
      %v1072 = vpow.pop %v1071
      %v1073 = vmul.f32 %v1057, 1.442695
      %v1074 = vpow.pop %v1073
      %v1075 = vmul.f32 %v1058, 1.442695
      %v1076 = vpow.pop %v1075
      %v1077 = vmul.f32 %v1059, 1.442695
      %v1078 = vpow.pop %v1077
      %v1079 = vmul.f32 %v1060, 1.442695
      %v1080 = vpow.pop %v1079
      %v1081 = vmul.f32 %v1061, 1.442695
      %v1082 = vpow.pop %v1081
      %v1083 = vmul.f32 %v1062, 1.442695
      %v1084 = vpow.pop %v1083
      %v1085 = vmul.f32 %v1063, 1.442695
      %v1086 = vpow.pop %v1085
      %v1087 = vmul.f32 %v1064, 1.442695
      %v1088 = vpow.pop %v1087
      %v1089 = vsel %vm1016, %v1066, 0.0
      %1090 = vadd.xlane.f32.xlu0 %v1089
      %v1091 = vpop.xlane.xlu0 %1090
      %v1092 = vsel %vm1016, %v1068, 0.0
      %1093 = vadd.xlane.f32.xlu0 %v1092
      %v1094 = vpop.xlane.xlu0 %1093
      %v1095 = vsel %vm1016, %v1070, 0.0
      %1096 = vadd.xlane.f32.xlu0 %v1095
      %v1097 = vpop.xlane.xlu0 %1096
      %v1098 = vsel %vm1016, %v1072, 0.0
      %1099 = vadd.xlane.f32.xlu0 %v1098
      %v1100 = vpop.xlane.xlu0 %1099
      %v1101 = vsel %vm1016, %v1074, 0.0
      %1102 = vadd.xlane.f32.xlu0 %v1101
      %v1103 = vpop.xlane.xlu0 %1102
      %v1104 = vsel %vm1016, %v1076, 0.0
      %1105 = vadd.xlane.f32.xlu0 %v1104
      %v1106 = vpop.xlane.xlu0 %1105
      %v1107 = vsel %vm1016, %v1078, 0.0
      %1108 = vadd.xlane.f32.xlu0 %v1107
      %v1109 = vpop.xlane.xlu0 %1108
      %v1110 = vsel %vm1016, %v1080, 0.0
      %1111 = vadd.xlane.f32.xlu0 %v1110
      %v1112 = vpop.xlane.xlu0 %1111
      %v1113 = vsel %vm1016, %v1082, 0.0
      %1114 = vadd.xlane.f32.xlu0 %v1113
      %v1115 = vpop.xlane.xlu0 %1114
      %v1116 = vsel %vm1016, %v1084, 0.0
      %1117 = vadd.xlane.f32.xlu0 %v1116
      %v1118 = vpop.xlane.xlu0 %1117
      %v1119 = vsel %vm1016, %v1086, 0.0
      %1120 = vadd.xlane.f32.xlu0 %v1119
      %v1121 = vpop.xlane.xlu0 %1120
      %v1122 = vsel %vm1016, %v1088, 0.0
      %1123 = vadd.xlane.f32.xlu0 %v1122
      %v1124 = vpop.xlane.xlu0 %1123
      %v1125 = vrcp.pop %v1091
      %v1126 = vmul.f32 %v1066, %v1125
      %v1127 = vrcp.pop %v1094
      %v1128 = vmul.f32 %v1068, %v1127
      %v1129 = vrcp.pop %v1097
      %v1130 = vmul.f32 %v1070, %v1129
      %v1131 = vrcp.pop %v1100
      %v1132 = vmul.f32 %v1072, %v1131
      %v1133 = vrcp.pop %v1103
      %v1134 = vmul.f32 %v1074, %v1133
      %v1135 = vrcp.pop %v1106
      %v1136 = vmul.f32 %v1076, %v1135
      %v1137 = vrcp.pop %v1109
      %v1138 = vmul.f32 %v1078, %v1137
      %v1139 = vrcp.pop %v1112
      %v1140 = vmul.f32 %v1080, %v1139
      %v1141 = vrcp.pop %v1115
      %v1142 = vmul.f32 %v1082, %v1141
      %v1143 = vrcp.pop %v1118
      %v1144 = vmul.f32 %v1084, %v1143
      %v1145 = vrcp.pop %v1121
      %v1146 = vmul.f32 %v1086, %v1145
      %v1147 = vrcp.pop %v1124
      %v1148 = vmul.f32 %v1088, %v1147
      %v1150 = vsel %vm1016, %v1126, 0
      %v1153 = vsel %vm1016, %v1128, 0
      %v1156 = vsel %vm1016, %v1130, 0
      %v1159 = vsel %vm1016, %v1132, 0
      %v1162 = vsel %vm1016, %v1134, 0
      %v1165 = vsel %vm1016, %v1136, 0
      %v1168 = vsel %vm1016, %v1138, 0
      %v1171 = vsel %vm1016, %v1140, 0
      %v1174 = vsel %vm1016, %v1142, 0
      %v1177 = vsel %vm1016, %v1144, 0
      %v1180 = vsel %vm1016, %v1146, 0
      %v1183 = vsel %vm1016, %v1148, 0
      %1185 = vmatprep.subr.mxu0 0.0
      %1186 = vmatpush1.msra.mxu0 %v729
      %1187 = vmatprep.subr.mxu0 0.0
      %1188 = vmatpush1.msra.mxu0 %v735
      %1189 = vmatprep.subr.mxu0 0.0
      %1190 = vmatpush1.msra.mxu0 %v741
      %1191 = vmatprep.subr.mxu0 0.0
      %1192 = vmatpush1.msra.mxu0 %v768
      %1193 = vmatprep.subr.mxu0 0.0
      %1194 = vmatpush1.msra.mxu0 %v770
      %1195 = vmatprep.subr.mxu0 0.0
      %1196 = vmatpush1.msra.mxu0 %v772
      %1197 = vmatprep.subr.mxu0 0.0
      %1198 = vmatpush1.msra.mxu0 %v777
      %1199 = vmatprep.subr.mxu0 0.0
      %1200 = vmatpush1.msra.mxu0 %v779
      %1201 = vmatprep.subr.mxu0 0.0
      %1202 = vmatpush1.msra.mxu0 %v781
      %1203 = vmatprep.subr.mxu0 0.0
      %1204 = vmatpush1.msra.mxu0 %v786
      %1205 = vmatprep.subr.mxu0 0.0
      %1206 = vmatpush1.msra.mxu0 %v788
      %1207 = vmatprep.subr.mxu0 0.0
      %1208 = vmatpush1.msra.mxu0 %v790
      %1209 = vmatprep.subr.mxu0 0.0
      %1210 = vmatpush1.msra.mxu0 0.0
      %1211 = vmatprep.subr.mxu0 0.0
      %1212 = vmatpush1.msra.mxu0 0.0
      %1213 = vmatprep.subr.mxu0 0.0
      %1214 = vmatpush1.msra.mxu0 0.0
      %1215 = vmatprep.subr.mxu0 0.0
      %1216 = vmatpush1.msra.mxu0 0.0
      %1217 = vmatprep.subr.mxu0 0.0
      %1218 = vmatpush1.msra.mxu0 0.0
      %1219 = vmatprep.subr.mxu0 0.0
      %1220 = vmatpush1.msra.mxu0 0.0
      %1221 = vmatprep.subr.mxu0 0.0
      %1222 = vmatpush1.msra.mxu0 0.0
      %1223 = vmatprep.subr.mxu0 0.0
      %1224 = vmatpush1.msra.mxu0 0.0
      %1225 = vmatprep.subr.mxu0 0.0
      %1226 = vmatpush1.msra.mxu0 0.0
      %1227 = vmatprep.subr.mxu0 0.0
      %1228 = vmatpush1.msra.mxu0 0.0
      %1229 = vmatprep.subr.mxu0 0.0
      %1230 = vmatpush1.msra.mxu0 0.0
      %1231 = vmatprep.subr.mxu0 0.0
      %1232 = vmatpush1.msra.mxu0 0.0
      %1233 = vmatprep.subr.mxu0 0.0
      %1234 = vmatpush1.msra.mxu0 0.0
      %1235 = vmatprep.subr.mxu0 0.0
      %1236 = vmatpush1.msra.mxu0 0.0
      %1237 = vmatprep.subr.mxu0 0.0
      %1238 = vmatpush1.msra.mxu0 0.0
      %1239 = vmatprep.subr.mxu0 0.0
      %1240 = vmatpush1.msra.mxu0 0.0
      %1241 = vmatprep.subr.mxu0 0.0
      %1242 = vmatpush1.msra.mxu0 0.0
      %1243 = vmatprep.subr.mxu0 0.0
      %1244 = vmatpush1.msra.mxu0 0.0
      %1245 = vmatprep.subr.mxu0 0.0
      %1246 = vmatpush1.msra.mxu0 0.0
      %1247 = vmatprep.subr.mxu0 0.0
      %1248 = vmatpush1.msra.mxu0 0.0
      %1249 = vmatprep.mubr.f32.mxu0 0.0
      %1250 = vmatmul.mubr.f32.gmra.mrb[0].mxu0 %v1150
      %v1251 = vpop.f32.mrb[0].mxu0
      %v1252 = vadd.f32 0.0, %v1251
      %v1253 = vpop.f32.mrb[0].mxu0
      %1254 = vmatprep.mubr.f32.mxu0 0.0
      %1255 = vmatmul.mubr.f32.gmra.mrb[0].mxu0 %v1153
      %v1256 = vpop.f32.mrb[0].mxu0
      %v1257 = vadd.f32 0.0, %v1256
      %v1258 = vpop.f32.mrb[0].mxu0
      %1259 = vmatprep.mubr.f32.mxu0 0.0
      %1260 = vmatmul.mubr.f32.gmra.mrb[0].mxu0 %v1156
      %v1261 = vpop.f32.mrb[0].mxu0
      %v1262 = vadd.f32 0.0, %v1261
      %v1263 = vpop.f32.mrb[0].mxu0
      %1264 = vmatprep.mubr.f32.mxu0 0.0
      %1265 = vmatmul.mubr.f32.gmra.mrb[0].mxu0 %v1159
      %v1266 = vpop.f32.mrb[0].mxu0
      %v1267 = vadd.f32 0.0, %v1266
      %v1268 = vpop.f32.mrb[0].mxu0
      %1269 = vmatprep.mubr.f32.mxu0 0.0
      %1270 = vmatmul.mubr.f32.gmra.mrb[0].mxu0 %v1162
      %v1271 = vpop.f32.mrb[0].mxu0
      %v1272 = vadd.f32 0.0, %v1271
      %v1273 = vpop.f32.mrb[0].mxu0
      %1274 = vmatprep.mubr.f32.mxu0 0.0
      %1275 = vmatmul.mubr.f32.gmra.mrb[0].mxu0 %v1165
      %v1276 = vpop.f32.mrb[0].mxu0
      %v1277 = vadd.f32 0.0, %v1276
      %v1278 = vpop.f32.mrb[0].mxu0
      %1279 = vmatprep.mubr.f32.mxu0 0.0
      %1280 = vmatmul.mubr.f32.gmra.mrb[0].mxu0 %v1168
      %v1281 = vpop.f32.mrb[0].mxu0
      %v1282 = vadd.f32 0.0, %v1281
      %v1283 = vpop.f32.mrb[0].mxu0
      %1284 = vmatprep.mubr.f32.mxu0 0.0
      %1285 = vmatmul.mubr.f32.gmra.mrb[0].mxu0 %v1171
      %v1286 = vpop.f32.mrb[0].mxu0
      %v1287 = vadd.f32 0.0, %v1286
      %v1288 = vpop.f32.mrb[0].mxu0
      %1289 = vmatprep.mubr.f32.mxu0 0.0
      %1290 = vmatmul.mubr.f32.gmra.mrb[0].mxu0 %v1174
      %v1291 = vpop.f32.mrb[0].mxu0
      %v1292 = vadd.f32 0.0, %v1291
      %v1293 = vpop.f32.mrb[0].mxu0
      %1294 = vmatprep.mubr.f32.mxu0 0.0
      %1295 = vmatmul.mubr.f32.gmra.mrb[0].mxu0 %v1177
      %v1296 = vpop.f32.mrb[0].mxu0
      %v1297 = vadd.f32 0.0, %v1296
      %v1298 = vpop.f32.mrb[0].mxu0
      %1299 = vmatprep.mubr.f32.mxu0 0.0
      %1300 = vmatmul.mubr.f32.gmra.mrb[0].mxu0 %v1180
      %v1301 = vpop.f32.mrb[0].mxu0
      %v1302 = vadd.f32 0.0, %v1301
      %v1303 = vpop.f32.mrb[0].mxu0
      %1304 = vmatprep.mubr.f32.mxu0 0.0
      %1305 = vmatmul.mubr.f32.gmra.mrb[0].mxu0 %v1183
      %v1306 = vpop.f32.mrb[0].mxu0
      %v1307 = vadd.f32 0.0, %v1306
      %v1308 = vpop.f32.mrb[0].mxu0
      %1309 = vdwg.mxu0
      %1313 = vrot.lane.b32.xlu0 %v1267, 16
      %v1314 = vpop.permute.xlu0 %1313
      %1315 = vrot.lane.b32.xlu0 %v1272, 16
      %v1316 = vpop.permute.xlu0 %1315
      %1317 = vrot.lane.b32.xlu0 %v1277, 16
      %v1318 = vpop.permute.xlu0 %1317
      %1325 = vrot.lane.b32.xlu0 %v1282, 32
      %v1326 = vpop.permute.xlu0 %1325
      %1327 = vrot.lane.b32.xlu0 %v1287, 32
      %v1328 = vpop.permute.xlu0 %1327
      %1329 = vrot.lane.b32.xlu0 %v1292, 32
      %v1330 = vpop.permute.xlu0 %1329
      %1337 = vrot.lane.b32.xlu0 %v1297, 48
      %v1338 = vpop.permute.xlu0 %1337
      %1339 = vrot.lane.b32.xlu0 %v1302, 48
      %v1340 = vpop.permute.xlu0 %1339
      %1341 = vrot.lane.b32.xlu0 %v1307, 48
      %v1342 = vpop.permute.xlu0 %1341
      %v1346 = vsel %vm818, %v1252, %v1314
      %v1347 = vsel %vm818, %v1257, %v1316
      %v1348 = vsel %vm818, %v1262, %v1318
      %v1349 = vsel %vm260, %v1346, %v1326
      %v1350 = vsel %vm260, %v1347, %v1328
      %v1351 = vsel %vm260, %v1348, %v1330
      %vm1352 = vcmask 392192
      %v1353 = vsel %vm1352, %v1349, %v1338
      %v1354 = vsel %vm1352, %v1350, %v1340
      %v1355 = vsel %vm1352, %v1351, %v1342
      %v1357 = vsel %vm585, %v1353, 0
      %v1360 = vsel %vm585, %v1354, 0
      %v1363 = vsel %vm585, %v1355, 0
      %1365 = vmatprep.subr.mxu0 0.0
      %1366 = vmatpush1.msra.mxu0 %v509
      %1367 = vmatprep.subr.mxu0 0.0
      %1368 = vmatpush1.msra.mxu0 %v510
      %1369 = vmatprep.subr.mxu0 0.0
      %1370 = vmatpush1.msra.mxu0 %v511
      %1371 = vmatprep.subr.mxu0 0.0
      %1372 = vmatpush1.msra.mxu0 %v512
      %1373 = vmatprep.subr.mxu0 0.0
      %1374 = vmatpush1.msra.mxu0 %v513
      %1375 = vmatprep.subr.mxu0 0.0
      %1376 = vmatpush1.msra.mxu0 %v514
      %1377 = vmatprep.subr.mxu0 0.0
      %1378 = vmatpush1.msra.mxu0 %v515
      %1379 = vmatprep.subr.mxu0 0.0
      %1380 = vmatpush1.msra.mxu0 %v516
      %1381 = vmatprep.subr.mxu0 0.0
      %1382 = vmatpush1.msra.mxu0 0.0
      %1383 = vmatprep.subr.mxu0 0.0
      %1384 = vmatpush1.msra.mxu0 0.0
      %1385 = vmatprep.subr.mxu0 0.0
      %1386 = vmatpush1.msra.mxu0 0.0
      %1387 = vmatprep.subr.mxu0 0.0
      %1388 = vmatpush1.msra.mxu0 0.0
      %1389 = vmatprep.subr.mxu0 0.0
      %1390 = vmatpush1.msra.mxu0 0.0
      %1391 = vmatprep.subr.mxu0 0.0
      %1392 = vmatpush1.msra.mxu0 0.0
      %1393 = vmatprep.subr.mxu0 0.0
      %1394 = vmatpush1.msra.mxu0 0.0
      %1395 = vmatprep.subr.mxu0 0.0
      %1396 = vmatpush1.msra.mxu0 0.0
      %1397 = vmatprep.subr.mxu0 0.0
      %1398 = vmatpush1.msra.mxu0 0.0
      %1399 = vmatprep.subr.mxu0 0.0
      %1400 = vmatpush1.msra.mxu0 0.0
      %1401 = vmatprep.subr.mxu0 0.0
      %1402 = vmatpush1.msra.mxu0 0.0
      %1403 = vmatprep.subr.mxu0 0.0
      %1404 = vmatpush1.msra.mxu0 0.0
      %1405 = vmatprep.subr.mxu0 0.0
      %1406 = vmatpush1.msra.mxu0 0.0
      %1407 = vmatprep.subr.mxu0 0.0
      %1408 = vmatpush1.msra.mxu0 0.0
      %1409 = vmatprep.subr.mxu0 0.0
      %1410 = vmatpush1.msra.mxu0 0.0
      %1411 = vmatprep.subr.mxu0 0.0
      %1412 = vmatpush1.msra.mxu0 0.0
      %1413 = vmatprep.subr.mxu0 0.0
      %1414 = vmatpush1.msra.mxu0 0.0
      %1415 = vmatprep.subr.mxu0 0.0
      %1416 = vmatpush1.msra.mxu0 0.0
      %1417 = vmatprep.subr.mxu0 0.0
      %1418 = vmatpush1.msra.mxu0 0.0
      %1419 = vmatprep.subr.mxu0 0.0
      %1420 = vmatpush1.msra.mxu0 0.0
      %1421 = vmatprep.subr.mxu0 0.0
      %1422 = vmatpush1.msra.mxu0 0.0
      %1423 = vmatprep.subr.mxu0 0.0
      %1424 = vmatpush1.msra.mxu0 0.0
      %1425 = vmatprep.subr.mxu0 0.0
      %1426 = vmatpush1.msra.mxu0 0.0
      %1427 = vmatprep.subr.mxu0 0.0
      %1428 = vmatpush1.msra.mxu0 0.0
      %1429 = vmatprep.mubr.f32.mxu0 0.0
      %1430 = vmatmul.mubr.f32.gmra.mrb[0].mxu0 %v1357
      %v1431 = vpop.f32.mrb[0].mxu0
      %v1432 = vadd.f32 0.0, %v1431
      %v1433 = vpop.f32.mrb[0].mxu0
      %1434 = vmatprep.mubr.f32.mxu0 0.0
      %1435 = vmatmul.mubr.f32.gmra.mrb[0].mxu0 %v1360
      %v1436 = vpop.f32.mrb[0].mxu0
      %v1437 = vadd.f32 0.0, %v1436
      %v1438 = vpop.f32.mrb[0].mxu0
      %1439 = vmatprep.mubr.f32.mxu0 0.0
      %1440 = vmatmul.mubr.f32.gmra.mrb[0].mxu0 %v1363
      %v1441 = vpop.f32.mrb[0].mxu0
      %v1442 = vadd.f32 0.0, %v1441
      %v1443 = vpop.f32.mrb[0].mxu0
      %1444 = vdwg.mxu0
      %v1445 = vadd.f32 %v337, %v1432
      %v1446 = vadd.f32 %v342, %v1437
      %v1447 = vadd.f32 %v347, %v1442
      %v1448 = vlaneseq
      %v1449 = vshrl.u32 %v1448, 7
      %v1450 = vsub.s32 2, %v1449
      %v1451 = vrot.slane %v508, %v1450
      %v1452 = vadd.f32 %v1445, %v1451
      %v1453 = vadd.f32 %v1446, %v1451
      %v1454 = vadd.f32 %v1447, %v1451
      %v1455 = vsel %vm585, %v1452, 0.0
      %1456 = vadd.xlane.f32.xlu0 %v1455
      %v1457 = vpop.xlane.xlu0 %1456
      %v1458 = vsel %vm585, %v1453, 0.0
      %1459 = vadd.xlane.f32.xlu0 %v1458
      %v1460 = vpop.xlane.xlu0 %1459
      %v1461 = vsel %vm585, %v1454, 0.0
      %1462 = vadd.xlane.f32.xlu0 %v1461
      %v1463 = vpop.xlane.xlu0 %1462
      %v1464 = vmul.f32 %v1457, %v595
      %v1465 = vmul.f32 %v1460, %v595
      %v1466 = vmul.f32 %v1463, %v595
      %v1467 = vsub.f32 %v1452, %v1464
      %v1468 = vsub.f32 %v1453, %v1465
      %v1469 = vsub.f32 %v1454, %v1466
      %v1470 = vmul.f32 %v1467, %v1467
      %v1471 = vmul.f32 %v1468, %v1468
      %v1472 = vmul.f32 %v1469, %v1469
      %v1473 = vsel %vm585, %v1470, 0.0
      %1474 = vadd.xlane.f32.xlu0 %v1473
      %v1475 = vpop.xlane.xlu0 %1474
      %v1476 = vsel %vm585, %v1471, 0.0
      %1477 = vadd.xlane.f32.xlu0 %v1476
      %v1478 = vpop.xlane.xlu0 %1477
      %v1479 = vsel %vm585, %v1472, 0.0
      %1480 = vadd.xlane.f32.xlu0 %v1479
      %v1481 = vpop.xlane.xlu0 %1480
      %v1482 = vmul.f32 %v1475, %v595
      %v1483 = vmul.f32 %v1478, %v595
      %v1484 = vmul.f32 %v1481, %v595
      %v1485 = vadd.f32 %v1482, 1e-06
      %v1486 = vadd.f32 %v1483, 1e-06
      %v1487 = vadd.f32 %v1484, 1e-06
      %v1488 = vrsqrt.pop %v1485
      %v1489 = vrsqrt.pop %v1486
      %v1490 = vrsqrt.pop %v1487
      %v1491 = vmul.f32 %v1467, %v1488
      %v1492 = vmul.f32 %v1468, %v1489
      %v1493 = vmul.f32 %v1469, %v1490
      %v1494 = vlaneseq
      %v1495 = vshrl.u32 %v1494, 7
      %v1496 = vsub.s32 3, %v1495
      %v1497 = vrot.slane %v508, %v1496
      %v1498 = vmul.f32 %v1491, %v1497
      %v1499 = vmul.f32 %v1492, %v1497
      %v1500 = vmul.f32 %v1493, %v1497
      %v1501 = vlaneseq
      %v1502 = vshrl.u32 %v1501, 7
      %v1503 = vsub.s32 4, %v1502
      %v1504 = vrot.slane %v508, %v1503
      %v1505 = vadd.f32 %v1498, %v1504
      %v1506 = vadd.f32 %v1499, %v1504
      %v1507 = vadd.f32 %v1500, %v1504
      %v1509 = vlaneseq
      %v1510 = vshrl.u32 %v1509, 7
      %v1511 = vsub.s32 0, %v1510
      %v1512 = vrot.slane %v584, %v1511
      %v1513 = vlaneseq
      %v1514 = vshrl.u32 %v1513, 7
      %v1515 = vsub.s32 1, %v1514
      %v1516 = vrot.slane %v584, %v1515
      %v1520 = vsel %vm585, %v1505, 0
      %v1523 = vsel %vm585, %v1506, 0
      %v1526 = vsel %vm585, %v1507, 0
      %1528 = vmatprep.subr.mxu0 %v568
      %1529 = vmatpush1.msra.mxu0 %v567
      %1530 = vmatprep.subr.mxu0 %v570
      %1531 = vmatpush1.msra.mxu0 %v569
      %1532 = vmatprep.subr.mxu0 %v572
      %1533 = vmatpush1.msra.mxu0 %v571
      %1534 = vmatprep.subr.mxu0 %v574
      %1535 = vmatpush1.msra.mxu0 %v573
      %1536 = vmatprep.subr.mxu0 %v576
      %1537 = vmatpush1.msra.mxu0 %v575
      %1538 = vmatprep.subr.mxu0 %v578
      %1539 = vmatpush1.msra.mxu0 %v577
      %1540 = vmatprep.subr.mxu0 %v580
      %1541 = vmatpush1.msra.mxu0 %v579
      %1542 = vmatprep.subr.mxu0 %v582
      %1543 = vmatpush1.msra.mxu0 %v581
      %1544 = vmatprep.subr.mxu0 0.0
      %1545 = vmatpush1.msra.mxu0 0.0
      %1546 = vmatprep.subr.mxu0 0.0
      %1547 = vmatpush1.msra.mxu0 0.0
      %1548 = vmatprep.subr.mxu0 0.0
      %1549 = vmatpush1.msra.mxu0 0.0
      %1550 = vmatprep.subr.mxu0 0.0
      %1551 = vmatpush1.msra.mxu0 0.0
      %1552 = vmatprep.subr.mxu0 0.0
      %1553 = vmatpush1.msra.mxu0 0.0
      %1554 = vmatprep.subr.mxu0 0.0
      %1555 = vmatpush1.msra.mxu0 0.0
      %1556 = vmatprep.subr.mxu0 0.0
      %1557 = vmatpush1.msra.mxu0 0.0
      %1558 = vmatprep.subr.mxu0 0.0
      %1559 = vmatpush1.msra.mxu0 0.0
      %1560 = vmatprep.subr.mxu0 0.0
      %1561 = vmatpush1.msra.mxu0 0.0
      %1562 = vmatprep.subr.mxu0 0.0
      %1563 = vmatpush1.msra.mxu0 0.0
      %1564 = vmatprep.subr.mxu0 0.0
      %1565 = vmatpush1.msra.mxu0 0.0
      %1566 = vmatprep.subr.mxu0 0.0
      %1567 = vmatpush1.msra.mxu0 0.0
      %1568 = vmatprep.subr.mxu0 0.0
      %1569 = vmatpush1.msra.mxu0 0.0
      %1570 = vmatprep.subr.mxu0 0.0
      %1571 = vmatpush1.msra.mxu0 0.0
      %1572 = vmatprep.subr.mxu0 0.0
      %1573 = vmatpush1.msra.mxu0 0.0
      %1574 = vmatprep.subr.mxu0 0.0
      %1575 = vmatpush1.msra.mxu0 0.0
      %1576 = vmatprep.subr.mxu0 0.0
      %1577 = vmatpush1.msra.mxu0 0.0
      %1578 = vmatprep.subr.mxu0 0.0
      %1579 = vmatpush1.msra.mxu0 0.0
      %1580 = vmatprep.subr.mxu0 0.0
      %1581 = vmatpush1.msra.mxu0 0.0
      %1582 = vmatprep.subr.mxu0 0.0
      %1583 = vmatpush1.msra.mxu0 0.0
      %1584 = vmatprep.subr.mxu0 0.0
      %1585 = vmatpush1.msra.mxu0 0.0
      %1586 = vmatprep.subr.mxu0 0.0
      %1587 = vmatpush1.msra.mxu0 0.0
      %1588 = vmatprep.subr.mxu0 0.0
      %1589 = vmatpush1.msra.mxu0 0.0
      %1590 = vmatprep.subr.mxu0 0.0
      %1591 = vmatpush1.msra.mxu0 0.0
      %1592 = vmatprep.mubr.f32.mxu0 0.0
      %1593 = vmatmul.mubr.f32.gmra.mrb[0].mxu0 %v1520
      %v1594 = vpop.f32.mrb[0].mxu0
      %v1595 = vadd.f32 %v1512, %v1594
      %v1596 = vpop.f32.mrb[0].mxu0
      %v1597 = vadd.f32 %v1516, %v1596
      %1598 = vmatprep.mubr.f32.mxu0 0.0
      %1599 = vmatmul.mubr.f32.gmra.mrb[0].mxu0 %v1523
      %v1600 = vpop.f32.mrb[0].mxu0
      %v1601 = vadd.f32 %v1512, %v1600
      %v1602 = vpop.f32.mrb[0].mxu0
      %v1603 = vadd.f32 %v1516, %v1602
      %1604 = vmatprep.mubr.f32.mxu0 0.0
      %1605 = vmatmul.mubr.f32.gmra.mrb[0].mxu0 %v1526
      %v1606 = vpop.f32.mrb[0].mxu0
      %v1607 = vadd.f32 %v1512, %v1606
      %v1608 = vpop.f32.mrb[0].mxu0
      %v1609 = vadd.f32 %v1516, %v1608
      %1610 = vdwg.mxu0
      %v1611 = vmul.f32 %v1595, 0.5
      %v1612 = vmul.f32 %v1597, 0.5
      %v1613 = vmul.f32 %v1601, 0.5
      %v1614 = vmul.f32 %v1603, 0.5
      %v1615 = vmul.f32 %v1607, 0.5
      %v1616 = vmul.f32 %v1609, 0.5
      %v1617 = vmul.f32 %v1595, 0.70710677
      %v1618 = vmul.f32 %v1597, 0.70710677
      %v1619 = vmul.f32 %v1601, 0.70710677
      %v1620 = vmul.f32 %v1603, 0.70710677
      %v1621 = vmul.f32 %v1607, 0.70710677
      %v1622 = vmul.f32 %v1609, 0.70710677
      %v1623 = vmax.f32 %v1617, -4.0
      %v1624 = vmax.f32 %v1618, -4.0
      %v1625 = vmax.f32 %v1619, -4.0
      %v1626 = vmax.f32 %v1620, -4.0
      %v1627 = vmax.f32 %v1621, -4.0
      %v1628 = vmax.f32 %v1622, -4.0
      %v1629 = vmin.f32 %v1623, 4.0
      %v1630 = vmin.f32 %v1624, 4.0
      %v1631 = vmin.f32 %v1625, 4.0
      %v1632 = vmin.f32 %v1626, 4.0
      %v1633 = vmin.f32 %v1627, 4.0
      %v1634 = vmin.f32 %v1628, 4.0
      %v1635 = vmul.f32 %v1629, %v1629
      %v1636 = vmul.f32 %v1630, %v1630
      %v1637 = vmul.f32 %v1631, %v1631
      %v1638 = vmul.f32 %v1632, %v1632
      %v1639 = vmul.f32 %v1633, %v1633
      %v1640 = vmul.f32 %v1634, %v1634
      %v1641 = vmul.f32 %v1635, -2.7261424e-10
      %v1642 = vmul.f32 %v1636, -2.7261424e-10
      %v1643 = vmul.f32 %v1637, -2.7261424e-10
      %v1644 = vmul.f32 %v1638, -2.7261424e-10
      %v1645 = vmul.f32 %v1639, -2.7261424e-10
      %v1646 = vmul.f32 %v1640, -2.7261424e-10
      %v1647 = vadd.f32 %v1641, 2.7706815e-08
      %v1648 = vadd.f32 %v1642, 2.7706815e-08
      %v1649 = vadd.f32 %v1643, 2.7706815e-08
      %v1650 = vadd.f32 %v1644, 2.7706815e-08
      %v1651 = vadd.f32 %v1645, 2.7706815e-08
      %v1652 = vadd.f32 %v1646, 2.7706815e-08
      %v1653 = vmul.f32 %v1647, %v1635
      %v1654 = vmul.f32 %v1648, %v1636
      %v1655 = vmul.f32 %v1649, %v1637
      %v1656 = vmul.f32 %v1650, %v1638
      %v1657 = vmul.f32 %v1651, %v1639
      %v1658 = vmul.f32 %v1652, %v1640
      %v1659 = vadd.f32 %v1653, -2.101024e-06
      %v1660 = vadd.f32 %v1654, -2.101024e-06
      %v1661 = vadd.f32 %v1655, -2.101024e-06
      %v1662 = vadd.f32 %v1656, -2.101024e-06
      %v1663 = vadd.f32 %v1657, -2.101024e-06
      %v1664 = vadd.f32 %v1658, -2.101024e-06
      %v1665 = vmul.f32 %v1659, %v1635
      %v1666 = vmul.f32 %v1660, %v1636
      %v1667 = vmul.f32 %v1661, %v1637
      %v1668 = vmul.f32 %v1662, %v1638
      %v1669 = vmul.f32 %v1663, %v1639
      %v1670 = vmul.f32 %v1664, %v1640
      %v1671 = vadd.f32 %v1665, -5.6925062e-05
      %v1672 = vadd.f32 %v1666, -5.6925062e-05
      %v1673 = vadd.f32 %v1667, -5.6925062e-05
      %v1674 = vadd.f32 %v1668, -5.6925062e-05
      %v1675 = vadd.f32 %v1669, -5.6925062e-05
      %v1676 = vadd.f32 %v1670, -5.6925062e-05
      %v1677 = vmul.f32 %v1671, %v1635
      %v1678 = vmul.f32 %v1672, %v1636
      %v1679 = vmul.f32 %v1673, %v1637
      %v1680 = vmul.f32 %v1674, %v1638
      %v1681 = vmul.f32 %v1675, %v1639
      %v1682 = vmul.f32 %v1676, %v1640
      %v1683 = vadd.f32 %v1677, -0.00073499064
      %v1684 = vadd.f32 %v1678, -0.00073499064
      %v1685 = vadd.f32 %v1679, -0.00073499064
      %v1686 = vadd.f32 %v1680, -0.00073499064
      %v1687 = vadd.f32 %v1681, -0.00073499064
      %v1688 = vadd.f32 %v1682, -0.00073499064
      %v1689 = vmul.f32 %v1683, %v1635
      %v1690 = vmul.f32 %v1684, %v1636
      %v1691 = vmul.f32 %v1685, %v1637
      %v1692 = vmul.f32 %v1686, %v1638
      %v1693 = vmul.f32 %v1687, %v1639
      %v1694 = vmul.f32 %v1688, %v1640
      %v1695 = vadd.f32 %v1689, -0.0029546
      %v1696 = vadd.f32 %v1690, -0.0029546
      %v1697 = vadd.f32 %v1691, -0.0029546
      %v1698 = vadd.f32 %v1692, -0.0029546
      %v1699 = vadd.f32 %v1693, -0.0029546
      %v1700 = vadd.f32 %v1694, -0.0029546
      %v1701 = vmul.f32 %v1695, %v1635
      %v1702 = vmul.f32 %v1696, %v1636
      %v1703 = vmul.f32 %v1697, %v1637
      %v1704 = vmul.f32 %v1698, %v1638
      %v1705 = vmul.f32 %v1699, %v1639
      %v1706 = vmul.f32 %v1700, %v1640
      %v1707 = vadd.f32 %v1701, -0.016096033
      %v1708 = vadd.f32 %v1702, -0.016096033
      %v1709 = vadd.f32 %v1703, -0.016096033
      %v1710 = vadd.f32 %v1704, -0.016096033
      %v1711 = vadd.f32 %v1705, -0.016096033
      %v1712 = vadd.f32 %v1706, -0.016096033
      %v1713 = vmul.f32 %v1635, -1.45660715e-05
      %v1714 = vmul.f32 %v1636, -1.45660715e-05
      %v1715 = vmul.f32 %v1637, -1.45660715e-05
      %v1716 = vmul.f32 %v1638, -1.45660715e-05
      %v1717 = vmul.f32 %v1639, -1.45660715e-05
      %v1718 = vmul.f32 %v1640, -1.45660715e-05
      %v1719 = vadd.f32 %v1713, -0.00021337405
      %v1720 = vadd.f32 %v1714, -0.00021337405
      %v1721 = vadd.f32 %v1715, -0.00021337405
      %v1722 = vadd.f32 %v1716, -0.00021337405
      %v1723 = vadd.f32 %v1717, -0.00021337405
      %v1724 = vadd.f32 %v1718, -0.00021337405
      %v1725 = vmul.f32 %v1719, %v1635
      %v1726 = vmul.f32 %v1720, %v1636
      %v1727 = vmul.f32 %v1721, %v1637
      %v1728 = vmul.f32 %v1722, %v1638
      %v1729 = vmul.f32 %v1723, %v1639
      %v1730 = vmul.f32 %v1724, %v1640
      %v1731 = vadd.f32 %v1725, -0.001682827
      %v1732 = vadd.f32 %v1726, -0.001682827
      %v1733 = vadd.f32 %v1727, -0.001682827
      %v1734 = vadd.f32 %v1728, -0.001682827
      %v1735 = vadd.f32 %v1729, -0.001682827
      %v1736 = vadd.f32 %v1730, -0.001682827
      %v1737 = vmul.f32 %v1731, %v1635
      %v1738 = vmul.f32 %v1732, %v1636
      %v1739 = vmul.f32 %v1733, %v1637
      %v1740 = vmul.f32 %v1734, %v1638
      %v1741 = vmul.f32 %v1735, %v1639
      %v1742 = vmul.f32 %v1736, %v1640
      %v1743 = vadd.f32 %v1737, -0.0073733293
      %v1744 = vadd.f32 %v1738, -0.0073733293
      %v1745 = vadd.f32 %v1739, -0.0073733293
      %v1746 = vadd.f32 %v1740, -0.0073733293
      %v1747 = vadd.f32 %v1741, -0.0073733293
      %v1748 = vadd.f32 %v1742, -0.0073733293
      %v1749 = vmul.f32 %v1743, %v1635
      %v1750 = vmul.f32 %v1744, %v1636
      %v1751 = vmul.f32 %v1745, %v1637
      %v1752 = vmul.f32 %v1746, %v1638
      %v1753 = vmul.f32 %v1747, %v1639
      %v1754 = vmul.f32 %v1748, %v1640
      %v1755 = vadd.f32 %v1749, -0.014264739
      %v1756 = vadd.f32 %v1750, -0.014264739
      %v1757 = vadd.f32 %v1751, -0.014264739
      %v1758 = vadd.f32 %v1752, -0.014264739
      %v1759 = vadd.f32 %v1753, -0.014264739
      %v1760 = vadd.f32 %v1754, -0.014264739
      %v1761 = vmul.f32 %v1629, %v1707
      %v1762 = vmul.f32 %v1630, %v1708
      %v1763 = vmul.f32 %v1631, %v1709
      %v1764 = vmul.f32 %v1632, %v1710
      %v1765 = vmul.f32 %v1633, %v1711
      %v1766 = vmul.f32 %v1634, %v1712
      %v1767 = vrcp.pop %v1755
      %v1768 = vrcp.pop %v1756
      %v1769 = vrcp.pop %v1757
      %v1770 = vrcp.pop %v1758
      %v1771 = vrcp.pop %v1759
      %v1772 = vrcp.pop %v1760
      %v1773 = vmul.f32 %v1761, %v1767
      %v1774 = vmul.f32 %v1762, %v1768
      %v1775 = vmul.f32 %v1763, %v1769
      %v1776 = vmul.f32 %v1764, %v1770
      %v1777 = vmul.f32 %v1765, %v1771
      %v1778 = vmul.f32 %v1766, %v1772
      %v1779 = vadd.f32 %v1773, 1.0
      %v1780 = vadd.f32 %v1774, 1.0
      %v1781 = vadd.f32 %v1775, 1.0
      %v1782 = vadd.f32 %v1776, 1.0
      %v1783 = vadd.f32 %v1777, 1.0
      %v1784 = vadd.f32 %v1778, 1.0
      %v1785 = vmul.f32 %v1611, %v1779
      %v1786 = vmul.f32 %v1612, %v1780
      %v1787 = vmul.f32 %v1613, %v1781
      %v1788 = vmul.f32 %v1614, %v1782
      %v1789 = vmul.f32 %v1615, %v1783
      %v1790 = vmul.f32 %v1616, %v1784
      %1791 = vmatprep.subr.mxu0 0.0
      %1792 = vmatpush1.msra.mxu0 %v517
      %1793 = vmatprep.subr.mxu0 0.0
      %1794 = vmatpush1.msra.mxu0 %v518
      %1795 = vmatprep.subr.mxu0 0.0
      %1796 = vmatpush1.msra.mxu0 %v519
      %1797 = vmatprep.subr.mxu0 0.0
      %1798 = vmatpush1.msra.mxu0 %v520
      %1799 = vmatprep.subr.mxu0 0.0
      %1800 = vmatpush1.msra.mxu0 %v521
      %1801 = vmatprep.subr.mxu0 0.0
      %1802 = vmatpush1.msra.mxu0 %v522
      %1803 = vmatprep.subr.mxu0 0.0
      %1804 = vmatpush1.msra.mxu0 %v523
      %1805 = vmatprep.subr.mxu0 0.0
      %1806 = vmatpush1.msra.mxu0 %v524
      %1807 = vmatprep.subr.mxu0 0.0
      %1808 = vmatpush1.msra.mxu0 %v525
      %1809 = vmatprep.subr.mxu0 0.0
      %1810 = vmatpush1.msra.mxu0 %v526
      %1811 = vmatprep.subr.mxu0 0.0
      %1812 = vmatpush1.msra.mxu0 %v527
      %1813 = vmatprep.subr.mxu0 0.0
      %1814 = vmatpush1.msra.mxu0 %v528
      %1815 = vmatprep.subr.mxu0 0.0
      %1816 = vmatpush1.msra.mxu0 %v529
      %1817 = vmatprep.subr.mxu0 0.0
      %1818 = vmatpush1.msra.mxu0 %v530
      %1819 = vmatprep.subr.mxu0 0.0
      %1820 = vmatpush1.msra.mxu0 %v531
      %1821 = vmatprep.subr.mxu0 0.0
      %1822 = vmatpush1.msra.mxu0 %v532
      %1823 = vmatprep.subr.mxu0 0.0
      %1824 = vmatpush1.msra.mxu0 %v533
      %1825 = vmatprep.subr.mxu0 0.0
      %1826 = vmatpush1.msra.mxu0 %v534
      %1827 = vmatprep.subr.mxu0 0.0
      %1828 = vmatpush1.msra.mxu0 %v535
      %1829 = vmatprep.subr.mxu0 0.0
      %1830 = vmatpush1.msra.mxu0 %v536
      %1831 = vmatprep.subr.mxu0 0.0
      %1832 = vmatpush1.msra.mxu0 %v537
      %1833 = vmatprep.subr.mxu0 0.0
      %1834 = vmatpush1.msra.mxu0 %v538
      %1835 = vmatprep.subr.mxu0 0.0
      %1836 = vmatpush1.msra.mxu0 %v539
      %1837 = vmatprep.subr.mxu0 0.0
      %1838 = vmatpush1.msra.mxu0 %v540
      %1839 = vmatprep.subr.mxu0 0.0
      %1840 = vmatpush1.msra.mxu0 %v541
      %1841 = vmatprep.subr.mxu0 0.0
      %1842 = vmatpush1.msra.mxu0 %v542
      %1843 = vmatprep.subr.mxu0 0.0
      %1844 = vmatpush1.msra.mxu0 %v543
      %1845 = vmatprep.subr.mxu0 0.0
      %1846 = vmatpush1.msra.mxu0 %v544
      %1847 = vmatprep.subr.mxu0 0.0
      %1848 = vmatpush1.msra.mxu0 %v545
      %1849 = vmatprep.subr.mxu0 0.0
      %1850 = vmatpush1.msra.mxu0 %v546
      %1851 = vmatprep.subr.mxu0 0.0
      %1852 = vmatpush1.msra.mxu0 %v547
      %1853 = vmatprep.subr.mxu0 0.0
      %1854 = vmatpush1.msra.mxu0 %v548
      %1855 = vmatprep.mubr.f32.mxu0 %v1786
      %1856 = vmatmul.mubr.f32.gmra.mrb[0].mxu0 %v1785
      %v1857 = vpop.f32.mrb[0].mxu0
      %v1858 = vadd.f32 0.0, %v1857
      %v1859 = vpop.f32.mrb[0].mxu0
      %1860 = vmatprep.mubr.f32.mxu0 %v1788
      %1861 = vmatmul.mubr.f32.gmra.mrb[0].mxu0 %v1787
      %v1862 = vpop.f32.mrb[0].mxu0
      %v1863 = vadd.f32 0.0, %v1862
      %v1864 = vpop.f32.mrb[0].mxu0
      %1865 = vmatprep.mubr.f32.mxu0 %v1790
      %1866 = vmatmul.mubr.f32.gmra.mrb[0].mxu0 %v1789
      %v1867 = vpop.f32.mrb[0].mxu0
      %v1868 = vadd.f32 0.0, %v1867
      %v1869 = vpop.f32.mrb[0].mxu0
      %1870 = vdwg.mxu0
      %v1871 = vadd.f32 %v1452, %v1858
      %v1872 = vadd.f32 %v1453, %v1863
      %v1873 = vadd.f32 %v1454, %v1868
      %v1874 = vlaneseq
      %v1875 = vshrl.u32 %v1874, 7
      %v1876 = vsub.s32 5, %v1875
      %v1877 = vrot.slane %v508, %v1876
      %v1878 = vadd.f32 %v1871, %v1877
      %v1879 = vadd.f32 %v1872, %v1877
      %v1880 = vadd.f32 %v1873, %v1877
      %s1881 = scalar_lea.vmem %s4, 328
      %v1882 = vld [vmem:[%s1881] sm:$0xff]
      %v1883 = vld [vmem:[%s1881 + $0x8] sm:$0xff]
      %v1884 = vld [vmem:[%s1881 + $0x10] sm:$0xff]
      %v1885 = vld [vmem:[%s1881 + $0x18] sm:$0xff]
      %v1886 = vld [vmem:[%s1881 + $0x20] sm:$0xff]
      %v1887 = vld [vmem:[%s1881 + $0x28] sm:$0xff]
      %v1888 = vld [vmem:[%s1881 + $0x30] sm:$0xff]
      %v1889 = vld [vmem:[%s1881 + $0x38] sm:$0xff]
      %v1890 = vld [vmem:[%s1881 + $0x40] sm:$0xff]
      %v1891 = vld [vmem:[%s1881 + $0x48] sm:$0xff]
      %v1892 = vld [vmem:[%s1881 + $0x50] sm:$0xff]
      %v1893 = vld [vmem:[%s1881 + $0x58] sm:$0xff]
      %v1894 = vld [vmem:[%s1881 + $0x60] sm:$0xff]
      %v1895 = vld [vmem:[%s1881 + $0x68] sm:$0xff]
      %v1896 = vld [vmem:[%s1881 + $0x70] sm:$0xff]
      %v1897 = vld [vmem:[%s1881 + $0x78] sm:$0xff]
      %v1898 = vld [vmem:[%s1881 + $0x80] sm:$0xff]
      %v1899 = vld [vmem:[%s1881 + $0x88] sm:$0xff]
      %v1900 = vld [vmem:[%s1881 + $0x90] sm:$0xff]
      %v1901 = vld [vmem:[%s1881 + $0x98] sm:$0xff]
      %v1902 = vld [vmem:[%s1881 + $0xa0] sm:$0xff]
      %v1903 = vld [vmem:[%s1881 + $0xa8] sm:$0xff]
      %v1904 = vld [vmem:[%s1881 + $0xb0] sm:$0xff]
      %v1905 = vld [vmem:[%s1881 + $0xb8] sm:$0xff]
      %v1906 = vld [vmem:[%s1881 + $0xc0] sm:$0xff]
      %v1907 = vld [vmem:[%s1881 + $0xc8] sm:$0xff]
      %v1908 = vld [vmem:[%s1881 + $0xd0] sm:$0xff]
      %v1909 = vld [vmem:[%s1881 + $0xd8] sm:$0xff]
      %v1910 = vld [vmem:[%s1881 + $0xe0] sm:$0xff]
      %v1911 = vld [vmem:[%s1881 + $0xe8] sm:$0xff]
      %v1912 = vld [vmem:[%s1881 + $0xf0] sm:$0xff]
      %v1913 = vld [vmem:[%s1881 + $0xf8] sm:$0xff]
      %v1914 = vld [vmem:[%s1881 + $0x100] sm:$0xff]
      %v1915 = vld [vmem:[%s1881 + $0x108] sm:$0xff]
      %v1916 = vld [vmem:[%s1881 + $0x110] sm:$0xff]
      %v1917 = vld [vmem:[%s1881 + $0x118] sm:$0xff]
      %v1918 = vld [vmem:[%s1881 + $0x120] sm:$0xff]
      %v1919 = vld [vmem:[%s1881 + $0x128] sm:$0xff]
      %v1920 = vld [vmem:[%s1881 + $0x130] sm:$0xff]
      %v1921 = vld [vmem:[%s1881 + $0x138] sm:$0xff]
      %v1922 = vld [vmem:[%s1881 + $0x140] sm:$0xff]
      %s1923 = scalar_lea.vmem %s2, 144
      %v1924 = vld [vmem:[%s1923] sm:$0xff]
      %v1925 = vld [vmem:[%s1923 + $0x8] sm:$0xff]
      %v1926 = vld [vmem:[%s1923 + $0x10] sm:$0xff]
      %v1927 = vld [vmem:[%s1923 + $0x18] sm:$0xff]
      %v1928 = vld [vmem:[%s1923 + $0x20] sm:$0xff]
      %v1929 = vld [vmem:[%s1923 + $0x28] sm:$0xff]
      %v1930 = vld [vmem:[%s1923 + $0x30] sm:$0xff]
      %v1931 = vld [vmem:[%s1923 + $0x38] sm:$0xff]
      %v1932 = vld [vmem:[%s1923 + $0x40] sm:$0xff]
      %v1933 = vld [vmem:[%s1923 + $0x48] sm:$0xff]
      %v1934 = vld [vmem:[%s1923 + $0x50] sm:$0xff]
      %v1935 = vld [vmem:[%s1923 + $0x58] sm:$0xff]
      %v1936 = vld [vmem:[%s1923 + $0x60] sm:$0xff]
      %v1937 = vld [vmem:[%s1923 + $0x68] sm:$0xff]
      %v1938 = vld [vmem:[%s1923 + $0x70] sm:$0xff]
      %v1939 = vld [vmem:[%s1923 + $0x78] sm:$0xff]
      %s1940 = scalar_lea.vmem %s1923, 128
      %v1941 = vld [vmem:[%s1940] ss:$8 sm:$0x3]
      %s1942 = scalar_lea.vmem %s3, 144
      %v1943 = vld [vmem:[%s1942] sm:$0xff]
      %v1944 = vld [vmem:[%s1942 + $0x8] sm:$0xff]
      %v1945 = vld [vmem:[%s1942 + $0x10] sm:$0xff]
      %v1946 = vld [vmem:[%s1942 + $0x18] sm:$0xff]
      %v1947 = vld [vmem:[%s1942 + $0x20] sm:$0xff]
      %v1948 = vld [vmem:[%s1942 + $0x28] sm:$0xff]
      %v1949 = vld [vmem:[%s1942 + $0x30] sm:$0xff]
      %v1950 = vld [vmem:[%s1942 + $0x38] sm:$0xff]
      %v1951 = vld [vmem:[%s1942 + $0x40] sm:$0xff]
      %v1952 = vld [vmem:[%s1942 + $0x48] sm:$0xff]
      %v1953 = vld [vmem:[%s1942 + $0x50] sm:$0xff]
      %v1954 = vld [vmem:[%s1942 + $0x58] sm:$0xff]
      %v1955 = vld [vmem:[%s1942 + $0x60] sm:$0xff]
      %v1956 = vld [vmem:[%s1942 + $0x68] sm:$0xff]
      %v1957 = vld [vmem:[%s1942 + $0x70] sm:$0xff]
      %v1958 = vld [vmem:[%s1942 + $0x78] sm:$0xff]
      %s1959 = scalar_lea.vmem %s1942, 128
      %v1960 = vld [vmem:[%s1959] ss:$8 sm:$0x3]
      %v1961 = vsel %vm585, %v1878, 0.0
      %1962 = vadd.xlane.f32.xlu0 %v1961
      %v1963 = vpop.xlane.xlu0 %1962
      %v1964 = vsel %vm585, %v1879, 0.0
      %1965 = vadd.xlane.f32.xlu0 %v1964
      %v1966 = vpop.xlane.xlu0 %1965
      %v1967 = vsel %vm585, %v1880, 0.0
      %1968 = vadd.xlane.f32.xlu0 %v1967
      %v1969 = vpop.xlane.xlu0 %1968
      %v1970 = vmul.f32 %v1963, %v595
      %v1971 = vmul.f32 %v1966, %v595
      %v1972 = vmul.f32 %v1969, %v595
      %v1973 = vsub.f32 %v1878, %v1970
      %v1974 = vsub.f32 %v1879, %v1971
      %v1975 = vsub.f32 %v1880, %v1972
      %v1976 = vmul.f32 %v1973, %v1973
      %v1977 = vmul.f32 %v1974, %v1974
      %v1978 = vmul.f32 %v1975, %v1975
      %v1979 = vsel %vm585, %v1976, 0.0
      %1980 = vadd.xlane.f32.xlu0 %v1979
      %v1981 = vpop.xlane.xlu0 %1980
      %v1982 = vsel %vm585, %v1977, 0.0
      %1983 = vadd.xlane.f32.xlu0 %v1982
      %v1984 = vpop.xlane.xlu0 %1983
      %v1985 = vsel %vm585, %v1978, 0.0
      %1986 = vadd.xlane.f32.xlu0 %v1985
      %v1987 = vpop.xlane.xlu0 %1986
      %v1988 = vmul.f32 %v1981, %v595
      %v1989 = vmul.f32 %v1984, %v595
      %v1990 = vmul.f32 %v1987, %v595
      %v1991 = vadd.f32 %v1988, 1e-06
      %v1992 = vadd.f32 %v1989, 1e-06
      %v1993 = vadd.f32 %v1990, 1e-06
      %v1994 = vrsqrt.pop %v1991
      %v1995 = vrsqrt.pop %v1992
      %v1996 = vrsqrt.pop %v1993
      %v1997 = vmul.f32 %v1973, %v1994
      %v1998 = vmul.f32 %v1974, %v1995
      %v1999 = vmul.f32 %v1975, %v1996
      %v2000 = vlaneseq
      %v2001 = vshrl.u32 %v2000, 7
      %v2002 = vsub.s32 0, %v2001
      %v2003 = vrot.slane %v1882, %v2002
      %v2004 = vmul.f32 %v1997, %v2003
      %v2005 = vmul.f32 %v1998, %v2003
      %v2006 = vmul.f32 %v1999, %v2003
      %v2007 = vlaneseq
      %v2008 = vshrl.u32 %v2007, 7
      %v2009 = vsub.s32 1, %v2008
      %v2010 = vrot.slane %v1882, %v2009
      %v2011 = vadd.f32 %v2004, %v2010
      %v2012 = vadd.f32 %v2005, %v2010
      %v2013 = vadd.f32 %v2006, %v2010
      %v2015 = vlaneseq
      %v2016 = vshrl.u32 %v2015, 7
      %v2017 = vsub.s32 0, %v2016
      %v2018 = vrot.slane %v1941, %v2017
      %v2019 = vlaneseq
      %v2020 = vshrl.u32 %v2019, 7
      %v2021 = vsub.s32 1, %v2020
      %v2022 = vrot.slane %v1941, %v2021
      %v2026 = vsel %vm585, %v2011, 0
      %v2029 = vsel %vm585, %v2012, 0
      %v2032 = vsel %vm585, %v2013, 0
      %2034 = vmatprep.subr.mxu0 %v1925
      %2035 = vmatpush1.msra.mxu0 %v1924
      %2036 = vmatprep.subr.mxu0 %v1927
      %2037 = vmatpush1.msra.mxu0 %v1926
      %2038 = vmatprep.subr.mxu0 %v1929
      %2039 = vmatpush1.msra.mxu0 %v1928
      %2040 = vmatprep.subr.mxu0 %v1931
      %2041 = vmatpush1.msra.mxu0 %v1930
      %2042 = vmatprep.subr.mxu0 %v1933
      %2043 = vmatpush1.msra.mxu0 %v1932
      %2044 = vmatprep.subr.mxu0 %v1935
      %2045 = vmatpush1.msra.mxu0 %v1934
      %2046 = vmatprep.subr.mxu0 %v1937
      %2047 = vmatpush1.msra.mxu0 %v1936
      %2048 = vmatprep.subr.mxu0 %v1939
      %2049 = vmatpush1.msra.mxu0 %v1938
      %2050 = vmatprep.subr.mxu0 0.0
      %2051 = vmatpush1.msra.mxu0 0.0
      %2052 = vmatprep.subr.mxu0 0.0
      %2053 = vmatpush1.msra.mxu0 0.0
      %2054 = vmatprep.subr.mxu0 0.0
      %2055 = vmatpush1.msra.mxu0 0.0
      %2056 = vmatprep.subr.mxu0 0.0
      %2057 = vmatpush1.msra.mxu0 0.0
      %2058 = vmatprep.subr.mxu0 0.0
      %2059 = vmatpush1.msra.mxu0 0.0
      %2060 = vmatprep.subr.mxu0 0.0
      %2061 = vmatpush1.msra.mxu0 0.0
      %2062 = vmatprep.subr.mxu0 0.0
      %2063 = vmatpush1.msra.mxu0 0.0
      %2064 = vmatprep.subr.mxu0 0.0
      %2065 = vmatpush1.msra.mxu0 0.0
      %2066 = vmatprep.subr.mxu0 0.0
      %2067 = vmatpush1.msra.mxu0 0.0
      %2068 = vmatprep.subr.mxu0 0.0
      %2069 = vmatpush1.msra.mxu0 0.0
      %2070 = vmatprep.subr.mxu0 0.0
      %2071 = vmatpush1.msra.mxu0 0.0
      %2072 = vmatprep.subr.mxu0 0.0
      %2073 = vmatpush1.msra.mxu0 0.0
      %2074 = vmatprep.subr.mxu0 0.0
      %2075 = vmatpush1.msra.mxu0 0.0
      %2076 = vmatprep.subr.mxu0 0.0
      %2077 = vmatpush1.msra.mxu0 0.0
      %2078 = vmatprep.subr.mxu0 0.0
      %2079 = vmatpush1.msra.mxu0 0.0
      %2080 = vmatprep.subr.mxu0 0.0
      %2081 = vmatpush1.msra.mxu0 0.0
      %2082 = vmatprep.subr.mxu0 0.0
      %2083 = vmatpush1.msra.mxu0 0.0
      %2084 = vmatprep.subr.mxu0 0.0
      %2085 = vmatpush1.msra.mxu0 0.0
      %2086 = vmatprep.subr.mxu0 0.0
      %2087 = vmatpush1.msra.mxu0 0.0
      %2088 = vmatprep.subr.mxu0 0.0
      %2089 = vmatpush1.msra.mxu0 0.0
      %2090 = vmatprep.subr.mxu0 0.0
      %2091 = vmatpush1.msra.mxu0 0.0
      %2092 = vmatprep.subr.mxu0 0.0
      %2093 = vmatpush1.msra.mxu0 0.0
      %2094 = vmatprep.subr.mxu0 0.0
      %2095 = vmatpush1.msra.mxu0 0.0
      %2096 = vmatprep.subr.mxu0 0.0
      %2097 = vmatpush1.msra.mxu0 0.0
      %2098 = vmatprep.mubr.f32.mxu0 0.0
      %2099 = vmatmul.mubr.f32.gmra.mrb[0].mxu0 %v2026
      %v2100 = vpop.f32.mrb[0].mxu0
      %v2101 = vadd.f32 %v2018, %v2100
      %v2102 = vpop.f32.mrb[0].mxu0
      %v2103 = vadd.f32 %v2022, %v2102
      %2104 = vmatprep.mubr.f32.mxu0 0.0
      %2105 = vmatmul.mubr.f32.gmra.mrb[0].mxu0 %v2029
      %v2106 = vpop.f32.mrb[0].mxu0
      %v2107 = vadd.f32 %v2018, %v2106
      %v2108 = vpop.f32.mrb[0].mxu0
      %v2109 = vadd.f32 %v2022, %v2108
      %2110 = vmatprep.mubr.f32.mxu0 0.0
      %2111 = vmatmul.mubr.f32.gmra.mrb[0].mxu0 %v2032
      %v2112 = vpop.f32.mrb[0].mxu0
      %v2113 = vadd.f32 %v2018, %v2112
      %v2114 = vpop.f32.mrb[0].mxu0
      %v2115 = vadd.f32 %v2022, %v2114
      %2116 = vdwg.mxu0
      %2120 = vrot.lane.b32.xlu0 %v2101, 112
      %v2121 = vpop.permute.xlu0 %2120
      %2122 = vrot.lane.b32.xlu0 %v2107, 112
      %v2123 = vpop.permute.xlu0 %2122
      %2124 = vrot.lane.b32.xlu0 %v2113, 112
      %v2125 = vpop.permute.xlu0 %2124
      %2126 = vrot.lane.b32.xlu0 %v2101, 96
      %v2127 = vpop.permute.xlu0 %2126
      %2128 = vrot.lane.b32.xlu0 %v2107, 96
      %v2129 = vpop.permute.xlu0 %2128
      %2130 = vrot.lane.b32.xlu0 %v2113, 96
      %v2131 = vpop.permute.xlu0 %2130
      %2132 = vrot.lane.b32.xlu0 %v2101, 80
      %v2133 = vpop.permute.xlu0 %2132
      %2134 = vrot.lane.b32.xlu0 %v2107, 80
      %v2135 = vpop.permute.xlu0 %2134
      %2136 = vrot.lane.b32.xlu0 %v2113, 80
      %v2137 = vpop.permute.xlu0 %2136
      %2141 = vrot.lane.b32.xlu0 %v2103, 112
      %v2142 = vpop.permute.xlu0 %2141
      %2143 = vrot.lane.b32.xlu0 %v2109, 112
      %v2144 = vpop.permute.xlu0 %2143
      %2145 = vrot.lane.b32.xlu0 %v2115, 112
      %v2146 = vpop.permute.xlu0 %2145
      %2150 = vrot.lane.b32.xlu0 %v2103, 96
      %v2151 = vpop.permute.xlu0 %2150
      %2152 = vrot.lane.b32.xlu0 %v2109, 96
      %v2153 = vpop.permute.xlu0 %2152
      %2154 = vrot.lane.b32.xlu0 %v2115, 96
      %v2155 = vpop.permute.xlu0 %2154
      %2159 = vrot.lane.b32.xlu0 %v2103, 80
      %v2160 = vpop.permute.xlu0 %2159
      %2161 = vrot.lane.b32.xlu0 %v2109, 80
      %v2162 = vpop.permute.xlu0 %2161
      %2163 = vrot.lane.b32.xlu0 %v2115, 80
      %v2164 = vpop.permute.xlu0 %2163
      %2168 = vrot.lane.b32.xlu0 %v2101, 64
      %v2169 = vpop.permute.xlu0 %2168
      %2170 = vrot.lane.b32.xlu0 %v2107, 64
      %v2171 = vpop.permute.xlu0 %2170
      %2172 = vrot.lane.b32.xlu0 %v2113, 64
      %v2173 = vpop.permute.xlu0 %2172
      %2174 = vrot.lane.b32.xlu0 %v2121, 64
      %v2175 = vpop.permute.xlu0 %2174
      %2176 = vrot.lane.b32.xlu0 %v2123, 64
      %v2177 = vpop.permute.xlu0 %2176
      %2178 = vrot.lane.b32.xlu0 %v2125, 64
      %v2179 = vpop.permute.xlu0 %2178
      %2180 = vrot.lane.b32.xlu0 %v2127, 64
      %v2181 = vpop.permute.xlu0 %2180
      %2182 = vrot.lane.b32.xlu0 %v2129, 64
      %v2183 = vpop.permute.xlu0 %2182
      %2184 = vrot.lane.b32.xlu0 %v2131, 64
      %v2185 = vpop.permute.xlu0 %2184
      %2186 = vrot.lane.b32.xlu0 %v2133, 64
      %v2187 = vpop.permute.xlu0 %2186
      %2188 = vrot.lane.b32.xlu0 %v2135, 64
      %v2189 = vpop.permute.xlu0 %2188
      %2190 = vrot.lane.b32.xlu0 %v2137, 64
      %v2191 = vpop.permute.xlu0 %2190
      %v2192 = vsel %vm818, %v2101, 0
      %v2194 = vsel %vm818, %v2107, 0
      %v2196 = vsel %vm818, %v2113, 0
      %v2198 = vsel %vm818, %v2121, 0
      %v2200 = vsel %vm818, %v2123, 0
      %v2202 = vsel %vm818, %v2125, 0
      %v2204 = vsel %vm818, %v2127, 0
      %v2206 = vsel %vm818, %v2129, 0
      %v2208 = vsel %vm818, %v2131, 0
      %v2210 = vsel %vm818, %v2133, 0
      %v2212 = vsel %vm818, %v2135, 0
      %v2214 = vsel %vm818, %v2137, 0
      %v2216 = vsel %vm818, %v2169, 0
      %v2218 = vsel %vm818, %v2171, 0
      %v2220 = vsel %vm818, %v2173, 0
      %v2222 = vsel %vm818, %v2175, 0
      %v2224 = vsel %vm818, %v2177, 0
      %v2226 = vsel %vm818, %v2179, 0
      %v2228 = vsel %vm818, %v2181, 0
      %v2230 = vsel %vm818, %v2183, 0
      %v2232 = vsel %vm818, %v2185, 0
      %v2234 = vsel %vm818, %v2187, 0
      %v2236 = vsel %vm818, %v2189, 0
      %v2238 = vsel %vm818, %v2191, 0
      %2240 = vmatprep.subr.mxu0 0.0
      %2241 = vmatpush1.xpose.msra.mxu0 %v2216
      %2242 = vmatprep.subr.mxu0 0.0
      %2243 = vmatpush1.xpose.msra.mxu0 %v2218
      %2244 = vmatprep.subr.mxu0 0.0
      %2245 = vmatpush1.xpose.msra.mxu0 %v2220
      %2246 = vmatprep.subr.mxu0 0.0
      %2247 = vmatpush1.xpose.msra.mxu0 %v2222
      %2248 = vmatprep.subr.mxu0 0.0
      %2249 = vmatpush1.xpose.msra.mxu0 %v2224
      %2250 = vmatprep.subr.mxu0 0.0
      %2251 = vmatpush1.xpose.msra.mxu0 %v2226
      %2252 = vmatprep.subr.mxu0 0.0
      %2253 = vmatpush1.xpose.msra.mxu0 %v2228
      %2254 = vmatprep.subr.mxu0 0.0
      %2255 = vmatpush1.xpose.msra.mxu0 %v2230
      %2256 = vmatprep.subr.mxu0 0.0
      %2257 = vmatpush1.xpose.msra.mxu0 %v2232
      %2258 = vmatprep.subr.mxu0 0.0
      %2259 = vmatpush1.xpose.msra.mxu0 %v2234
      %2260 = vmatprep.subr.mxu0 0.0
      %2261 = vmatpush1.xpose.msra.mxu0 %v2236
      %2262 = vmatprep.subr.mxu0 0.0
      %2263 = vmatpush1.xpose.msra.mxu0 %v2238
      %2264 = vmatprep.subr.mxu0 0.0
      %2265 = vmatpush1.xpose.msra.mxu0 0.0
      %2266 = vmatprep.subr.mxu0 0.0
      %2267 = vmatpush1.xpose.msra.mxu0 0.0
      %2268 = vmatprep.subr.mxu0 0.0
      %2269 = vmatpush1.xpose.msra.mxu0 0.0
      %2270 = vmatprep.subr.mxu0 0.0
      %2271 = vmatpush1.xpose.msra.mxu0 0.0
      %2272 = vmatprep.subr.mxu0 0.0
      %2273 = vmatpush1.xpose.msra.mxu0 0.0
      %2274 = vmatprep.subr.mxu0 0.0
      %2275 = vmatpush1.xpose.msra.mxu0 0.0
      %2276 = vmatprep.subr.mxu0 0.0
      %2277 = vmatpush1.xpose.msra.mxu0 0.0
      %2278 = vmatprep.subr.mxu0 0.0
      %2279 = vmatpush1.xpose.msra.mxu0 0.0
      %2280 = vmatprep.subr.mxu0 0.0
      %2281 = vmatpush1.xpose.msra.mxu0 0.0
      %2282 = vmatprep.subr.mxu0 0.0
      %2283 = vmatpush1.xpose.msra.mxu0 0.0
      %2284 = vmatprep.subr.mxu0 0.0
      %2285 = vmatpush1.xpose.msra.mxu0 0.0
      %2286 = vmatprep.subr.mxu0 0.0
      %2287 = vmatpush1.xpose.msra.mxu0 0.0
      %2288 = vmatprep.subr.mxu0 0.0
      %2289 = vmatpush1.xpose.msra.mxu0 0.0
      %2290 = vmatprep.subr.mxu0 0.0
      %2291 = vmatpush1.xpose.msra.mxu0 0.0
      %2292 = vmatprep.subr.mxu0 0.0
      %2293 = vmatpush1.xpose.msra.mxu0 0.0
      %2294 = vmatprep.subr.mxu0 0.0
      %2295 = vmatpush1.xpose.msra.mxu0 0.0
      %2296 = vmatprep.subr.mxu0 0.0
      %2297 = vmatpush1.xpose.msra.mxu0 0.0
      %2298 = vmatprep.subr.mxu0 0.0
      %2299 = vmatpush1.xpose.msra.mxu0 0.0
      %2300 = vmatprep.subr.mxu0 0.0
      %2301 = vmatpush1.xpose.msra.mxu0 0.0
      %2302 = vmatprep.subr.mxu0 0.0
      %2303 = vmatpush1.xpose.msra.mxu0 0.0
      %2304 = vmatprep.mubr.f32.mxu0 0.0
      %2305 = vmatmul.mubr.f32.gmra.mrb[0].mxu0 %v2192
      %v2306 = vpop.f32.mrb[0].mxu0
      %v2307 = vadd.f32 0.0, %v2306
      %v2308 = vpop.f32.mrb[0].mxu0
      %2309 = vmatprep.mubr.f32.mxu0 0.0
      %2310 = vmatmul.mubr.f32.gmra.mrb[0].mxu0 %v2194
      %v2311 = vpop.f32.mrb[0].mxu0
      %v2312 = vadd.f32 0.0, %v2311
      %v2313 = vpop.f32.mrb[0].mxu0
      %2314 = vmatprep.mubr.f32.mxu0 0.0
      %2315 = vmatmul.mubr.f32.gmra.mrb[0].mxu0 %v2196
      %v2316 = vpop.f32.mrb[0].mxu0
      %v2317 = vadd.f32 0.0, %v2316
      %v2318 = vpop.f32.mrb[0].mxu0
      %2319 = vmatprep.mubr.f32.mxu0 0.0
      %2320 = vmatmul.mubr.f32.gmra.mrb[0].mxu0 %v2198
      %v2321 = vpop.f32.mrb[0].mxu0
      %v2322 = vadd.f32 0.0, %v2321
      %v2323 = vpop.f32.mrb[0].mxu0
      %2324 = vmatprep.mubr.f32.mxu0 0.0
      %2325 = vmatmul.mubr.f32.gmra.mrb[0].mxu0 %v2200
      %v2326 = vpop.f32.mrb[0].mxu0
      %v2327 = vadd.f32 0.0, %v2326
      %v2328 = vpop.f32.mrb[0].mxu0
      %2329 = vmatprep.mubr.f32.mxu0 0.0
      %2330 = vmatmul.mubr.f32.gmra.mrb[0].mxu0 %v2202
      %v2331 = vpop.f32.mrb[0].mxu0
      %v2332 = vadd.f32 0.0, %v2331
      %v2333 = vpop.f32.mrb[0].mxu0
      %2334 = vmatprep.mubr.f32.mxu0 0.0
      %2335 = vmatmul.mubr.f32.gmra.mrb[0].mxu0 %v2204
      %v2336 = vpop.f32.mrb[0].mxu0
      %v2337 = vadd.f32 0.0, %v2336
      %v2338 = vpop.f32.mrb[0].mxu0
      %2339 = vmatprep.mubr.f32.mxu0 0.0
      %2340 = vmatmul.mubr.f32.gmra.mrb[0].mxu0 %v2206
      %v2341 = vpop.f32.mrb[0].mxu0
      %v2342 = vadd.f32 0.0, %v2341
      %v2343 = vpop.f32.mrb[0].mxu0
      %2344 = vmatprep.mubr.f32.mxu0 0.0
      %2345 = vmatmul.mubr.f32.gmra.mrb[0].mxu0 %v2208
      %v2346 = vpop.f32.mrb[0].mxu0
      %v2347 = vadd.f32 0.0, %v2346
      %v2348 = vpop.f32.mrb[0].mxu0
      %2349 = vmatprep.mubr.f32.mxu0 0.0
      %2350 = vmatmul.mubr.f32.gmra.mrb[0].mxu0 %v2210
      %v2351 = vpop.f32.mrb[0].mxu0
      %v2352 = vadd.f32 0.0, %v2351
      %v2353 = vpop.f32.mrb[0].mxu0
      %2354 = vmatprep.mubr.f32.mxu0 0.0
      %2355 = vmatmul.mubr.f32.gmra.mrb[0].mxu0 %v2212
      %v2356 = vpop.f32.mrb[0].mxu0
      %v2357 = vadd.f32 0.0, %v2356
      %v2358 = vpop.f32.mrb[0].mxu0
      %2359 = vmatprep.mubr.f32.mxu0 0.0
      %2360 = vmatmul.mubr.f32.gmra.mrb[0].mxu0 %v2214
      %v2361 = vpop.f32.mrb[0].mxu0
      %v2362 = vadd.f32 0.0, %v2361
      %v2363 = vpop.f32.mrb[0].mxu0
      %2364 = vdwg.mxu0
      %v2365 = vmul.f32 %v2307, 0.25
      %v2366 = vmul.f32 %v2312, 0.25
      %v2367 = vmul.f32 %v2317, 0.25
      %v2368 = vmul.f32 %v2322, 0.25
      %v2369 = vmul.f32 %v2327, 0.25
      %v2370 = vmul.f32 %v2332, 0.25
      %v2371 = vmul.f32 %v2337, 0.25
      %v2372 = vmul.f32 %v2342, 0.25
      %v2373 = vmul.f32 %v2347, 0.25
      %v2374 = vmul.f32 %v2352, 0.25
      %v2375 = vmul.f32 %v2357, 0.25
      %v2376 = vmul.f32 %v2362, 0.25
      %v2377 = vadd.f32 %v2365, %v496
      %v2378 = vadd.f32 %v2366, %v497
      %v2379 = vadd.f32 %v2367, %v498
      %v2380 = vadd.f32 %v2368, %v499
      %v2381 = vadd.f32 %v2369, %v500
      %v2382 = vadd.f32 %v2370, %v501
      %v2383 = vadd.f32 %v2371, %v502
      %v2384 = vadd.f32 %v2372, %v503
      %v2385 = vadd.f32 %v2373, %v504
      %v2386 = vadd.f32 %v2374, %v505
      %v2387 = vadd.f32 %v2375, %v506
      %v2388 = vadd.f32 %v2376, %v507
      %v2389 = vsel %vm1016, %v2377, -inf
      %2390 = vmax.xlane.f32.xlu0 %v2389
      %v2391 = vpop.xlane.xlu0 %2390
      %v2392 = vsel %vm1016, %v2378, -inf
      %2393 = vmax.xlane.f32.xlu0 %v2392
      %v2394 = vpop.xlane.xlu0 %2393
      %v2395 = vsel %vm1016, %v2379, -inf
      %2396 = vmax.xlane.f32.xlu0 %v2395
      %v2397 = vpop.xlane.xlu0 %2396
      %v2398 = vsel %vm1016, %v2380, -inf
      %2399 = vmax.xlane.f32.xlu0 %v2398
      %v2400 = vpop.xlane.xlu0 %2399
      %v2401 = vsel %vm1016, %v2381, -inf
      %2402 = vmax.xlane.f32.xlu0 %v2401
      %v2403 = vpop.xlane.xlu0 %2402
      %v2404 = vsel %vm1016, %v2382, -inf
      %2405 = vmax.xlane.f32.xlu0 %v2404
      %v2406 = vpop.xlane.xlu0 %2405
      %v2407 = vsel %vm1016, %v2383, -inf
      %2408 = vmax.xlane.f32.xlu0 %v2407
      %v2409 = vpop.xlane.xlu0 %2408
      %v2410 = vsel %vm1016, %v2384, -inf
      %2411 = vmax.xlane.f32.xlu0 %v2410
      %v2412 = vpop.xlane.xlu0 %2411
      %v2413 = vsel %vm1016, %v2385, -inf
      %2414 = vmax.xlane.f32.xlu0 %v2413
      %v2415 = vpop.xlane.xlu0 %2414
      %v2416 = vsel %vm1016, %v2386, -inf
      %2417 = vmax.xlane.f32.xlu0 %v2416
      %v2418 = vpop.xlane.xlu0 %2417
      %v2419 = vsel %vm1016, %v2387, -inf
      %2420 = vmax.xlane.f32.xlu0 %v2419
      %v2421 = vpop.xlane.xlu0 %2420
      %v2422 = vsel %vm1016, %v2388, -inf
      %2423 = vmax.xlane.f32.xlu0 %v2422
      %v2424 = vpop.xlane.xlu0 %2423
      %v2425 = vsub.f32 %v2377, %v2391
      %v2426 = vsub.f32 %v2378, %v2394
      %v2427 = vsub.f32 %v2379, %v2397
      %v2428 = vsub.f32 %v2380, %v2400
      %v2429 = vsub.f32 %v2381, %v2403
      %v2430 = vsub.f32 %v2382, %v2406
      %v2431 = vsub.f32 %v2383, %v2409
      %v2432 = vsub.f32 %v2384, %v2412
      %v2433 = vsub.f32 %v2385, %v2415
      %v2434 = vsub.f32 %v2386, %v2418
      %v2435 = vsub.f32 %v2387, %v2421
      %v2436 = vsub.f32 %v2388, %v2424
      %v2437 = vmul.f32 %v2425, 1.442695
      %v2438 = vpow.pop %v2437
      %v2439 = vmul.f32 %v2426, 1.442695
      %v2440 = vpow.pop %v2439
      %v2441 = vmul.f32 %v2427, 1.442695
      %v2442 = vpow.pop %v2441
      %v2443 = vmul.f32 %v2428, 1.442695
      %v2444 = vpow.pop %v2443
      %v2445 = vmul.f32 %v2429, 1.442695
      %v2446 = vpow.pop %v2445
      %v2447 = vmul.f32 %v2430, 1.442695
      %v2448 = vpow.pop %v2447
      %v2449 = vmul.f32 %v2431, 1.442695
      %v2450 = vpow.pop %v2449
      %v2451 = vmul.f32 %v2432, 1.442695
      %v2452 = vpow.pop %v2451
      %v2453 = vmul.f32 %v2433, 1.442695
      %v2454 = vpow.pop %v2453
      %v2455 = vmul.f32 %v2434, 1.442695
      %v2456 = vpow.pop %v2455
      %v2457 = vmul.f32 %v2435, 1.442695
      %v2458 = vpow.pop %v2457
      %v2459 = vmul.f32 %v2436, 1.442695
      %v2460 = vpow.pop %v2459
      %v2461 = vsel %vm1016, %v2438, 0.0
      %2462 = vadd.xlane.f32.xlu0 %v2461
      %v2463 = vpop.xlane.xlu0 %2462
      %v2464 = vsel %vm1016, %v2440, 0.0
      %2465 = vadd.xlane.f32.xlu0 %v2464
      %v2466 = vpop.xlane.xlu0 %2465
      %v2467 = vsel %vm1016, %v2442, 0.0
      %2468 = vadd.xlane.f32.xlu0 %v2467
      %v2469 = vpop.xlane.xlu0 %2468
      %v2470 = vsel %vm1016, %v2444, 0.0
      %2471 = vadd.xlane.f32.xlu0 %v2470
      %v2472 = vpop.xlane.xlu0 %2471
      %v2473 = vsel %vm1016, %v2446, 0.0
      %2474 = vadd.xlane.f32.xlu0 %v2473
      %v2475 = vpop.xlane.xlu0 %2474
      %v2476 = vsel %vm1016, %v2448, 0.0
      %2477 = vadd.xlane.f32.xlu0 %v2476
      %v2478 = vpop.xlane.xlu0 %2477
      %v2479 = vsel %vm1016, %v2450, 0.0
      %2480 = vadd.xlane.f32.xlu0 %v2479
      %v2481 = vpop.xlane.xlu0 %2480
      %v2482 = vsel %vm1016, %v2452, 0.0
      %2483 = vadd.xlane.f32.xlu0 %v2482
      %v2484 = vpop.xlane.xlu0 %2483
      %v2485 = vsel %vm1016, %v2454, 0.0
      %2486 = vadd.xlane.f32.xlu0 %v2485
      %v2487 = vpop.xlane.xlu0 %2486
      %v2488 = vsel %vm1016, %v2456, 0.0
      %2489 = vadd.xlane.f32.xlu0 %v2488
      %v2490 = vpop.xlane.xlu0 %2489
      %v2491 = vsel %vm1016, %v2458, 0.0
      %2492 = vadd.xlane.f32.xlu0 %v2491
      %v2493 = vpop.xlane.xlu0 %2492
      %v2494 = vsel %vm1016, %v2460, 0.0
      %2495 = vadd.xlane.f32.xlu0 %v2494
      %v2496 = vpop.xlane.xlu0 %2495
      %v2497 = vrcp.pop %v2463
      %v2498 = vmul.f32 %v2438, %v2497
      %v2499 = vrcp.pop %v2466
      %v2500 = vmul.f32 %v2440, %v2499
      %v2501 = vrcp.pop %v2469
      %v2502 = vmul.f32 %v2442, %v2501
      %v2503 = vrcp.pop %v2472
      %v2504 = vmul.f32 %v2444, %v2503
      %v2505 = vrcp.pop %v2475
      %v2506 = vmul.f32 %v2446, %v2505
      %v2507 = vrcp.pop %v2478
      %v2508 = vmul.f32 %v2448, %v2507
      %v2509 = vrcp.pop %v2481
      %v2510 = vmul.f32 %v2450, %v2509
      %v2511 = vrcp.pop %v2484
      %v2512 = vmul.f32 %v2452, %v2511
      %v2513 = vrcp.pop %v2487
      %v2514 = vmul.f32 %v2454, %v2513
      %v2515 = vrcp.pop %v2490
      %v2516 = vmul.f32 %v2456, %v2515
      %v2517 = vrcp.pop %v2493
      %v2518 = vmul.f32 %v2458, %v2517
      %v2519 = vrcp.pop %v2496
      %v2520 = vmul.f32 %v2460, %v2519
      %v2522 = vsel %vm1016, %v2498, 0
      %v2525 = vsel %vm1016, %v2500, 0
      %v2528 = vsel %vm1016, %v2502, 0
      %v2531 = vsel %vm1016, %v2504, 0
      %v2534 = vsel %vm1016, %v2506, 0
      %v2537 = vsel %vm1016, %v2508, 0
      %v2540 = vsel %vm1016, %v2510, 0
      %v2543 = vsel %vm1016, %v2512, 0
      %v2546 = vsel %vm1016, %v2514, 0
      %v2549 = vsel %vm1016, %v2516, 0
      %v2552 = vsel %vm1016, %v2518, 0
      %v2555 = vsel %vm1016, %v2520, 0
      %2557 = vmatprep.subr.mxu0 0.0
      %2558 = vmatpush1.msra.mxu0 %v2103
      %2559 = vmatprep.subr.mxu0 0.0
      %2560 = vmatpush1.msra.mxu0 %v2109
      %2561 = vmatprep.subr.mxu0 0.0
      %2562 = vmatpush1.msra.mxu0 %v2115
      %2563 = vmatprep.subr.mxu0 0.0
      %2564 = vmatpush1.msra.mxu0 %v2142
      %2565 = vmatprep.subr.mxu0 0.0
      %2566 = vmatpush1.msra.mxu0 %v2144
      %2567 = vmatprep.subr.mxu0 0.0
      %2568 = vmatpush1.msra.mxu0 %v2146
      %2569 = vmatprep.subr.mxu0 0.0
      %2570 = vmatpush1.msra.mxu0 %v2151
      %2571 = vmatprep.subr.mxu0 0.0
      %2572 = vmatpush1.msra.mxu0 %v2153
      %2573 = vmatprep.subr.mxu0 0.0
      %2574 = vmatpush1.msra.mxu0 %v2155
      %2575 = vmatprep.subr.mxu0 0.0
      %2576 = vmatpush1.msra.mxu0 %v2160
      %2577 = vmatprep.subr.mxu0 0.0
      %2578 = vmatpush1.msra.mxu0 %v2162
      %2579 = vmatprep.subr.mxu0 0.0
      %2580 = vmatpush1.msra.mxu0 %v2164
      %2581 = vmatprep.subr.mxu0 0.0
      %2582 = vmatpush1.msra.mxu0 0.0
      %2583 = vmatprep.subr.mxu0 0.0
      %2584 = vmatpush1.msra.mxu0 0.0
      %2585 = vmatprep.subr.mxu0 0.0
      %2586 = vmatpush1.msra.mxu0 0.0
      %2587 = vmatprep.subr.mxu0 0.0
      %2588 = vmatpush1.msra.mxu0 0.0
      %2589 = vmatprep.subr.mxu0 0.0
      %2590 = vmatpush1.msra.mxu0 0.0
      %2591 = vmatprep.subr.mxu0 0.0
      %2592 = vmatpush1.msra.mxu0 0.0
      %2593 = vmatprep.subr.mxu0 0.0
      %2594 = vmatpush1.msra.mxu0 0.0
      %2595 = vmatprep.subr.mxu0 0.0
      %2596 = vmatpush1.msra.mxu0 0.0
      %2597 = vmatprep.subr.mxu0 0.0
      %2598 = vmatpush1.msra.mxu0 0.0
      %2599 = vmatprep.subr.mxu0 0.0
      %2600 = vmatpush1.msra.mxu0 0.0
      %2601 = vmatprep.subr.mxu0 0.0
      %2602 = vmatpush1.msra.mxu0 0.0
      %2603 = vmatprep.subr.mxu0 0.0
      %2604 = vmatpush1.msra.mxu0 0.0
      %2605 = vmatprep.subr.mxu0 0.0
      %2606 = vmatpush1.msra.mxu0 0.0
      %2607 = vmatprep.subr.mxu0 0.0
      %2608 = vmatpush1.msra.mxu0 0.0
      %2609 = vmatprep.subr.mxu0 0.0
      %2610 = vmatpush1.msra.mxu0 0.0
      %2611 = vmatprep.subr.mxu0 0.0
      %2612 = vmatpush1.msra.mxu0 0.0
      %2613 = vmatprep.subr.mxu0 0.0
      %2614 = vmatpush1.msra.mxu0 0.0
      %2615 = vmatprep.subr.mxu0 0.0
      %2616 = vmatpush1.msra.mxu0 0.0
      %2617 = vmatprep.subr.mxu0 0.0
      %2618 = vmatpush1.msra.mxu0 0.0
      %2619 = vmatprep.subr.mxu0 0.0
      %2620 = vmatpush1.msra.mxu0 0.0
      %2621 = vmatprep.mubr.f32.mxu0 0.0
      %2622 = vmatmul.mubr.f32.gmra.mrb[0].mxu0 %v2522
      %v2623 = vpop.f32.mrb[0].mxu0
      %v2624 = vadd.f32 0.0, %v2623
      %v2625 = vpop.f32.mrb[0].mxu0
      %2626 = vmatprep.mubr.f32.mxu0 0.0
      %2627 = vmatmul.mubr.f32.gmra.mrb[0].mxu0 %v2525
      %v2628 = vpop.f32.mrb[0].mxu0
      %v2629 = vadd.f32 0.0, %v2628
      %v2630 = vpop.f32.mrb[0].mxu0
      %2631 = vmatprep.mubr.f32.mxu0 0.0
      %2632 = vmatmul.mubr.f32.gmra.mrb[0].mxu0 %v2528
      %v2633 = vpop.f32.mrb[0].mxu0
      %v2634 = vadd.f32 0.0, %v2633
      %v2635 = vpop.f32.mrb[0].mxu0
      %2636 = vmatprep.mubr.f32.mxu0 0.0
      %2637 = vmatmul.mubr.f32.gmra.mrb[0].mxu0 %v2531
      %v2638 = vpop.f32.mrb[0].mxu0
      %v2639 = vadd.f32 0.0, %v2638
      %v2640 = vpop.f32.mrb[0].mxu0
      %2641 = vmatprep.mubr.f32.mxu0 0.0
      %2642 = vmatmul.mubr.f32.gmra.mrb[0].mxu0 %v2534
      %v2643 = vpop.f32.mrb[0].mxu0
      %v2644 = vadd.f32 0.0, %v2643
      %v2645 = vpop.f32.mrb[0].mxu0
      %2646 = vmatprep.mubr.f32.mxu0 0.0
      %2647 = vmatmul.mubr.f32.gmra.mrb[0].mxu0 %v2537
      %v2648 = vpop.f32.mrb[0].mxu0
      %v2649 = vadd.f32 0.0, %v2648
      %v2650 = vpop.f32.mrb[0].mxu0
      %2651 = vmatprep.mubr.f32.mxu0 0.0
      %2652 = vmatmul.mubr.f32.gmra.mrb[0].mxu0 %v2540
      %v2653 = vpop.f32.mrb[0].mxu0
      %v2654 = vadd.f32 0.0, %v2653
      %v2655 = vpop.f32.mrb[0].mxu0
      %2656 = vmatprep.mubr.f32.mxu0 0.0
      %2657 = vmatmul.mubr.f32.gmra.mrb[0].mxu0 %v2543
      %v2658 = vpop.f32.mrb[0].mxu0
      %v2659 = vadd.f32 0.0, %v2658
      %v2660 = vpop.f32.mrb[0].mxu0
      %2661 = vmatprep.mubr.f32.mxu0 0.0
      %2662 = vmatmul.mubr.f32.gmra.mrb[0].mxu0 %v2546
      %v2663 = vpop.f32.mrb[0].mxu0
      %v2664 = vadd.f32 0.0, %v2663
      %v2665 = vpop.f32.mrb[0].mxu0
      %2666 = vmatprep.mubr.f32.mxu0 0.0
      %2667 = vmatmul.mubr.f32.gmra.mrb[0].mxu0 %v2549
      %v2668 = vpop.f32.mrb[0].mxu0
      %v2669 = vadd.f32 0.0, %v2668
      %v2670 = vpop.f32.mrb[0].mxu0
      %2671 = vmatprep.mubr.f32.mxu0 0.0
      %2672 = vmatmul.mubr.f32.gmra.mrb[0].mxu0 %v2552
      %v2673 = vpop.f32.mrb[0].mxu0
      %v2674 = vadd.f32 0.0, %v2673
      %v2675 = vpop.f32.mrb[0].mxu0
      %2676 = vmatprep.mubr.f32.mxu0 0.0
      %2677 = vmatmul.mubr.f32.gmra.mrb[0].mxu0 %v2555
      %v2678 = vpop.f32.mrb[0].mxu0
      %v2679 = vadd.f32 0.0, %v2678
      %v2680 = vpop.f32.mrb[0].mxu0
      %2681 = vdwg.mxu0
      %2685 = vrot.lane.b32.xlu0 %v2639, 16
      %v2686 = vpop.permute.xlu0 %2685
      %2687 = vrot.lane.b32.xlu0 %v2644, 16
      %v2688 = vpop.permute.xlu0 %2687
      %2689 = vrot.lane.b32.xlu0 %v2649, 16
      %v2690 = vpop.permute.xlu0 %2689
      %2697 = vrot.lane.b32.xlu0 %v2654, 32
      %v2698 = vpop.permute.xlu0 %2697
      %2699 = vrot.lane.b32.xlu0 %v2659, 32
      %v2700 = vpop.permute.xlu0 %2699
      %2701 = vrot.lane.b32.xlu0 %v2664, 32
      %v2702 = vpop.permute.xlu0 %2701
      %2709 = vrot.lane.b32.xlu0 %v2669, 48
      %v2710 = vpop.permute.xlu0 %2709
      %2711 = vrot.lane.b32.xlu0 %v2674, 48
      %v2712 = vpop.permute.xlu0 %2711
      %2713 = vrot.lane.b32.xlu0 %v2679, 48
      %v2714 = vpop.permute.xlu0 %2713
      %v2718 = vsel %vm818, %v2624, %v2686
      %v2719 = vsel %vm818, %v2629, %v2688
      %v2720 = vsel %vm818, %v2634, %v2690
      %v2721 = vsel %vm260, %v2718, %v2698
      %v2722 = vsel %vm260, %v2719, %v2700
      %v2723 = vsel %vm260, %v2720, %v2702
      %v2724 = vsel %vm1352, %v2721, %v2710
      %v2725 = vsel %vm1352, %v2722, %v2712
      %v2726 = vsel %vm1352, %v2723, %v2714
      %v2728 = vsel %vm585, %v2724, 0
      %v2731 = vsel %vm585, %v2725, 0
      %v2734 = vsel %vm585, %v2726, 0
      %2736 = vmatprep.subr.mxu0 0.0
      %2737 = vmatpush1.msra.mxu0 %v1883
      %2738 = vmatprep.subr.mxu0 0.0
      %2739 = vmatpush1.msra.mxu0 %v1884
      %2740 = vmatprep.subr.mxu0 0.0
      %2741 = vmatpush1.msra.mxu0 %v1885
      %2742 = vmatprep.subr.mxu0 0.0
      %2743 = vmatpush1.msra.mxu0 %v1886
      %2744 = vmatprep.subr.mxu0 0.0
      %2745 = vmatpush1.msra.mxu0 %v1887
      %2746 = vmatprep.subr.mxu0 0.0
      %2747 = vmatpush1.msra.mxu0 %v1888
      %2748 = vmatprep.subr.mxu0 0.0
      %2749 = vmatpush1.msra.mxu0 %v1889
      %2750 = vmatprep.subr.mxu0 0.0
      %2751 = vmatpush1.msra.mxu0 %v1890
      %2752 = vmatprep.subr.mxu0 0.0
      %2753 = vmatpush1.msra.mxu0 0.0
      %2754 = vmatprep.subr.mxu0 0.0
      %2755 = vmatpush1.msra.mxu0 0.0
      %2756 = vmatprep.subr.mxu0 0.0
      %2757 = vmatpush1.msra.mxu0 0.0
      %2758 = vmatprep.subr.mxu0 0.0
      %2759 = vmatpush1.msra.mxu0 0.0
      %2760 = vmatprep.subr.mxu0 0.0
      %2761 = vmatpush1.msra.mxu0 0.0
      %2762 = vmatprep.subr.mxu0 0.0
      %2763 = vmatpush1.msra.mxu0 0.0
      %2764 = vmatprep.subr.mxu0 0.0
      %2765 = vmatpush1.msra.mxu0 0.0
      %2766 = vmatprep.subr.mxu0 0.0
      %2767 = vmatpush1.msra.mxu0 0.0
      %2768 = vmatprep.subr.mxu0 0.0
      %2769 = vmatpush1.msra.mxu0 0.0
      %2770 = vmatprep.subr.mxu0 0.0
      %2771 = vmatpush1.msra.mxu0 0.0
      %2772 = vmatprep.subr.mxu0 0.0
      %2773 = vmatpush1.msra.mxu0 0.0
      %2774 = vmatprep.subr.mxu0 0.0
      %2775 = vmatpush1.msra.mxu0 0.0
      %2776 = vmatprep.subr.mxu0 0.0
      %2777 = vmatpush1.msra.mxu0 0.0
      %2778 = vmatprep.subr.mxu0 0.0
      %2779 = vmatpush1.msra.mxu0 0.0
      %2780 = vmatprep.subr.mxu0 0.0
      %2781 = vmatpush1.msra.mxu0 0.0
      %2782 = vmatprep.subr.mxu0 0.0
      %2783 = vmatpush1.msra.mxu0 0.0
      %2784 = vmatprep.subr.mxu0 0.0
      %2785 = vmatpush1.msra.mxu0 0.0
      %2786 = vmatprep.subr.mxu0 0.0
      %2787 = vmatpush1.msra.mxu0 0.0
      %2788 = vmatprep.subr.mxu0 0.0
      %2789 = vmatpush1.msra.mxu0 0.0
      %2790 = vmatprep.subr.mxu0 0.0
      %2791 = vmatpush1.msra.mxu0 0.0
      %2792 = vmatprep.subr.mxu0 0.0
      %2793 = vmatpush1.msra.mxu0 0.0
      %2794 = vmatprep.subr.mxu0 0.0
      %2795 = vmatpush1.msra.mxu0 0.0
      %2796 = vmatprep.subr.mxu0 0.0
      %2797 = vmatpush1.msra.mxu0 0.0
      %2798 = vmatprep.subr.mxu0 0.0
      %2799 = vmatpush1.msra.mxu0 0.0
      %2800 = vmatprep.mubr.f32.mxu0 0.0
      %2801 = vmatmul.mubr.f32.gmra.mrb[0].mxu0 %v2728
      %v2802 = vpop.f32.mrb[0].mxu0
      %v2803 = vadd.f32 0.0, %v2802
      %v2804 = vpop.f32.mrb[0].mxu0
      %2805 = vmatprep.mubr.f32.mxu0 0.0
      %2806 = vmatmul.mubr.f32.gmra.mrb[0].mxu0 %v2731
      %v2807 = vpop.f32.mrb[0].mxu0
      %v2808 = vadd.f32 0.0, %v2807
      %v2809 = vpop.f32.mrb[0].mxu0
      %2810 = vmatprep.mubr.f32.mxu0 0.0
      %2811 = vmatmul.mubr.f32.gmra.mrb[0].mxu0 %v2734
      %v2812 = vpop.f32.mrb[0].mxu0
      %v2813 = vadd.f32 0.0, %v2812
      %v2814 = vpop.f32.mrb[0].mxu0
      %2815 = vdwg.mxu0
      %v2816 = vadd.f32 %v1878, %v2803
      %v2817 = vadd.f32 %v1879, %v2808
      %v2818 = vadd.f32 %v1880, %v2813
      %v2819 = vlaneseq
      %v2820 = vshrl.u32 %v2819, 7
      %v2821 = vsub.s32 2, %v2820
      %v2822 = vrot.slane %v1882, %v2821
      %v2823 = vadd.f32 %v2816, %v2822
      %v2824 = vadd.f32 %v2817, %v2822
      %v2825 = vadd.f32 %v2818, %v2822
      %v2826 = vsel %vm585, %v2823, 0.0
      %2827 = vadd.xlane.f32.xlu0 %v2826
      %v2828 = vpop.xlane.xlu0 %2827
      %v2829 = vsel %vm585, %v2824, 0.0
      %2830 = vadd.xlane.f32.xlu0 %v2829
      %v2831 = vpop.xlane.xlu0 %2830
      %v2832 = vsel %vm585, %v2825, 0.0
      %2833 = vadd.xlane.f32.xlu0 %v2832
      %v2834 = vpop.xlane.xlu0 %2833
      %v2835 = vmul.f32 %v2828, %v595
      %v2836 = vmul.f32 %v2831, %v595
      %v2837 = vmul.f32 %v2834, %v595
      %v2838 = vsub.f32 %v2823, %v2835
      %v2839 = vsub.f32 %v2824, %v2836
      %v2840 = vsub.f32 %v2825, %v2837
      %v2841 = vmul.f32 %v2838, %v2838
      %v2842 = vmul.f32 %v2839, %v2839
      %v2843 = vmul.f32 %v2840, %v2840
      %v2844 = vsel %vm585, %v2841, 0.0
      %2845 = vadd.xlane.f32.xlu0 %v2844
      %v2846 = vpop.xlane.xlu0 %2845
      %v2847 = vsel %vm585, %v2842, 0.0
      %2848 = vadd.xlane.f32.xlu0 %v2847
      %v2849 = vpop.xlane.xlu0 %2848
      %v2850 = vsel %vm585, %v2843, 0.0
      %2851 = vadd.xlane.f32.xlu0 %v2850
      %v2852 = vpop.xlane.xlu0 %2851
      %v2853 = vmul.f32 %v2846, %v595
      %v2854 = vmul.f32 %v2849, %v595
      %v2855 = vmul.f32 %v2852, %v595
      %v2856 = vadd.f32 %v2853, 1e-06
      %v2857 = vadd.f32 %v2854, 1e-06
      %v2858 = vadd.f32 %v2855, 1e-06
      %v2859 = vrsqrt.pop %v2856
      %v2860 = vrsqrt.pop %v2857
      %v2861 = vrsqrt.pop %v2858
      %v2862 = vmul.f32 %v2838, %v2859
      %v2863 = vmul.f32 %v2839, %v2860
      %v2864 = vmul.f32 %v2840, %v2861
      %v2865 = vlaneseq
      %v2866 = vshrl.u32 %v2865, 7
      %v2867 = vsub.s32 3, %v2866
      %v2868 = vrot.slane %v1882, %v2867
      %v2869 = vmul.f32 %v2862, %v2868
      %v2870 = vmul.f32 %v2863, %v2868
      %v2871 = vmul.f32 %v2864, %v2868
      %v2872 = vlaneseq
      %v2873 = vshrl.u32 %v2872, 7
      %v2874 = vsub.s32 4, %v2873
      %v2875 = vrot.slane %v1882, %v2874
      %v2876 = vadd.f32 %v2869, %v2875
      %v2877 = vadd.f32 %v2870, %v2875
      %v2878 = vadd.f32 %v2871, %v2875
      %v2880 = vlaneseq
      %v2881 = vshrl.u32 %v2880, 7
      %v2882 = vsub.s32 0, %v2881
      %v2883 = vrot.slane %v1960, %v2882
      %v2884 = vlaneseq
      %v2885 = vshrl.u32 %v2884, 7
      %v2886 = vsub.s32 1, %v2885
      %v2887 = vrot.slane %v1960, %v2886
      %v2891 = vsel %vm585, %v2876, 0
      %v2894 = vsel %vm585, %v2877, 0
      %v2897 = vsel %vm585, %v2878, 0
      %2899 = vmatprep.subr.mxu0 %v1944
      %2900 = vmatpush1.msra.mxu0 %v1943
      %2901 = vmatprep.subr.mxu0 %v1946
      %2902 = vmatpush1.msra.mxu0 %v1945
      %2903 = vmatprep.subr.mxu0 %v1948
      %2904 = vmatpush1.msra.mxu0 %v1947
      %2905 = vmatprep.subr.mxu0 %v1950
      %2906 = vmatpush1.msra.mxu0 %v1949
      %2907 = vmatprep.subr.mxu0 %v1952
      %2908 = vmatpush1.msra.mxu0 %v1951
      %2909 = vmatprep.subr.mxu0 %v1954
      %2910 = vmatpush1.msra.mxu0 %v1953
      %2911 = vmatprep.subr.mxu0 %v1956
      %2912 = vmatpush1.msra.mxu0 %v1955
      %2913 = vmatprep.subr.mxu0 %v1958
      %2914 = vmatpush1.msra.mxu0 %v1957
      %2915 = vmatprep.subr.mxu0 0.0
      %2916 = vmatpush1.msra.mxu0 0.0
      %2917 = vmatprep.subr.mxu0 0.0
      %2918 = vmatpush1.msra.mxu0 0.0
      %2919 = vmatprep.subr.mxu0 0.0
      %2920 = vmatpush1.msra.mxu0 0.0
      %2921 = vmatprep.subr.mxu0 0.0
      %2922 = vmatpush1.msra.mxu0 0.0
      %2923 = vmatprep.subr.mxu0 0.0
      %2924 = vmatpush1.msra.mxu0 0.0
      %2925 = vmatprep.subr.mxu0 0.0
      %2926 = vmatpush1.msra.mxu0 0.0
      %2927 = vmatprep.subr.mxu0 0.0
      %2928 = vmatpush1.msra.mxu0 0.0
      %2929 = vmatprep.subr.mxu0 0.0
      %2930 = vmatpush1.msra.mxu0 0.0
      %2931 = vmatprep.subr.mxu0 0.0
      %2932 = vmatpush1.msra.mxu0 0.0
      %2933 = vmatprep.subr.mxu0 0.0
      %2934 = vmatpush1.msra.mxu0 0.0
      %2935 = vmatprep.subr.mxu0 0.0
      %2936 = vmatpush1.msra.mxu0 0.0
      %2937 = vmatprep.subr.mxu0 0.0
      %2938 = vmatpush1.msra.mxu0 0.0
      %2939 = vmatprep.subr.mxu0 0.0
      %2940 = vmatpush1.msra.mxu0 0.0
      %2941 = vmatprep.subr.mxu0 0.0
      %2942 = vmatpush1.msra.mxu0 0.0
      %2943 = vmatprep.subr.mxu0 0.0
      %2944 = vmatpush1.msra.mxu0 0.0
      %2945 = vmatprep.subr.mxu0 0.0
      %2946 = vmatpush1.msra.mxu0 0.0
      %2947 = vmatprep.subr.mxu0 0.0
      %2948 = vmatpush1.msra.mxu0 0.0
      %2949 = vmatprep.subr.mxu0 0.0
      %2950 = vmatpush1.msra.mxu0 0.0
      %2951 = vmatprep.subr.mxu0 0.0
      %2952 = vmatpush1.msra.mxu0 0.0
      %2953 = vmatprep.subr.mxu0 0.0
      %2954 = vmatpush1.msra.mxu0 0.0
      %2955 = vmatprep.subr.mxu0 0.0
      %2956 = vmatpush1.msra.mxu0 0.0
      %2957 = vmatprep.subr.mxu0 0.0
      %2958 = vmatpush1.msra.mxu0 0.0
      %2959 = vmatprep.subr.mxu0 0.0
      %2960 = vmatpush1.msra.mxu0 0.0
      %2961 = vmatprep.subr.mxu0 0.0
      %2962 = vmatpush1.msra.mxu0 0.0
      %2963 = vmatprep.mubr.f32.mxu0 0.0
      %2964 = vmatmul.mubr.f32.gmra.mrb[0].mxu0 %v2891
      %v2965 = vpop.f32.mrb[0].mxu0
      %v2966 = vadd.f32 %v2883, %v2965
      %v2967 = vpop.f32.mrb[0].mxu0
      %v2968 = vadd.f32 %v2887, %v2967
      %2969 = vmatprep.mubr.f32.mxu0 0.0
      %2970 = vmatmul.mubr.f32.gmra.mrb[0].mxu0 %v2894
      %v2971 = vpop.f32.mrb[0].mxu0
      %v2972 = vadd.f32 %v2883, %v2971
      %v2973 = vpop.f32.mrb[0].mxu0
      %v2974 = vadd.f32 %v2887, %v2973
      %2975 = vmatprep.mubr.f32.mxu0 0.0
      %2976 = vmatmul.mubr.f32.gmra.mrb[0].mxu0 %v2897
      %v2977 = vpop.f32.mrb[0].mxu0
      %v2978 = vadd.f32 %v2883, %v2977
      %v2979 = vpop.f32.mrb[0].mxu0
      %v2980 = vadd.f32 %v2887, %v2979
      %2981 = vdwg.mxu0
      %v2982 = vmul.f32 %v2966, 0.5
      %v2983 = vmul.f32 %v2968, 0.5
      %v2984 = vmul.f32 %v2972, 0.5
      %v2985 = vmul.f32 %v2974, 0.5
      %v2986 = vmul.f32 %v2978, 0.5
      %v2987 = vmul.f32 %v2980, 0.5
      %v2988 = vmul.f32 %v2966, 0.70710677
      %v2989 = vmul.f32 %v2968, 0.70710677
      %v2990 = vmul.f32 %v2972, 0.70710677
      %v2991 = vmul.f32 %v2974, 0.70710677
      %v2992 = vmul.f32 %v2978, 0.70710677
      %v2993 = vmul.f32 %v2980, 0.70710677
      %v2994 = vmax.f32 %v2988, -4.0
      %v2995 = vmax.f32 %v2989, -4.0
      %v2996 = vmax.f32 %v2990, -4.0
      %v2997 = vmax.f32 %v2991, -4.0
      %v2998 = vmax.f32 %v2992, -4.0
      %v2999 = vmax.f32 %v2993, -4.0
      %v3000 = vmin.f32 %v2994, 4.0
      %v3001 = vmin.f32 %v2995, 4.0
      %v3002 = vmin.f32 %v2996, 4.0
      %v3003 = vmin.f32 %v2997, 4.0
      %v3004 = vmin.f32 %v2998, 4.0
      %v3005 = vmin.f32 %v2999, 4.0
      %v3006 = vmul.f32 %v3000, %v3000
      %v3007 = vmul.f32 %v3001, %v3001
      %v3008 = vmul.f32 %v3002, %v3002
      %v3009 = vmul.f32 %v3003, %v3003
      %v3010 = vmul.f32 %v3004, %v3004
      %v3011 = vmul.f32 %v3005, %v3005
      %v3012 = vmul.f32 %v3006, -2.7261424e-10
      %v3013 = vmul.f32 %v3007, -2.7261424e-10
      %v3014 = vmul.f32 %v3008, -2.7261424e-10
      %v3015 = vmul.f32 %v3009, -2.7261424e-10
      %v3016 = vmul.f32 %v3010, -2.7261424e-10
      %v3017 = vmul.f32 %v3011, -2.7261424e-10
      %v3018 = vadd.f32 %v3012, 2.7706815e-08
      %v3019 = vadd.f32 %v3013, 2.7706815e-08
      %v3020 = vadd.f32 %v3014, 2.7706815e-08
      %v3021 = vadd.f32 %v3015, 2.7706815e-08
      %v3022 = vadd.f32 %v3016, 2.7706815e-08
      %v3023 = vadd.f32 %v3017, 2.7706815e-08
      %v3024 = vmul.f32 %v3018, %v3006
      %v3025 = vmul.f32 %v3019, %v3007
      %v3026 = vmul.f32 %v3020, %v3008
      %v3027 = vmul.f32 %v3021, %v3009
      %v3028 = vmul.f32 %v3022, %v3010
      %v3029 = vmul.f32 %v3023, %v3011
      %v3030 = vadd.f32 %v3024, -2.101024e-06
      %v3031 = vadd.f32 %v3025, -2.101024e-06
      %v3032 = vadd.f32 %v3026, -2.101024e-06
      %v3033 = vadd.f32 %v3027, -2.101024e-06
      %v3034 = vadd.f32 %v3028, -2.101024e-06
      %v3035 = vadd.f32 %v3029, -2.101024e-06
      %v3036 = vmul.f32 %v3030, %v3006
      %v3037 = vmul.f32 %v3031, %v3007
      %v3038 = vmul.f32 %v3032, %v3008
      %v3039 = vmul.f32 %v3033, %v3009
      %v3040 = vmul.f32 %v3034, %v3010
      %v3041 = vmul.f32 %v3035, %v3011
      %v3042 = vadd.f32 %v3036, -5.6925062e-05
      %v3043 = vadd.f32 %v3037, -5.6925062e-05
      %v3044 = vadd.f32 %v3038, -5.6925062e-05
      %v3045 = vadd.f32 %v3039, -5.6925062e-05
      %v3046 = vadd.f32 %v3040, -5.6925062e-05
      %v3047 = vadd.f32 %v3041, -5.6925062e-05
      %v3048 = vmul.f32 %v3042, %v3006
      %v3049 = vmul.f32 %v3043, %v3007
      %v3050 = vmul.f32 %v3044, %v3008
      %v3051 = vmul.f32 %v3045, %v3009
      %v3052 = vmul.f32 %v3046, %v3010
      %v3053 = vmul.f32 %v3047, %v3011
      %v3054 = vadd.f32 %v3048, -0.00073499064
      %v3055 = vadd.f32 %v3049, -0.00073499064
      %v3056 = vadd.f32 %v3050, -0.00073499064
      %v3057 = vadd.f32 %v3051, -0.00073499064
      %v3058 = vadd.f32 %v3052, -0.00073499064
      %v3059 = vadd.f32 %v3053, -0.00073499064
      %v3060 = vmul.f32 %v3054, %v3006
      %v3061 = vmul.f32 %v3055, %v3007
      %v3062 = vmul.f32 %v3056, %v3008
      %v3063 = vmul.f32 %v3057, %v3009
      %v3064 = vmul.f32 %v3058, %v3010
      %v3065 = vmul.f32 %v3059, %v3011
      %v3066 = vadd.f32 %v3060, -0.0029546
      %v3067 = vadd.f32 %v3061, -0.0029546
      %v3068 = vadd.f32 %v3062, -0.0029546
      %v3069 = vadd.f32 %v3063, -0.0029546
      %v3070 = vadd.f32 %v3064, -0.0029546
      %v3071 = vadd.f32 %v3065, -0.0029546
      %v3072 = vmul.f32 %v3066, %v3006
      %v3073 = vmul.f32 %v3067, %v3007
      %v3074 = vmul.f32 %v3068, %v3008
      %v3075 = vmul.f32 %v3069, %v3009
      %v3076 = vmul.f32 %v3070, %v3010
      %v3077 = vmul.f32 %v3071, %v3011
      %v3078 = vadd.f32 %v3072, -0.016096033
      %v3079 = vadd.f32 %v3073, -0.016096033
      %v3080 = vadd.f32 %v3074, -0.016096033
      %v3081 = vadd.f32 %v3075, -0.016096033
      %v3082 = vadd.f32 %v3076, -0.016096033
      %v3083 = vadd.f32 %v3077, -0.016096033
      %v3084 = vmul.f32 %v3006, -1.45660715e-05
      %v3085 = vmul.f32 %v3007, -1.45660715e-05
      %v3086 = vmul.f32 %v3008, -1.45660715e-05
      %v3087 = vmul.f32 %v3009, -1.45660715e-05
      %v3088 = vmul.f32 %v3010, -1.45660715e-05
      %v3089 = vmul.f32 %v3011, -1.45660715e-05
      %v3090 = vadd.f32 %v3084, -0.00021337405
      %v3091 = vadd.f32 %v3085, -0.00021337405
      %v3092 = vadd.f32 %v3086, -0.00021337405
      %v3093 = vadd.f32 %v3087, -0.00021337405
      %v3094 = vadd.f32 %v3088, -0.00021337405
      %v3095 = vadd.f32 %v3089, -0.00021337405
      %v3096 = vmul.f32 %v3090, %v3006
      %v3097 = vmul.f32 %v3091, %v3007
      %v3098 = vmul.f32 %v3092, %v3008
      %v3099 = vmul.f32 %v3093, %v3009
      %v3100 = vmul.f32 %v3094, %v3010
      %v3101 = vmul.f32 %v3095, %v3011
      %v3102 = vadd.f32 %v3096, -0.001682827
      %v3103 = vadd.f32 %v3097, -0.001682827
      %v3104 = vadd.f32 %v3098, -0.001682827
      %v3105 = vadd.f32 %v3099, -0.001682827
      %v3106 = vadd.f32 %v3100, -0.001682827
      %v3107 = vadd.f32 %v3101, -0.001682827
      %v3108 = vmul.f32 %v3102, %v3006
      %v3109 = vmul.f32 %v3103, %v3007
      %v3110 = vmul.f32 %v3104, %v3008
      %v3111 = vmul.f32 %v3105, %v3009
      %v3112 = vmul.f32 %v3106, %v3010
      %v3113 = vmul.f32 %v3107, %v3011
      %v3114 = vadd.f32 %v3108, -0.0073733293
      %v3115 = vadd.f32 %v3109, -0.0073733293
      %v3116 = vadd.f32 %v3110, -0.0073733293
      %v3117 = vadd.f32 %v3111, -0.0073733293
      %v3118 = vadd.f32 %v3112, -0.0073733293
      %v3119 = vadd.f32 %v3113, -0.0073733293
      %v3120 = vmul.f32 %v3114, %v3006
      %v3121 = vmul.f32 %v3115, %v3007
      %v3122 = vmul.f32 %v3116, %v3008
      %v3123 = vmul.f32 %v3117, %v3009
      %v3124 = vmul.f32 %v3118, %v3010
      %v3125 = vmul.f32 %v3119, %v3011
      %v3126 = vadd.f32 %v3120, -0.014264739
      %v3127 = vadd.f32 %v3121, -0.014264739
      %v3128 = vadd.f32 %v3122, -0.014264739
      %v3129 = vadd.f32 %v3123, -0.014264739
      %v3130 = vadd.f32 %v3124, -0.014264739
      %v3131 = vadd.f32 %v3125, -0.014264739
      %v3132 = vmul.f32 %v3000, %v3078
      %v3133 = vmul.f32 %v3001, %v3079
      %v3134 = vmul.f32 %v3002, %v3080
      %v3135 = vmul.f32 %v3003, %v3081
      %v3136 = vmul.f32 %v3004, %v3082
      %v3137 = vmul.f32 %v3005, %v3083
      %v3138 = vrcp.pop %v3126
      %v3139 = vrcp.pop %v3127
      %v3140 = vrcp.pop %v3128
      %v3141 = vrcp.pop %v3129
      %v3142 = vrcp.pop %v3130
      %v3143 = vrcp.pop %v3131
      %v3144 = vmul.f32 %v3132, %v3138
      %v3145 = vmul.f32 %v3133, %v3139
      %v3146 = vmul.f32 %v3134, %v3140
      %v3147 = vmul.f32 %v3135, %v3141
      %v3148 = vmul.f32 %v3136, %v3142
      %v3149 = vmul.f32 %v3137, %v3143
      %v3150 = vadd.f32 %v3144, 1.0
      %v3151 = vadd.f32 %v3145, 1.0
      %v3152 = vadd.f32 %v3146, 1.0
      %v3153 = vadd.f32 %v3147, 1.0
      %v3154 = vadd.f32 %v3148, 1.0
      %v3155 = vadd.f32 %v3149, 1.0
      %v3156 = vmul.f32 %v2982, %v3150
      %v3157 = vmul.f32 %v2983, %v3151
      %v3158 = vmul.f32 %v2984, %v3152
      %v3159 = vmul.f32 %v2985, %v3153
      %v3160 = vmul.f32 %v2986, %v3154
      %v3161 = vmul.f32 %v2987, %v3155
      %3162 = vmatprep.subr.mxu0 0.0
      %3163 = vmatpush1.msra.mxu0 %v1891
      %3164 = vmatprep.subr.mxu0 0.0
      %3165 = vmatpush1.msra.mxu0 %v1892
      %3166 = vmatprep.subr.mxu0 0.0
      %3167 = vmatpush1.msra.mxu0 %v1893
      %3168 = vmatprep.subr.mxu0 0.0
      %3169 = vmatpush1.msra.mxu0 %v1894
      %3170 = vmatprep.subr.mxu0 0.0
      %3171 = vmatpush1.msra.mxu0 %v1895
      %3172 = vmatprep.subr.mxu0 0.0
      %3173 = vmatpush1.msra.mxu0 %v1896
      %3174 = vmatprep.subr.mxu0 0.0
      %3175 = vmatpush1.msra.mxu0 %v1897
      %3176 = vmatprep.subr.mxu0 0.0
      %3177 = vmatpush1.msra.mxu0 %v1898
      %3178 = vmatprep.subr.mxu0 0.0
      %3179 = vmatpush1.msra.mxu0 %v1899
      %3180 = vmatprep.subr.mxu0 0.0
      %3181 = vmatpush1.msra.mxu0 %v1900
      %3182 = vmatprep.subr.mxu0 0.0
      %3183 = vmatpush1.msra.mxu0 %v1901
      %3184 = vmatprep.subr.mxu0 0.0
      %3185 = vmatpush1.msra.mxu0 %v1902
      %3186 = vmatprep.subr.mxu0 0.0
      %3187 = vmatpush1.msra.mxu0 %v1903
      %3188 = vmatprep.subr.mxu0 0.0
      %3189 = vmatpush1.msra.mxu0 %v1904
      %3190 = vmatprep.subr.mxu0 0.0
      %3191 = vmatpush1.msra.mxu0 %v1905
      %3192 = vmatprep.subr.mxu0 0.0
      %3193 = vmatpush1.msra.mxu0 %v1906
      %3194 = vmatprep.subr.mxu0 0.0
      %3195 = vmatpush1.msra.mxu0 %v1907
      %3196 = vmatprep.subr.mxu0 0.0
      %3197 = vmatpush1.msra.mxu0 %v1908
      %3198 = vmatprep.subr.mxu0 0.0
      %3199 = vmatpush1.msra.mxu0 %v1909
      %3200 = vmatprep.subr.mxu0 0.0
      %3201 = vmatpush1.msra.mxu0 %v1910
      %3202 = vmatprep.subr.mxu0 0.0
      %3203 = vmatpush1.msra.mxu0 %v1911
      %3204 = vmatprep.subr.mxu0 0.0
      %3205 = vmatpush1.msra.mxu0 %v1912
      %3206 = vmatprep.subr.mxu0 0.0
      %3207 = vmatpush1.msra.mxu0 %v1913
      %3208 = vmatprep.subr.mxu0 0.0
      %3209 = vmatpush1.msra.mxu0 %v1914
      %3210 = vmatprep.subr.mxu0 0.0
      %3211 = vmatpush1.msra.mxu0 %v1915
      %3212 = vmatprep.subr.mxu0 0.0
      %3213 = vmatpush1.msra.mxu0 %v1916
      %3214 = vmatprep.subr.mxu0 0.0
      %3215 = vmatpush1.msra.mxu0 %v1917
      %3216 = vmatprep.subr.mxu0 0.0
      %3217 = vmatpush1.msra.mxu0 %v1918
      %3218 = vmatprep.subr.mxu0 0.0
      %3219 = vmatpush1.msra.mxu0 %v1919
      %3220 = vmatprep.subr.mxu0 0.0
      %3221 = vmatpush1.msra.mxu0 %v1920
      %3222 = vmatprep.subr.mxu0 0.0
      %3223 = vmatpush1.msra.mxu0 %v1921
      %3224 = vmatprep.subr.mxu0 0.0
      %3225 = vmatpush1.msra.mxu0 %v1922
      %3226 = vmatprep.mubr.f32.mxu0 %v3157
      %3227 = vmatmul.mubr.f32.gmra.mrb[0].mxu0 %v3156
      %v3228 = vpop.f32.mrb[0].mxu0
      %v3229 = vadd.f32 0.0, %v3228
      %v3230 = vpop.f32.mrb[0].mxu0
      %3231 = vmatprep.mubr.f32.mxu0 %v3159
      %3232 = vmatmul.mubr.f32.gmra.mrb[0].mxu0 %v3158
      %v3233 = vpop.f32.mrb[0].mxu0
      %v3234 = vpop.f32.mrb[0].mxu0
      %3235 = vmatprep.mubr.f32.mxu0 %v3161
      %3236 = vmatmul.mubr.f32.gmra.mrb[0].mxu0 %v3160
      %v3237 = vpop.f32.mrb[0].mxu0
      %v3238 = vpop.f32.mrb[0].mxu0
      %3239 = vdwg.mxu0
      %v3240 = vadd.f32 %v2823, %v3229
      %v3241 = vlaneseq
      %v3242 = vshrl.u32 %v3241, 7
      %v3243 = vsub.s32 5, %v3242
      %v3244 = vrot.slane %v1882, %v3243
      %v3245 = vadd.f32 %v3240, %v3244
      %v3246 = vld [vmem:[%s1 + $0x38] sm:$0x1]
      %v3247 = vld [vmem:[%s1 + $0x39] sm:$0x1]
      %v3248 = vld [vmem:[%s5] sm:$0xff]
      %v3249 = vld [vmem:[%s5 + $0x8] sm:$0xff]
      %v3250 = vld [vmem:[%s5 + $0x10] sm:$0xff]
      %v3251 = vld [vmem:[%s5 + $0x18] sm:$0xff]
      %v3252 = vld [vmem:[%s5 + $0x20] sm:$0xff]
      %v3253 = vld [vmem:[%s5 + $0x28] sm:$0xff]
      %v3254 = vld [vmem:[%s5 + $0x30] sm:$0xff]
      %v3255 = vld [vmem:[%s5 + $0x38] sm:$0xff]
      %v3256 = vld [vmem:[%s5 + $0x40] sm:$0x1]
      %v3257 = vsel %vm585, %v3245, 0.0
      %3258 = vadd.xlane.f32.xlu0 %v3257
      %v3259 = vpop.xlane.xlu0 %3258
      %v3260 = vmul.f32 %v3259, %v595
      %v3261 = vsub.f32 %v3245, %v3260
      %v3262 = vmul.f32 %v3261, %v3261
      %v3263 = vsel %vm585, %v3262, 0.0
      %3264 = vadd.xlane.f32.xlu0 %v3263
      %v3265 = vpop.xlane.xlu0 %3264
      %v3266 = vmul.f32 %v3265, %v595
      %v3267 = vadd.f32 %v3266, 1e-06
      %v3268 = vrsqrt.pop %v3267
      %v3269 = vmul.f32 %v3261, %v3268
      %v3270 = vlaneseq
      %v3271 = vshrl.u32 %v3270, 7
      %v3272 = vsub.s32 0, %v3271
      %v3273 = vrot.slane %v3246, %v3272
      %v3274 = vmul.f32 %v3269, %v3273
      %v3275 = vlaneseq
      %v3276 = vshrl.u32 %v3275, 7
      %v3277 = vsub.s32 0, %v3276
      %v3278 = vrot.slane %v3247, %v3277
      %v3279 = vadd.f32 %v3274, %v3278
      %v3280 = vlaneseq
      %v3281 = vshrl.u32 %v3280, 7
      %v3282 = vsub.s32 0, %v3281
      %v3283 = vrot.slane %v3256, %v3282
      %v3285 = vsel %vm585, %v3279, 0
      %3287 = vmatprep.subr.mxu0 0.0
      %3288 = vmatpush1.msra.mxu0 %v3248
      %3289 = vmatprep.subr.mxu0 0.0
      %3290 = vmatpush1.msra.mxu0 %v3249
      %3291 = vmatprep.subr.mxu0 0.0
      %3292 = vmatpush1.msra.mxu0 %v3250
      %3293 = vmatprep.subr.mxu0 0.0
      %3294 = vmatpush1.msra.mxu0 %v3251
      %3295 = vmatprep.subr.mxu0 0.0
      %3296 = vmatpush1.msra.mxu0 %v3252
      %3297 = vmatprep.subr.mxu0 0.0
      %3298 = vmatpush1.msra.mxu0 %v3253
      %3299 = vmatprep.subr.mxu0 0.0
      %3300 = vmatpush1.msra.mxu0 %v3254
      %3301 = vmatprep.subr.mxu0 0.0
      %3302 = vmatpush1.msra.mxu0 %v3255
      %3303 = vmatprep.subr.mxu0 0.0
      %3304 = vmatpush1.msra.mxu0 0.0
      %3305 = vmatprep.subr.mxu0 0.0
      %3306 = vmatpush1.msra.mxu0 0.0
      %3307 = vmatprep.subr.mxu0 0.0
      %3308 = vmatpush1.msra.mxu0 0.0
      %3309 = vmatprep.subr.mxu0 0.0
      %3310 = vmatpush1.msra.mxu0 0.0
      %3311 = vmatprep.subr.mxu0 0.0
      %3312 = vmatpush1.msra.mxu0 0.0
      %3313 = vmatprep.subr.mxu0 0.0
      %3314 = vmatpush1.msra.mxu0 0.0
      %3315 = vmatprep.subr.mxu0 0.0
      %3316 = vmatpush1.msra.mxu0 0.0
      %3317 = vmatprep.subr.mxu0 0.0
      %3318 = vmatpush1.msra.mxu0 0.0
      %3319 = vmatprep.subr.mxu0 0.0
      %3320 = vmatpush1.msra.mxu0 0.0
      %3321 = vmatprep.subr.mxu0 0.0
      %3322 = vmatpush1.msra.mxu0 0.0
      %3323 = vmatprep.subr.mxu0 0.0
      %3324 = vmatpush1.msra.mxu0 0.0
      %3325 = vmatprep.subr.mxu0 0.0
      %3326 = vmatpush1.msra.mxu0 0.0
      %3327 = vmatprep.subr.mxu0 0.0
      %3328 = vmatpush1.msra.mxu0 0.0
      %3329 = vmatprep.subr.mxu0 0.0
      %3330 = vmatpush1.msra.mxu0 0.0
      %3331 = vmatprep.subr.mxu0 0.0
      %3332 = vmatpush1.msra.mxu0 0.0
      %3333 = vmatprep.subr.mxu0 0.0
      %3334 = vmatpush1.msra.mxu0 0.0
      %3335 = vmatprep.subr.mxu0 0.0
      %3336 = vmatpush1.msra.mxu0 0.0
      %3337 = vmatprep.subr.mxu0 0.0
      %3338 = vmatpush1.msra.mxu0 0.0
      %3339 = vmatprep.subr.mxu0 0.0
      %3340 = vmatpush1.msra.mxu0 0.0
      %3341 = vmatprep.subr.mxu0 0.0
      %3342 = vmatpush1.msra.mxu0 0.0
      %3343 = vmatprep.subr.mxu0 0.0
      %3344 = vmatpush1.msra.mxu0 0.0
      %3345 = vmatprep.subr.mxu0 0.0
      %3346 = vmatpush1.msra.mxu0 0.0
      %3347 = vmatprep.subr.mxu0 0.0
      %3348 = vmatpush1.msra.mxu0 0.0
      %3349 = vmatprep.subr.mxu0 0.0
      %3350 = vmatpush1.msra.mxu0 0.0
      %3351 = vmatprep.mubr.f32.mxu0 0.0
      %3352 = vmatmul.mubr.f32.gmra.mrb[0].mxu0 %v3285
      %v3353 = vpop.f32.mrb[0].mxu0
      %v3354 = vadd.f32 %v3283, %v3353
      %v3355 = vpop.f32.mrb[0].mxu0
      %3356 = vdwg.mxu0
      %3357 = vst [vmem:[%s249] sm:$0xff] %v3354
      %p3358 = scmp.lt.s32.totalorder %s17, 1
      %s3359 = scalar_select %p3358, %s17, 1
      %s3360 = smul.addr %s3359, 8
      %s3361 = scalar_lea.vmem %s6, %s3360
      // Predicated region
      $region45: #{forward.1} parent=43 // pred_check
        %p3362 = pneg %p166
      $region46: #{forward.1} parent=43 // pred_check_branch
        %3364 = sbr.rel (%p3362) target = $region48
      $region47: #{forward.1} parent=43 // pred_region
        _
      $region48: #{forward.1} parent=43 // pred_fallthru
        _
    $region44: #{forward.1} parent=5 // pred_fallthru
      _
    %p3365 = scmp.le.s32.totalorder 2, %s12
    // Predicated region
    $region49: #{forward.1} parent=5 // pred_check
      %p3366 = pneg %p3365
    $region50: #{forward.1} parent=5 // pred_check_branch
      %3368 = sbr.rel (%p3366) target = $region52
    $region51: #{forward.1} parent=5 // pred_region
      %s3369 = ssub.s32 %s12, 2
      // Predicated region
      $region53: #{forward.1} parent=51 // pred_check
        %p3370 = pneg %p172
      $region54: #{forward.1} parent=51 // pred_check_branch
        %3372 = sbr.rel (%p3370) target = $region56
      $region55: #{forward.1} parent=51 // pred_region
        %p3373 = scmp.lt.s32.totalorder %s18, 1
        %s3374 = scalar_select %p3373, %s18, 1
        %s3375 = smul.addr %s3374, 8
        %s3376 = scalar_lea.vmem %s6, %s3375
      $region56: #{forward.1} parent=51 // pred_fallthru
        _
    $region52: #{forward.1} parent=5 // pred_fallthru
      _
  $region6: #{forward.1} parent=0 // loop_footer
    %s16 = sadd.s32 1, %s12
  $region7: #{forward.1} parent=0 // loop_footer_branch
    %11 = sbr.rel target = $region3
  $region8: #{forward.1} parent=0 // loop_exit
    _

</llo_original>
